<compile_context>
chip_gen: v7x
topology: tpu7x:2x2x1
jax: 0.10.0
libtpu: 0.0.40
codegen_flags: <defaults>
</compile_context>

<pallas_src>
import functools
import math

import jax
import jax.numpy as jnp
from jax.experimental import pallas as pl
from jax.experimental.pallas import tpu as pltpu


_COMPUTE_DTYPE = jnp.bfloat16


def _vmem_limit_bytes():
    try:
        cap = pltpu.get_tpu_info().vmem_capacity_bytes
    except Exception:
        cap = 64 * 1024 * 1024
    # ~75% of physical: 48 MiB on v7x (64 MiB), 96 MiB on v5e/v6e (128 MiB).
    return int(min(cap * 3 // 4, 112 * 1024 * 1024))


_VMEM_LIMIT = _vmem_limit_bytes()
_BIG_VMEM = _VMEM_LIMIT >= 80 * 1024 * 1024   # v5e / v6e (128 MiB physical)

_DEF_TM = 256
_DEF_TN = 1024 if _BIG_VMEM else 512
_DEF_TK = 1024 if _BIG_VMEM else 512


# ----------------------------- tiling helper -----------------------------

def _choose_tile(dim, target, gran):
    """Largest tile <= target that divides dim and is a multiple of gran,
    else the full dim (block == full array dim is always legal)."""
    if dim <= target:
        return dim
    t = (target // gran) * gran
    while t >= gran:
        if dim % t == 0:
            return t
        t -= gran
    return dim


# ----------------------------- Pallas kernels -----------------------------

def _matmul_kernel(x_ref, w_ref, *args, has_bias, has_resid):
    # x: (tm, tk), w: (tk, tn) pre-transposed (K, N) in bf16; optional bias
    # (1, tn) f32 and residual (tm, tn) fused in the epilogue.
    args = list(args)
    b_ref = args.pop(0) if has_bias else None
    r_ref = args.pop(0) if has_resid else None
    o_ref, acc_ref = args

    @pl.when(pl.program_id(2) == 0)
    def _():
        acc_ref[...] = jnp.zeros_like(acc_ref)

    acc_ref[...] += jnp.dot(x_ref[...], w_ref[...],
                            preferred_element_type=jnp.float32)

    @pl.when(pl.program_id(2) == pl.num_programs(2) - 1)
    def _():
        res = acc_ref[...]
        if has_bias:
            res = res + b_ref[...]
        if has_resid:
            res = res + r_ref[...].astype(jnp.float32)
        o_ref[...] = res.astype(o_ref.dtype)


def _ln_matmul_kernel(x_ref, g_ref, bt_ref, w_ref, *args, qgelu, has_bias):
    # Fused LayerNorm (f32, eps=1e-5, biased var) + matmul (+ bias, optional
    # QuickGELU).  The normalized rows are computed ONCE per row tile (j == 0)
    # into xn_ref and reused across all column tiles.
    args = list(args)
    b_ref = args.pop(0) if has_bias else None
    o_ref, xn_ref = args

    @pl.when(pl.program_id(1) == 0)
    def _():
        x = x_ref[...].astype(jnp.float32)
        mean = jnp.mean(x, axis=-1, keepdims=True)
        var = jnp.mean(jnp.square(x - mean), axis=-1, keepdims=True)
        xn = (x - mean) * jax.lax.rsqrt(var + 1e-5)
        xn_ref[...] = (xn * g_ref[...] + bt_ref[...]).astype(xn_ref.dtype)

    h = jnp.dot(xn_ref[...], w_ref[...], preferred_element_type=jnp.float32)
    if has_bias:
        h = h + b_ref[...]
    if qgelu:
        h = h * jax.nn.sigmoid(1.702 * h)
    o_ref[...] = h.astype(o_ref.dtype)


def _layernorm_kernel(x_ref, g_ref, b_ref, o_ref):
    # Standalone LayerNorm (used only for ln_pre, whose output is also the
    # residual stream and therefore must be materialized).
    x = x_ref[...].astype(jnp.float32)
    mean = jnp.mean(x, axis=-1, keepdims=True)
    var = jnp.mean(jnp.square(x - mean), axis=-1, keepdims=True)
    xn = (x - mean) * jax.lax.rsqrt(var + 1e-5)
    o_ref[...] = (xn * g_ref[...] + b_ref[...]).astype(o_ref.dtype)


def _attn_body(q_ref, kv_ref, o_ref, heads, head_dim):
    # q_ref: (1, tq, 3D) (only the Q columns are read), kv_ref: (1, S, 3D).
    # The 1/sqrt(Dh) scale is folded into the Q rows of in_proj.
    # Per-head results are stored immediately (bounded vreg live ranges, no
    # lane concat); softmax normalization happens after the P@V matmul.
    D = heads * head_dim
    for h in range(heads):
        qs = h * head_dim
        q = q_ref[0, :, qs:qs + head_dim]                       # (tq, Dh)
        k = kv_ref[0, :, D + qs:D + qs + head_dim]              # (S, Dh)
        v = kv_ref[0, :, 2 * D + qs:2 * D + qs + head_dim]      # (S, Dh)
        s = jax.lax.dot_general(q, k, (((1,), (1,)), ((), ())),
                                preferred_element_type=jnp.float32)  # (tq, S)
        s = s - jnp.max(s, axis=-1, keepdims=True)
        p = jnp.exp(s)
        denom = jnp.sum(p, axis=-1, keepdims=True)
        out_h = jnp.dot(p.astype(v.dtype), v,
                        preferred_element_type=jnp.float32)     # (tq, Dh)
        out_h = out_h * pl.reciprocal(denom, approx=True)
        o_ref[0, :, qs:qs + head_dim] = out_h.astype(o_ref.dtype)


def _attn_kernel(q_ref, kv_ref, o_ref, *, heads, head_dim):
    _attn_body(q_ref, kv_ref, o_ref, heads, head_dim)


def _attn_kernel_single(qkv_ref, o_ref, *, heads, head_dim):
    _attn_body(qkv_ref, qkv_ref, o_ref, heads, head_dim)


# ----------------------------- kernel wrappers -----------------------------

def matmul_bias(x2d, wT, b=None, residual=None, *, tm=None, tn=None, tk=None):
    """Tiled, pipelined  x @ wT (+ b) (+ residual).  wT is (K, N)."""
    M, K = x2d.shape
    Kw, N = wT.shape
    assert K == Kw
    tm = _choose_tile(M, tm or _DEF_TM, 16)
    tn = _choose_tile(N, tn or _DEF_TN, 128)
    tk = _choose_tile(K, tk or _DEF_TK, 128)
    grid = (M // tm, N // tn, K // tk)

    has_bias = b is not None
    has_resid = residual is not None

    in_specs = [
        pl.BlockSpec((tm, tk), lambda i, j, k: (i, k)),
        pl.BlockSpec((tk, tn), lambda i, j, k: (k, j)),
    ]
    args = [x2d, wT]
    if has_bias:
        in_specs.append(pl.BlockSpec((1, tn), lambda i, j, k: (0, j)))
        args.append(b.reshape(1, N))
    if has_resid:
        in_specs.append(pl.BlockSpec((tm, tn), lambda i, j, k: (i, j)))
        args.append(residual)

    return pl.pallas_call(
        functools.partial(_matmul_kernel, has_bias=has_bias, has_resid=has_resid),
        out_shape=jax.ShapeDtypeStruct((M, N), x2d.dtype),
        grid=grid,
        in_specs=in_specs,
        out_specs=pl.BlockSpec((tm, tn), lambda i, j, k: (i, j)),
        scratch_shapes=[pltpu.VMEM((tm, tn), jnp.float32)],
        compiler_params=pltpu.CompilerParams(
            dimension_semantics=("parallel", "parallel", "arbitrary"),
            vmem_limit_bytes=_VMEM_LIMIT),
    )(*args)


def ln_matmul_bias(x2d, g, beta, wT, b=None, *, qgelu=False, tm=None, tn=None):
    """Fused LayerNorm(x) @ wT (+ b) (+ QuickGELU).  K (=width) kept whole;
    normalized rows cached in VMEM across column tiles."""
    M, K = x2d.shape
    Kw, N = wT.shape
    assert K == Kw
    tm = _choose_tile(M, tm or _DEF_TM, 16)
    tn = _choose_tile(N, tn or _DEF_TN, 128)
    grid = (M // tm, N // tn)
    has_bias = b is not None

    in_specs = [
        pl.BlockSpec((tm, K), lambda i, j: (i, 0)),
        pl.BlockSpec((1, K), lambda i, j: (0, 0)),
        pl.BlockSpec((1, K), lambda i, j: (0, 0)),
        pl.BlockSpec((K, tn), lambda i, j: (0, j)),
    ]
    args = [x2d, g.reshape(1, K), beta.reshape(1, K), wT]
    if has_bias:
        in_specs.append(pl.BlockSpec((1, tn), lambda i, j: (0, j)))
        args.append(b.reshape(1, N))

    return pl.pallas_call(
        functools.partial(_ln_matmul_kernel, qgelu=qgelu, has_bias=has_bias),
        out_shape=jax.ShapeDtypeStruct((M, N), x2d.dtype),
        grid=grid,
        in_specs=in_specs,
        out_specs=pl.BlockSpec((tm, tn), lambda i, j: (i, j)),
        scratch_shapes=[pltpu.VMEM((tm, K), wT.dtype)],
        compiler_params=pltpu.CompilerParams(
            # j axis "arbitrary": the xn scratch written at j == 0 must be
            # reused by the later j steps on the same core.
            dimension_semantics=("parallel", "arbitrary"),
            vmem_limit_bytes=_VMEM_LIMIT),
    )(*args)


def layernorm(x2d, g, b, *, tm=None):
    M, D = x2d.shape
    tm = _choose_tile(M, tm or _DEF_TM, 16)
    return pl.pallas_call(
        _layernorm_kernel,
        out_shape=jax.ShapeDtypeStruct((M, D), x2d.dtype),
        grid=(M // tm,),
        in_specs=[pl.BlockSpec((tm, D), lambda i: (i, 0)),
                  pl.BlockSpec((1, D), lambda i: (0, 0)),
                  pl.BlockSpec((1, D), lambda i: (0, 0))],
        out_specs=pl.BlockSpec((tm, D), lambda i: (i, 0)),
        compiler_params=pltpu.CompilerParams(
            dimension_semantics=("parallel",),
            vmem_limit_bytes=_VMEM_LIMIT),
    )(x2d, g.reshape(1, D), b.reshape(1, D))


def multihead_attention(qkv, heads, D, *, tq_target=256):
    # qkv: (B, S, 3D)  ->  (B, S, D).  Grid (B, S//tq): query tiles give extra
    # parallel steps (both v7x TensorCores busy); K/V block index is constant
    # over the query axis so it stays resident (not re-DMA'd).
    B, S, threeD = qkv.shape
    assert threeD == 3 * D
    head_dim = D // heads
    tq = _choose_tile(S, tq_target, 8)   # divides S, or == S
    nq = S // tq

    if nq == 1:
        kern = functools.partial(_attn_kernel_single, heads=heads, head_dim=head_dim)
        in_specs = [pl.BlockSpec((1, S, 3 * D), lambda b, qi: (b, 0, 0))]
        args = (qkv,)
    else:
        kern = functools.partial(_attn_kernel, heads=heads, head_dim=head_dim)
        in_specs = [pl.BlockSpec((1, tq, 3 * D), lambda b, qi: (b, qi, 0)),
                    pl.BlockSpec((1, S, 3 * D), lambda b, qi: (b, 0, 0))]
        args = (qkv, qkv)

    return pl.pallas_call(
        kern,
        out_shape=jax.ShapeDtypeStruct((B, S, D), qkv.dtype),
        grid=(B, nq),
        in_specs=in_specs,
        out_specs=pl.BlockSpec((1, tq, D), lambda b, qi: (b, qi, 0)),
        compiler_params=pltpu.CompilerParams(
            dimension_semantics=("parallel", "parallel"),
            vmem_limit_bytes=_VMEM_LIMIT),
    )(*args)


# ----------------------------- model (glue + kernels) -----------------------------

def extract_patches(x, patch, stride):
    """im2col for Conv2d(kernel=patch, stride=stride, no padding).
    Returns (B, num_patches, C*p*p) with feature order (C, kh, kw), matching
    conv1.weight.reshape(width, -1)."""
    B, C, H, W = x.shape
    ny = (H - patch) // stride + 1
    nx = (W - patch) // stride + 1
    if stride == patch and H % patch == 0 and W % patch == 0:
        p = x.reshape(B, C, ny, patch, nx, patch)
        p = p.transpose(0, 2, 4, 1, 3, 5)            # (B, ny, nx, C, ph, pw)
        return p.reshape(B, ny * nx, C * patch * patch)
    cols = []
    for ky in range(patch):
        for kx in range(patch):
            sl = x[:, :, ky::stride, kx::stride][:, :, :ny, :nx]
            cols.append(sl)
    patches = jnp.stack(cols, axis=2).reshape(B, C * patch * patch, ny * nx)
    return patches.transpose(0, 2, 1)


def residual_attention_block(x2d, p, heads, B, S):
    # x2d: (B*S, D) in the compute dtype (bf16)
    M, D = x2d.shape

    # --- attention branch: LN1 fused into in_proj (q pre-scaled) ---
    qkv = ln_matmul_bias(x2d, p["ln1_w"], p["ln1_b"],
                         p["in_proj_wT"], p["in_proj_b"])        # (B*S, 3D)
    attn = multihead_attention(qkv.reshape(B, S, 3 * D), heads, D)  # (B, S, D)
    x2d = matmul_bias(attn.reshape(M, D), p["out_proj_wT"], p["out_proj_b"],
                      residual=x2d)

    # --- MLP branch: LN2 + c_fc + QuickGELU fused; c_proj fuses the residual ---
    h = ln_matmul_bias(x2d, p["ln2_w"], p["ln2_b"],
                       p["fc_wT"], p["fc_b"], qgelu=True)        # (B*S, 4D)
    x2d = matmul_bias(h, p["cproj_wT"], p["cproj_b"], residual=x2d)
    return x2d


def vision_transformer_forward(x, params, *, patch, stride, width, heads):
    B = x.shape[0]
    x = x.astype(_COMPUTE_DTYPE)          # bf16 MXU operands everywhere
    dtype = x.dtype

    # conv1 (patch embedding) as im2col + tiled Pallas matmul (no bias)
    patches = extract_patches(x, patch, stride)                  # (B, N, C*p*p)
    N = patches.shape[1]
    tok = matmul_bias(patches.reshape(B * N, -1),
                      params["conv1_wT"]).reshape(B, N, width)

    # prepend class token, add positional embedding
    cls = jnp.broadcast_to(params["class_embedding"].astype(dtype), (B, 1, width))
    h = jnp.concatenate([cls, tok], axis=1)                      # (B, N+1, width)
    h = h + params["positional_embedding"].astype(dtype)[None]
    S = N + 1

    # ln_pre (standalone: its output is also the residual stream)
    h2 = layernorm(h.reshape(B * S, width), params["ln_pre_w"], params["ln_pre_b"])

    # transformer
    for blk in params["blocks"]:
        h2 = residual_attention_block(h2, blk, heads, B, S)

    # ln_post fused with the final projection; LN is per-token so applying it
    # only to the CLS token is equivalent to the reference (no bias on proj).
    cls_tok = h2.reshape(B, S, width)[:, 0, :]                   # (B, width)
    v_global = ln_matmul_bias(cls_tok, params["ln_post_w"], params["ln_post_b"],
                              params["proj"])
    return v_global.astype(jnp.float32)                          # (B, output_dim)


# ----------------------------- parameters -----------------------------

def init_params(key, *, width, layers, output_dim, patch, in_ch, num_patches):
    """PyTorch-layout parameters (nn.Linear weights are (out, in))."""
    scale = width ** (-0.5)
    ks = jax.random.split(key, 6 + layers)
    p = {
        "conv1_w": 0.02 * jax.random.normal(ks[0], (width, in_ch, patch, patch), jnp.float32),
        "class_embedding": scale * jax.random.normal(ks[1], (width,), jnp.float32),
        "positional_embedding": scale * jax.random.normal(ks[2], (num_patches + 1, width), jnp.float32),
        "ln_pre_w": jnp.ones((width,), jnp.float32),
        "ln_pre_b": jnp.zeros((width,), jnp.float32),
        "ln_post_w": jnp.ones((width,), jnp.float32),
        "ln_post_b": jnp.zeros((width,), jnp.float32),
        "proj": scale * jax.random.normal(ks[3], (width, output_dim), jnp.float32),
        "blocks": [],
    }
    for i in range(layers):
        bk = jax.random.split(ks[6 + i], 4)
        d = width
        p["blocks"].append({
            "ln1_w": jnp.ones((d,), jnp.float32), "ln1_b": jnp.zeros((d,), jnp.float32),
            "in_proj_w": 0.02 * jax.random.normal(bk[0], (3 * d, d), jnp.float32),
            "in_proj_b": jnp.zeros((3 * d,), jnp.float32),
            "out_proj_w": 0.02 * jax.random.normal(bk[1], (d, d), jnp.float32),
            "out_proj_b": jnp.zeros((d,), jnp.float32),
            "ln2_w": jnp.ones((d,), jnp.float32), "ln2_b": jnp.zeros((d,), jnp.float32),
            "fc_w": 0.02 * jax.random.normal(bk[2], (4 * d, d), jnp.float32),
            "fc_b": jnp.zeros((4 * d,), jnp.float32),
            "cproj_w": 0.02 * jax.random.normal(bk[3], (d, 4 * d), jnp.float32),
            "cproj_b": jnp.zeros((d,), jnp.float32),
        })
    return p


def prepare_params(p, heads):
    """One-time weight prep: transpose nn.Linear weights to (K, N), cast MXU
    weights to bf16, fold the 1/sqrt(Dh) attention scale into the Q rows of
    in_proj, reshape conv1.  Biases and LN params stay f32 (f32 epilogue)."""
    width = p["conv1_w"].shape[0]
    wdt = _COMPUTE_DTYPE
    out = {
        "conv1_wT": p["conv1_w"].reshape(width, -1).T.astype(wdt),  # (C*p*p, width)
        "class_embedding": p["class_embedding"],
        "positional_embedding": p["positional_embedding"],
        "ln_pre_w": p["ln_pre_w"], "ln_pre_b": p["ln_pre_b"],
        "ln_post_w": p["ln_post_w"], "ln_post_b": p["ln_post_b"],
        "proj": p["proj"].astype(wdt),                               # already (K, N)
        "blocks": [],
    }
    for blk in p["blocks"]:
        D = blk["ln1_w"].shape[0]
        scale = 1.0 / math.sqrt(D // heads)
        in_w = blk["in_proj_w"].at[:D].multiply(scale)               # pre-scale Q
        in_b = blk["in_proj_b"].at[:D].multiply(scale)
        out["blocks"].append({
            "ln1_w": blk["ln1_w"], "ln1_b": blk["ln1_b"],
            "in_proj_wT": in_w.T.astype(wdt),                        # (D, 3D)
            "in_proj_b": in_b,
            "out_proj_wT": blk["out_proj_w"].T.astype(wdt),          # (D, D)
            "out_proj_b": blk["out_proj_b"],
            "ln2_w": blk["ln2_w"], "ln2_b": blk["ln2_b"],
            "fc_wT": blk["fc_w"].T.astype(wdt),                      # (D, 4D)
            "fc_b": blk["fc_b"],
            "cproj_wT": blk["cproj_w"].T.astype(wdt),                # (4D, D)
            "cproj_b": blk["cproj_b"],
        })
    return out


# ----------------------------- main -----------------------------

if __name__ == "__main__":
    # Small config consistent with the module's __init__:
    input_resolution = (16, 16)   # (H, W)
    patch_size = 4
    stride_size = 4
    width = 32
    layers = 2
    heads = 4
    output_dim = 16
    batch = 2
    in_ch = 3

    num_x = (input_resolution[1] - patch_size) // stride_size + 1
    num_y = (input_resolution[0] - patch_size) // stride_size + 1
    num_patches = num_x * num_y   # 16 -> seq len 17

    key = jax.random.PRNGKey(0)
    kx, kp = jax.random.split(key)
    x = jax.random.normal(kx, (batch, in_ch, *input_resolution), jnp.float32)
    raw_params = init_params(kp, width=width, layers=layers, output_dim=output_dim,
                             patch=patch_size, in_ch=in_ch, num_patches=num_patches)
    params = prepare_params(raw_params, heads)

    fwd = jax.jit(functools.partial(
        vision_transformer_forward,
        patch=patch_size, stride=stride_size, width=width, heads=heads))

    out = fwd(x, params)
    jax.block_until_ready(out)

    assert out.shape == (batch, output_dim), out.shape
    assert bool(jnp.all(jnp.isfinite(out)))
    print("KERNEL_OK")
</pallas_src>

<mosaic_0001>
module attributes {stable_mosaic.version = 11 : i64} {
  func.func @_ln_matmul_kernel(%arg0: i32, %arg1: i32, %arg2: memref<34x32xbf16, #tpu.memory_space<vmem>>, %arg3: memref<1x32xf32, #tpu.memory_space<vmem>>, %arg4: memref<1x32xf32, #tpu.memory_space<vmem>>, %arg5: memref<32x96xbf16, #tpu.memory_space<vmem>>, %arg6: memref<1x96xf32, #tpu.memory_space<vmem>>, %arg7: memref<34x96xbf16, #tpu.memory_space<vmem>>, %arg8: memref<34x32xbf16, #tpu.memory_space<vmem>>) attributes {dimension_semantics = [#tpu.dimension_semantics<parallel>, #tpu.dimension_semantics<arbitrary>], iteration_bounds = array<i64: 1, 1>, scalar_prefetch = 0 : i64, scratch_operands = 1 : i64, tpu.core_type = #tpu.core_type<tc>, window_params = [{transform_indices = @transform_0, window_bounds = array<i64: 34, 32>}, {pipeline_mode = #tpu.pipeline_mode<synchronous>, transform_indices = @transform_1, window_bounds = array<i64: 1, 32>}, {pipeline_mode = #tpu.pipeline_mode<synchronous>, transform_indices = @transform_2, window_bounds = array<i64: 1, 32>}, {transform_indices = @transform_3, window_bounds = array<i64: 32, 96>}, {transform_indices = @transform_4, window_bounds = array<i64: 1, 96>}, {transform_indices = @transform_5, window_bounds = array<i64: 34, 96>}]} {
    %c0_i32 = arith.constant 0 : i32
    %0 = arith.cmpi eq, %arg1, %c0_i32 : i32
    %1 = arith.extui %0 : i1 to i32
    %c0_i32_0 = arith.constant 0 : i32
    %2 = arith.cmpi ne, %1, %c0_i32_0 : i32
    scf.if %2 {
      %c0_8 = arith.constant 0 : index
      %c0_9 = arith.constant 0 : index
      %11 = vector.load %arg2[%c0_8, %c0_9] : memref<34x32xbf16, #tpu.memory_space<vmem>>, vector<34x32xbf16>
      %12 = arith.extf %11 : vector<34x32xbf16> to vector<34x32xf32>
      %cst_10 = arith.constant dense<0.000000e+00> : vector<34xf32>
      %13 = vector.multi_reduction <add>, %12, %cst_10 [1] : vector<34x32xf32> to vector<34xf32>
      %14 = vector.shape_cast %13 : vector<34xf32> to vector<34x1xf32>
      %cst_11 = arith.constant 3.200000e+01 : f32
      %15 = vector.broadcast %cst_11 : f32 to vector<34x1xf32>
      %16 = arith.divf %14, %15 : vector<34x1xf32>
      %17 = vector.broadcast %16 : vector<34x1xf32> to vector<34x32xf32>
      %18 = arith.subf %12, %17 : vector<34x32xf32>
      %19 = arith.mulf %18, %18 : vector<34x32xf32>
      %cst_12 = arith.constant dense<0.000000e+00> : vector<34xf32>
      %20 = vector.multi_reduction <add>, %19, %cst_12 [1] : vector<34x32xf32> to vector<34xf32>
      %21 = vector.shape_cast %20 : vector<34xf32> to vector<34x1xf32>
      %cst_13 = arith.constant 3.200000e+01 : f32
      %22 = vector.broadcast %cst_13 : f32 to vector<34x1xf32>
      %23 = arith.divf %21, %22 : vector<34x1xf32>
      %24 = vector.broadcast %16 : vector<34x1xf32> to vector<34x32xf32>
      %25 = arith.subf %12, %24 : vector<34x32xf32>
      %cst_14 = arith.constant 9.99999974E-6 : f32
      %26 = vector.broadcast %cst_14 : f32 to vector<34x1xf32>
      %27 = arith.addf %23, %26 : vector<34x1xf32>
      %28 = math.rsqrt %27 : vector<34x1xf32>
      %29 = vector.broadcast %28 : vector<34x1xf32> to vector<34x32xf32>
      %30 = arith.mulf %25, %29 : vector<34x32xf32>
      %c0_15 = arith.constant 0 : index
      %c0_16 = arith.constant 0 : index
      %31 = vector.load %arg3[%c0_15, %c0_16] : memref<1x32xf32, #tpu.memory_space<vmem>>, vector<1x32xf32>
      %32 = vector.broadcast %31 : vector<1x32xf32> to vector<34x32xf32>
      %33 = arith.mulf %30, %32 : vector<34x32xf32>
      %c0_17 = arith.constant 0 : index
      %c0_18 = arith.constant 0 : index
      %34 = vector.load %arg4[%c0_17, %c0_18] : memref<1x32xf32, #tpu.memory_space<vmem>>, vector<1x32xf32>
      %35 = vector.broadcast %34 : vector<1x32xf32> to vector<34x32xf32>
      %36 = arith.addf %33, %35 : vector<34x32xf32>
      %37 = arith.truncf %36 : vector<34x32xf32> to vector<34x32xbf16>
      %c0_19 = arith.constant 0 : index
      %c0_20 = arith.constant 0 : index
      %38 = vector.load %arg8[%c0_19, %c0_20] : memref<34x32xbf16, #tpu.memory_space<vmem>>, vector<34x32xbf16>
      tpu.vector_store %arg8[%c0_19, %c0_20], %37 {strides = array<i32>} : memref<34x32xbf16, #tpu.memory_space<vmem>>, vector<34x32xbf16>,
    } else {
    }
    %c0 = arith.constant 0 : index
    %c0_1 = arith.constant 0 : index
    %3 = vector.load %arg8[%c0, %c0_1] : memref<34x32xbf16, #tpu.memory_space<vmem>>, vector<34x32xbf16>
    %c0_2 = arith.constant 0 : index
    %c0_3 = arith.constant 0 : index
    %4 = vector.load %arg5[%c0_2, %c0_3] : memref<32x96xbf16, #tpu.memory_space<vmem>>, vector<32x96xbf16>
    %cst = arith.constant dense<0.000000e+00> : vector<34x96xf32>
    %5 = tpu.matmul %3, %4, %cst {dimension_numbers = #tpu.dot_dimension_numbers<[1], [0], [0], [1], [0, 0, 1, 1], [], []>} : vector<34x32xbf16>, vector<32x96xbf16>, vector<34x96xf32> -> vector<34x96xf32>
    %c0_4 = arith.constant 0 : index
    %c0_5 = arith.constant 0 : index
    %6 = vector.load %arg6[%c0_4, %c0_5] : memref<1x96xf32, #tpu.memory_space<vmem>>, vector<1x96xf32>
    %7 = vector.broadcast %6 : vector<1x96xf32> to vector<34x96xf32>
    %8 = arith.addf %5, %7 : vector<34x96xf32>
    %9 = arith.truncf %8 : vector<34x96xf32> to vector<34x96xbf16>
    %c0_6 = arith.constant 0 : index
    %c0_7 = arith.constant 0 : index
    %10 = vector.load %arg7[%c0_6, %c0_7] : memref<34x96xbf16, #tpu.memory_space<vmem>>, vector<34x96xbf16>
    tpu.vector_store %arg7[%c0_6, %c0_7], %9 {strides = array<i32>} : memref<34x96xbf16, #tpu.memory_space<vmem>>, vector<34x96xbf16>,
    return
  }
  func.func @transform_0(%arg0: i32, %arg1: i32) -> (i32, i32) {
    %c0_i32 = arith.constant 0 : i32
    %c0_i32_0 = arith.constant 0 : i32
    return %arg0, %c0_i32 : i32, i32
  }
  func.func @transform_1(%arg0: i32, %arg1: i32) -> (i32, i32) {
    %c0_i32 = arith.constant 0 : i32
    %c0_i32_0 = arith.constant 0 : i32
    %c0_i32_1 = arith.constant 0 : i32
    return %c0_i32, %c0_i32_0 : i32, i32
  }
  func.func @transform_2(%arg0: i32, %arg1: i32) -> (i32, i32) {
    %c0_i32 = arith.constant 0 : i32
    %c0_i32_0 = arith.constant 0 : i32
    %c0_i32_1 = arith.constant 0 : i32
    return %c0_i32, %c0_i32_0 : i32, i32
  }
  func.func @transform_3(%arg0: i32, %arg1: i32) -> (i32, i32) {
    %c0_i32 = arith.constant 0 : i32
    %c0_i32_0 = arith.constant 0 : i32
    return %c0_i32, %arg1 : i32, i32
  }
  func.func @transform_4(%arg0: i32, %arg1: i32) -> (i32, i32) {
    %c0_i32 = arith.constant 0 : i32
    %c0_i32_0 = arith.constant 0 : i32
    return %c0_i32, %arg1 : i32, i32
  }
  func.func @transform_5(%arg0: i32, %arg1: i32) -> (i32, i32) {
    %c0_i32 = arith.constant 0 : i32
    return %arg0, %arg1 : i32, i32
  }
}

module attributes {stable_mosaic.version = 11 : i64} {
  func.func @_matmul_kernel(%arg0: i32, %arg1: i32, %arg2: i32, %arg3: memref<32x48xbf16, #tpu.memory_space<vmem>>, %arg4: memref<48x32xbf16, #tpu.memory_space<vmem>>, %arg5: memref<32x32xbf16, #tpu.memory_space<vmem>>, %arg6: memref<32x32xf32, #tpu.memory_space<vmem>>) attributes {dimension_semantics = [#tpu.dimension_semantics<parallel>, #tpu.dimension_semantics<parallel>, #tpu.dimension_semantics<arbitrary>], iteration_bounds = array<i64: 1, 1, 1>, scalar_prefetch = 0 : i64, scratch_operands = 1 : i64, tpu.core_type = #tpu.core_type<tc>, window_params = [{transform_indices = @transform_0, window_bounds = array<i64: 32, 48>}, {transform_indices = @transform_1, window_bounds = array<i64: 48, 32>}, {transform_indices = @transform_2, window_bounds = array<i64: 32, 32>}]} {
    %c0_i32 = arith.constant 0 : i32
    %0 = arith.cmpi eq, %arg2, %c0_i32 : i32
    %1 = arith.extui %0 : i1 to i32
    %c0_i32_0 = arith.constant 0 : i32
    %2 = arith.cmpi ne, %1, %c0_i32_0 : i32
    scf.if %2 {
      %cst_10 = arith.constant 0.000000e+00 : f32
      %12 = vector.broadcast %cst_10 : f32 to vector<32x32xf32>
      %c0_11 = arith.constant 0 : index
      %c0_12 = arith.constant 0 : index
      %13 = vector.load %arg6[%c0_11, %c0_12] : memref<32x32xf32, #tpu.memory_space<vmem>>, vector<32x32xf32>
      tpu.vector_store %arg6[%c0_11, %c0_12], %12 {strides = array<i32>} : memref<32x32xf32, #tpu.memory_space<vmem>>, vector<32x32xf32>,
    } else {
    }
    %c0 = arith.constant 0 : index
    %c0_1 = arith.constant 0 : index
    %3 = vector.load %arg6[%c0, %c0_1] : memref<32x32xf32, #tpu.memory_space<vmem>>, vector<32x32xf32>
    %c0_2 = arith.constant 0 : index
    %c0_3 = arith.constant 0 : index
    %4 = vector.load %arg3[%c0_2, %c0_3] : memref<32x48xbf16, #tpu.memory_space<vmem>>, vector<32x48xbf16>
    %c0_4 = arith.constant 0 : index
    %c0_5 = arith.constant 0 : index
    %5 = vector.load %arg4[%c0_4, %c0_5] : memref<48x32xbf16, #tpu.memory_space<vmem>>, vector<48x32xbf16>
    %cst = arith.constant dense<0.000000e+00> : vector<32x32xf32>
    %6 = tpu.matmul %4, %5, %cst {dimension_numbers = #tpu.dot_dimension_numbers<[1], [0], [0], [1], [0, 0, 1, 1], [], []>} : vector<32x48xbf16>, vector<48x32xbf16>, vector<32x32xf32> -> vector<32x32xf32>
    %7 = arith.addf %3, %6 : vector<32x32xf32>
    %c0_6 = arith.constant 0 : index
    %c0_7 = arith.constant 0 : index
    %8 = vector.load %arg6[%c0_6, %c0_7] : memref<32x32xf32, #tpu.memory_space<vmem>>, vector<32x32xf32>
    tpu.vector_store %arg6[%c0_6, %c0_7], %7 {strides = array<i32>} : memref<32x32xf32, #tpu.memory_space<vmem>>, vector<32x32xf32>,
    %c0_i32_8 = arith.constant 0 : i32
    %9 = arith.cmpi eq, %arg2, %c0_i32_8 : i32
    %10 = arith.extui %9 : i1 to i32
    %c0_i32_9 = arith.constant 0 : i32
    %11 = arith.cmpi ne, %10, %c0_i32_9 : i32
    scf.if %11 {
      %c0_10 = arith.constant 0 : index
      %c0_11 = arith.constant 0 : index
      %12 = vector.load %arg6[%c0_10, %c0_11] : memref<32x32xf32, #tpu.memory_space<vmem>>, vector<32x32xf32>
      %13 = arith.truncf %12 : vector<32x32xf32> to vector<32x32xbf16>
      %c0_12 = arith.constant 0 : index
      %c0_13 = arith.constant 0 : index
      %14 = vector.load %arg5[%c0_12, %c0_13] : memref<32x32xbf16, #tpu.memory_space<vmem>>, vector<32x32xbf16>
      tpu.vector_store %arg5[%c0_12, %c0_13], %13 {strides = array<i32>} : memref<32x32xbf16, #tpu.memory_space<vmem>>, vector<32x32xbf16>,
    } else {
    }
    return
  }
  func.func @transform_0(%arg0: i32, %arg1: i32, %arg2: i32) -> (i32, i32) {
    %c0_i32 = arith.constant 0 : i32
    return %arg0, %arg2 : i32, i32
  }
  func.func @transform_1(%arg0: i32, %arg1: i32, %arg2: i32) -> (i32, i32) {
    %c0_i32 = arith.constant 0 : i32
    return %arg2, %arg1 : i32, i32
  }
  func.func @transform_2(%arg0: i32, %arg1: i32, %arg2: i32) -> (i32, i32) {
    %c0_i32 = arith.constant 0 : i32
    return %arg0, %arg1 : i32, i32
  }
}

module attributes {stable_mosaic.version = 11 : i64} {
  func.func @_layernorm_kernel(%arg0: i32, %arg1: memref<34x32xbf16, #tpu.memory_space<vmem>>, %arg2: memref<1x32xf32, #tpu.memory_space<vmem>>, %arg3: memref<1x32xf32, #tpu.memory_space<vmem>>, %arg4: memref<34x32xbf16, #tpu.memory_space<vmem>>) attributes {dimension_semantics = [#tpu.dimension_semantics<parallel>], iteration_bounds = array<i64: 1>, scalar_prefetch = 0 : i64, scratch_operands = 0 : i64, tpu.core_type = #tpu.core_type<tc>, window_params = [{transform_indices = @transform_0, window_bounds = array<i64: 34, 32>}, {pipeline_mode = #tpu.pipeline_mode<synchronous>, transform_indices = @transform_1, window_bounds = array<i64: 1, 32>}, {pipeline_mode = #tpu.pipeline_mode<synchronous>, transform_indices = @transform_2, window_bounds = array<i64: 1, 32>}, {transform_indices = @transform_3, window_bounds = array<i64: 34, 32>}]} {
    %c0 = arith.constant 0 : index
    %c0_0 = arith.constant 0 : index
    %0 = vector.load %arg1[%c0, %c0_0] : memref<34x32xbf16, #tpu.memory_space<vmem>>, vector<34x32xbf16>
    %1 = arith.extf %0 : vector<34x32xbf16> to vector<34x32xf32>
    %cst = arith.constant dense<0.000000e+00> : vector<34xf32>
    %2 = vector.multi_reduction <add>, %1, %cst [1] : vector<34x32xf32> to vector<34xf32>
    %3 = vector.shape_cast %2 : vector<34xf32> to vector<34x1xf32>
    %cst_1 = arith.constant 3.200000e+01 : f32
    %4 = vector.broadcast %cst_1 : f32 to vector<34x1xf32>
    %5 = arith.divf %3, %4 : vector<34x1xf32>
    %6 = vector.broadcast %5 : vector<34x1xf32> to vector<34x32xf32>
    %7 = arith.subf %1, %6 : vector<34x32xf32>
    %8 = arith.mulf %7, %7 : vector<34x32xf32>
    %cst_2 = arith.constant dense<0.000000e+00> : vector<34xf32>
    %9 = vector.multi_reduction <add>, %8, %cst_2 [1] : vector<34x32xf32> to vector<34xf32>
    %10 = vector.shape_cast %9 : vector<34xf32> to vector<34x1xf32>
    %cst_3 = arith.constant 3.200000e+01 : f32
    %11 = vector.broadcast %cst_3 : f32 to vector<34x1xf32>
    %12 = arith.divf %10, %11 : vector<34x1xf32>
    %13 = vector.broadcast %5 : vector<34x1xf32> to vector<34x32xf32>
    %14 = arith.subf %1, %13 : vector<34x32xf32>
    %cst_4 = arith.constant 9.99999974E-6 : f32
    %15 = vector.broadcast %cst_4 : f32 to vector<34x1xf32>
    %16 = arith.addf %12, %15 : vector<34x1xf32>
    %17 = math.rsqrt %16 : vector<34x1xf32>
    %18 = vector.broadcast %17 : vector<34x1xf32> to vector<34x32xf32>
    %19 = arith.mulf %14, %18 : vector<34x32xf32>
    %c0_5 = arith.constant 0 : index
    %c0_6 = arith.constant 0 : index
    %20 = vector.load %arg2[%c0_5, %c0_6] : memref<1x32xf32, #tpu.memory_space<vmem>>, vector<1x32xf32>
    %21 = vector.broadcast %20 : vector<1x32xf32> to vector<34x32xf32>
    %22 = arith.mulf %19, %21 : vector<34x32xf32>
    %c0_7 = arith.constant 0 : index
    %c0_8 = arith.constant 0 : index
    %23 = vector.load %arg3[%c0_7, %c0_8] : memref<1x32xf32, #tpu.memory_space<vmem>>, vector<1x32xf32>
    %24 = vector.broadcast %23 : vector<1x32xf32> to vector<34x32xf32>
    %25 = arith.addf %22, %24 : vector<34x32xf32>
    %26 = arith.truncf %25 : vector<34x32xf32> to vector<34x32xbf16>
    %c0_9 = arith.constant 0 : index
    %c0_10 = arith.constant 0 : index
    %27 = vector.load %arg4[%c0_9, %c0_10] : memref<34x32xbf16, #tpu.memory_space<vmem>>, vector<34x32xbf16>
    tpu.vector_store %arg4[%c0_9, %c0_10], %26 {strides = array<i32>} : memref<34x32xbf16, #tpu.memory_space<vmem>>, vector<34x32xbf16>,
    return
  }
  func.func @transform_0(%arg0: i32) -> (i32, i32) {
    %c0_i32 = arith.constant 0 : i32
    %c0_i32_0 = arith.constant 0 : i32
    return %arg0, %c0_i32 : i32, i32
  }
  func.func @transform_1(%arg0: i32) -> (i32, i32) {
    %c0_i32 = arith.constant 0 : i32
    %c0_i32_0 = arith.constant 0 : i32
    %c0_i32_1 = arith.constant 0 : i32
    return %c0_i32, %c0_i32_0 : i32, i32
  }
  func.func @transform_2(%arg0: i32) -> (i32, i32) {
    %c0_i32 = arith.constant 0 : i32
    %c0_i32_0 = arith.constant 0 : i32
    %c0_i32_1 = arith.constant 0 : i32
    return %c0_i32, %c0_i32_0 : i32, i32
  }
  func.func @transform_3(%arg0: i32) -> (i32, i32) {
    %c0_i32 = arith.constant 0 : i32
    %c0_i32_0 = arith.constant 0 : i32
    return %arg0, %c0_i32 : i32, i32
  }
}

module attributes {stable_mosaic.version = 11 : i64} {
  func.func @_attn_kernel_single(%arg0: i32, %arg1: i32, %arg2: memref<1x17x96xbf16, #tpu.memory_space<vmem>>, %arg3: memref<1x17x32xbf16, #tpu.memory_space<vmem>>) attributes {dimension_semantics = [#tpu.dimension_semantics<parallel>, #tpu.dimension_semantics<parallel>], iteration_bounds = array<i64: 2, 1>, scalar_prefetch = 0 : i64, scratch_operands = 0 : i64, tpu.core_type = #tpu.core_type<tc>, window_params = [{transform_indices = @transform_0, window_bounds = array<i64: 1, 17, 96>}, {transform_indices = @transform_1, window_bounds = array<i64: 1, 17, 32>}]} {
    %c0 = arith.constant 0 : index
    %c0_0 = arith.constant 0 : index
    %c0_1 = arith.constant 0 : index
    %0 = vector.load %arg2[%c0, %c0_0, %c0_1] : memref<1x17x96xbf16, #tpu.memory_space<vmem>>, vector<1x17x8xbf16>
    %1 = vector.shape_cast %0 : vector<1x17x8xbf16> to vector<17x8xbf16>
    %c0_2 = arith.constant 0 : index
    %c0_3 = arith.constant 0 : index
    %c32 = arith.constant 32 : index
    %2 = vector.load %arg2[%c0_2, %c0_3, %c32] : memref<1x17x96xbf16, #tpu.memory_space<vmem>>, vector<1x17x8xbf16>
    %3 = vector.shape_cast %2 : vector<1x17x8xbf16> to vector<17x8xbf16>
    %c0_4 = arith.constant 0 : index
    %c0_5 = arith.constant 0 : index
    %c64 = arith.constant 64 : index
    %4 = vector.load %arg2[%c0_4, %c0_5, %c64] : memref<1x17x96xbf16, #tpu.memory_space<vmem>>, vector<1x17x8xbf16>
    %5 = vector.shape_cast %4 : vector<1x17x8xbf16> to vector<17x8xbf16>
    %cst = arith.constant dense<0.000000e+00> : vector<17x17xf32>
    %6 = tpu.matmul %1, %3, %cst {dimension_numbers = #tpu.dot_dimension_numbers<[1], [1], [0], [0], [0, 0, 1, 0], [], []>} : vector<17x8xbf16>, vector<17x8xbf16>, vector<17x17xf32> -> vector<17x17xf32>
    %cst_6 = arith.constant dense<0xFF800000> : vector<17xf32>
    %7 = vector.multi_reduction <maximumf>, %6, %cst_6 [1] : vector<17x17xf32> to vector<17xf32>
    %8 = vector.shape_cast %7 : vector<17xf32> to vector<17x1xf32>
    %9 = vector.broadcast %8 : vector<17x1xf32> to vector<17x17xf32>
    %10 = arith.subf %6, %9 : vector<17x17xf32>
    %11 = math.exp %10 : vector<17x17xf32>
    %cst_7 = arith.constant dense<0.000000e+00> : vector<17xf32>
    %12 = vector.multi_reduction <add>, %11, %cst_7 [1] : vector<17x17xf32> to vector<17xf32>
    %13 = vector.shape_cast %12 : vector<17xf32> to vector<17x1xf32>
    %14 = arith.truncf %11 : vector<17x17xf32> to vector<17x17xbf16>
    %cst_8 = arith.constant dense<0.000000e+00> : vector<17x8xf32>
    %15 = tpu.matmul %14, %5, %cst_8 {dimension_numbers = #tpu.dot_dimension_numbers<[1], [0], [0], [1], [0, 0, 1, 1], [], []>} : vector<17x17xbf16>, vector<17x8xbf16>, vector<17x8xf32> -> vector<17x8xf32>
    %16 = tpu.reciprocal %13 {approx = true} : vector<17x1xf32> -> vector<17x1xf32>
    %17 = vector.broadcast %16 : vector<17x1xf32> to vector<17x8xf32>
    %18 = arith.mulf %15, %17 : vector<17x8xf32>
    %19 = arith.truncf %18 : vector<17x8xf32> to vector<17x8xbf16>
    %c0_9 = arith.constant 0 : index
    %c0_10 = arith.constant 0 : index
    %c0_11 = arith.constant 0 : index
    %20 = vector.load %arg3[%c0_9, %c0_10, %c0_11] : memref<1x17x32xbf16, #tpu.memory_space<vmem>>, vector<1x17x8xbf16>
    %21 = vector.shape_cast %20 : vector<1x17x8xbf16> to vector<17x8xbf16>
    %22 = vector.shape_cast %19 : vector<17x8xbf16> to vector<1x17x8xbf16>
    tpu.vector_store %arg3[%c0_9, %c0_10, %c0_11], %22 {strides = array<i32>} : memref<1x17x32xbf16, #tpu.memory_space<vmem>>, vector<1x17x8xbf16>,
    %c0_12 = arith.constant 0 : index
    %c0_13 = arith.constant 0 : index
    %c8 = arith.constant 8 : index
    %23 = vector.load %arg2[%c0_12, %c0_13, %c8] : memref<1x17x96xbf16, #tpu.memory_space<vmem>>, vector<1x17x8xbf16>
    %24 = vector.shape_cast %23 : vector<1x17x8xbf16> to vector<17x8xbf16>
    %c0_14 = arith.constant 0 : index
    %c0_15 = arith.constant 0 : index
    %c40 = arith.constant 40 : index
    %25 = vector.load %arg2[%c0_14, %c0_15, %c40] : memref<1x17x96xbf16, #tpu.memory_space<vmem>>, vector<1x17x8xbf16>
    %26 = vector.shape_cast %25 : vector<1x17x8xbf16> to vector<17x8xbf16>
    %c0_16 = arith.constant 0 : index
    %c0_17 = arith.constant 0 : index
    %c72 = arith.constant 72 : index
    %27 = vector.load %arg2[%c0_16, %c0_17, %c72] : memref<1x17x96xbf16, #tpu.memory_space<vmem>>, vector<1x17x8xbf16>
    %28 = vector.shape_cast %27 : vector<1x17x8xbf16> to vector<17x8xbf16>
    %cst_18 = arith.constant dense<0.000000e+00> : vector<17x17xf32>
    %29 = tpu.matmul %24, %26, %cst_18 {dimension_numbers = #tpu.dot_dimension_numbers<[1], [1], [0], [0], [0, 0, 1, 0], [], []>} : vector<17x8xbf16>, vector<17x8xbf16>, vector<17x17xf32> -> vector<17x17xf32>
    %cst_19 = arith.constant dense<0xFF800000> : vector<17xf32>
    %30 = vector.multi_reduction <maximumf>, %29, %cst_19 [1] : vector<17x17xf32> to vector<17xf32>
    %31 = vector.shape_cast %30 : vector<17xf32> to vector<17x1xf32>
    %32 = vector.broadcast %31 : vector<17x1xf32> to vector<17x17xf32>
    %33 = arith.subf %29, %32 : vector<17x17xf32>
    %34 = math.exp %33 : vector<17x17xf32>
    %cst_20 = arith.constant dense<0.000000e+00> : vector<17xf32>
    %35 = vector.multi_reduction <add>, %34, %cst_20 [1] : vector<17x17xf32> to vector<17xf32>
    %36 = vector.shape_cast %35 : vector<17xf32> to vector<17x1xf32>
    %37 = arith.truncf %34 : vector<17x17xf32> to vector<17x17xbf16>
    %cst_21 = arith.constant dense<0.000000e+00> : vector<17x8xf32>
    %38 = tpu.matmul %37, %28, %cst_21 {dimension_numbers = #tpu.dot_dimension_numbers<[1], [0], [0], [1], [0, 0, 1, 1], [], []>} : vector<17x17xbf16>, vector<17x8xbf16>, vector<17x8xf32> -> vector<17x8xf32>
    %39 = tpu.reciprocal %36 {approx = true} : vector<17x1xf32> -> vector<17x1xf32>
    %40 = vector.broadcast %39 : vector<17x1xf32> to vector<17x8xf32>
    %41 = arith.mulf %38, %40 : vector<17x8xf32>
    %42 = arith.truncf %41 : vector<17x8xf32> to vector<17x8xbf16>
    %c0_22 = arith.constant 0 : index
    %c0_23 = arith.constant 0 : index
    %c8_24 = arith.constant 8 : index
    %43 = vector.load %arg3[%c0_22, %c0_23, %c8_24] : memref<1x17x32xbf16, #tpu.memory_space<vmem>>, vector<1x17x8xbf16>
    %44 = vector.shape_cast %43 : vector<1x17x8xbf16> to vector<17x8xbf16>
    %45 = vector.shape_cast %42 : vector<17x8xbf16> to vector<1x17x8xbf16>
    tpu.vector_store %arg3[%c0_22, %c0_23, %c8_24], %45 {strides = array<i32>} : memref<1x17x32xbf16, #tpu.memory_space<vmem>>, vector<1x17x8xbf16>,
    %c0_25 = arith.constant 0 : index
    %c0_26 = arith.constant 0 : index
    %c16 = arith.constant 16 : index
    %46 = vector.load %arg2[%c0_25, %c0_26, %c16] : memref<1x17x96xbf16, #tpu.memory_space<vmem>>, vector<1x17x8xbf16>
    %47 = vector.shape_cast %46 : vector<1x17x8xbf16> to vector<17x8xbf16>
    %c0_27 = arith.constant 0 : index
    %c0_28 = arith.constant 0 : index
    %c48 = arith.constant 48 : index
    %48 = vector.load %arg2[%c0_27, %c0_28, %c48] : memref<1x17x96xbf16, #tpu.memory_space<vmem>>, vector<1x17x8xbf16>
    %49 = vector.shape_cast %48 : vector<1x17x8xbf16> to vector<17x8xbf16>
    %c0_29 = arith.constant 0 : index
    %c0_30 = arith.constant 0 : index
    %c80 = arith.constant 80 : index
    %50 = vector.load %arg2[%c0_29, %c0_30, %c80] : memref<1x17x96xbf16, #tpu.memory_space<vmem>>, vector<1x17x8xbf16>
    %51 = vector.shape_cast %50 : vector<1x17x8xbf16> to vector<17x8xbf16>
    %cst_31 = arith.constant dense<0.000000e+00> : vector<17x17xf32>
    %52 = tpu.matmul %47, %49, %cst_31 {dimension_numbers = #tpu.dot_dimension_numbers<[1], [1], [0], [0], [0, 0, 1, 0], [], []>} : vector<17x8xbf16>, vector<17x8xbf16>, vector<17x17xf32> -> vector<17x17xf32>
    %cst_32 = arith.constant dense<0xFF800000> : vector<17xf32>
    %53 = vector.multi_reduction <maximumf>, %52, %cst_32 [1] : vector<17x17xf32> to vector<17xf32>
    %54 = vector.shape_cast %53 : vector<17xf32> to vector<17x1xf32>
    %55 = vector.broadcast %54 : vector<17x1xf32> to vector<17x17xf32>
    %56 = arith.subf %52, %55 : vector<17x17xf32>
    %57 = math.exp %56 : vector<17x17xf32>
    %cst_33 = arith.constant dense<0.000000e+00> : vector<17xf32>
    %58 = vector.multi_reduction <add>, %57, %cst_33 [1] : vector<17x17xf32> to vector<17xf32>
    %59 = vector.shape_cast %58 : vector<17xf32> to vector<17x1xf32>
    %60 = arith.truncf %57 : vector<17x17xf32> to vector<17x17xbf16>
    %cst_34 = arith.constant dense<0.000000e+00> : vector<17x8xf32>
    %61 = tpu.matmul %60, %51, %cst_34 {dimension_numbers = #tpu.dot_dimension_numbers<[1], [0], [0], [1], [0, 0, 1, 1], [], []>} : vector<17x17xbf16>, vector<17x8xbf16>, vector<17x8xf32> -> vector<17x8xf32>
    %62 = tpu.reciprocal %59 {approx = true} : vector<17x1xf32> -> vector<17x1xf32>
    %63 = vector.broadcast %62 : vector<17x1xf32> to vector<17x8xf32>
    %64 = arith.mulf %61, %63 : vector<17x8xf32>
    %65 = arith.truncf %64 : vector<17x8xf32> to vector<17x8xbf16>
    %c0_35 = arith.constant 0 : index
    %c0_36 = arith.constant 0 : index
    %c16_37 = arith.constant 16 : index
    %66 = vector.load %arg3[%c0_35, %c0_36, %c16_37] : memref<1x17x32xbf16, #tpu.memory_space<vmem>>, vector<1x17x8xbf16>
    %67 = vector.shape_cast %66 : vector<1x17x8xbf16> to vector<17x8xbf16>
    %68 = vector.shape_cast %65 : vector<17x8xbf16> to vector<1x17x8xbf16>
    tpu.vector_store %arg3[%c0_35, %c0_36, %c16_37], %68 {strides = array<i32>} : memref<1x17x32xbf16, #tpu.memory_space<vmem>>, vector<1x17x8xbf16>,
    %c0_38 = arith.constant 0 : index
    %c0_39 = arith.constant 0 : index
    %c24 = arith.constant 24 : index
    %69 = vector.load %arg2[%c0_38, %c0_39, %c24] : memref<1x17x96xbf16, #tpu.memory_space<vmem>>, vector<1x17x8xbf16>
    %70 = vector.shape_cast %69 : vector<1x17x8xbf16> to vector<17x8xbf16>
    %c0_40 = arith.constant 0 : index
    %c0_41 = arith.constant 0 : index
    %c56 = arith.constant 56 : index
    %71 = vector.load %arg2[%c0_40, %c0_41, %c56] : memref<1x17x96xbf16, #tpu.memory_space<vmem>>, vector<1x17x8xbf16>
    %72 = vector.shape_cast %71 : vector<1x17x8xbf16> to vector<17x8xbf16>
    %c0_42 = arith.constant 0 : index
    %c0_43 = arith.constant 0 : index
    %c88 = arith.constant 88 : index
    %73 = vector.load %arg2[%c0_42, %c0_43, %c88] : memref<1x17x96xbf16, #tpu.memory_space<vmem>>, vector<1x17x8xbf16>
    %74 = vector.shape_cast %73 : vector<1x17x8xbf16> to vector<17x8xbf16>
    %cst_44 = arith.constant dense<0.000000e+00> : vector<17x17xf32>
    %75 = tpu.matmul %70, %72, %cst_44 {dimension_numbers = #tpu.dot_dimension_numbers<[1], [1], [0], [0], [0, 0, 1, 0], [], []>} : vector<17x8xbf16>, vector<17x8xbf16>, vector<17x17xf32> -> vector<17x17xf32>
    %cst_45 = arith.constant dense<0xFF800000> : vector<17xf32>
    %76 = vector.multi_reduction <maximumf>, %75, %cst_45 [1] : vector<17x17xf32> to vector<17xf32>
    %77 = vector.shape_cast %76 : vector<17xf32> to vector<17x1xf32>
    %78 = vector.broadcast %77 : vector<17x1xf32> to vector<17x17xf32>
    %79 = arith.subf %75, %78 : vector<17x17xf32>
    %80 = math.exp %79 : vector<17x17xf32>
    %cst_46 = arith.constant dense<0.000000e+00> : vector<17xf32>
    %81 = vector.multi_reduction <add>, %80, %cst_46 [1] : vector<17x17xf32> to vector<17xf32>
    %82 = vector.shape_cast %81 : vector<17xf32> to vector<17x1xf32>
    %83 = arith.truncf %80 : vector<17x17xf32> to vector<17x17xbf16>
    %cst_47 = arith.constant dense<0.000000e+00> : vector<17x8xf32>
    %84 = tpu.matmul %83, %74, %cst_47 {dimension_numbers = #tpu.dot_dimension_numbers<[1], [0], [0], [1], [0, 0, 1, 1], [], []>} : vector<17x17xbf16>, vector<17x8xbf16>, vector<17x8xf32> -> vector<17x8xf32>
    %85 = tpu.reciprocal %82 {approx = true} : vector<17x1xf32> -> vector<17x1xf32>
    %86 = vector.broadcast %85 : vector<17x1xf32> to vector<17x8xf32>
    %87 = arith.mulf %84, %86 : vector<17x8xf32>
    %88 = arith.truncf %87 : vector<17x8xf32> to vector<17x8xbf16>
    %c0_48 = arith.constant 0 : index
    %c0_49 = arith.constant 0 : index
    %c24_50 = arith.constant 24 : index
    %89 = vector.load %arg3[%c0_48, %c0_49, %c24_50] : memref<1x17x32xbf16, #tpu.memory_space<vmem>>, vector<1x17x8xbf16>
    %90 = vector.shape_cast %89 : vector<1x17x8xbf16> to vector<17x8xbf16>
    %91 = vector.shape_cast %88 : vector<17x8xbf16> to vector<1x17x8xbf16>
    tpu.vector_store %arg3[%c0_48, %c0_49, %c24_50], %91 {strides = array<i32>} : memref<1x17x32xbf16, #tpu.memory_space<vmem>>, vector<1x17x8xbf16>,
    return
  }
  func.func @transform_0(%arg0: i32, %arg1: i32) -> (i32, i32, i32) {
    %c0_i32 = arith.constant 0 : i32
    %c0_i32_0 = arith.constant 0 : i32
    %c0_i32_1 = arith.constant 0 : i32
    return %arg0, %c0_i32, %c0_i32_0 : i32, i32, i32
  }
  func.func @transform_1(%arg0: i32, %arg1: i32) -> (i32, i32, i32) {
    %c0_i32 = arith.constant 0 : i32
    %c0_i32_0 = arith.constant 0 : i32
    return %arg0, %arg1, %c0_i32 : i32, i32, i32
  }
}

module attributes {stable_mosaic.version = 11 : i64} {
  func.func @_ln_matmul_kernel(%arg0: i32, %arg1: i32, %arg2: memref<34x32xbf16, #tpu.memory_space<vmem>>, %arg3: memref<1x32xf32, #tpu.memory_space<vmem>>, %arg4: memref<1x32xf32, #tpu.memory_space<vmem>>, %arg5: memref<32x128xbf16, #tpu.memory_space<vmem>>, %arg6: memref<1x128xf32, #tpu.memory_space<vmem>>, %arg7: memref<34x128xbf16, #tpu.memory_space<vmem>>, %arg8: memref<34x32xbf16, #tpu.memory_space<vmem>>) attributes {dimension_semantics = [#tpu.dimension_semantics<parallel>, #tpu.dimension_semantics<arbitrary>], iteration_bounds = array<i64: 1, 1>, scalar_prefetch = 0 : i64, scratch_operands = 1 : i64, tpu.core_type = #tpu.core_type<tc>, window_params = [{transform_indices = @transform_0, window_bounds = array<i64: 34, 32>}, {pipeline_mode = #tpu.pipeline_mode<synchronous>, transform_indices = @transform_1, window_bounds = array<i64: 1, 32>}, {pipeline_mode = #tpu.pipeline_mode<synchronous>, transform_indices = @transform_2, window_bounds = array<i64: 1, 32>}, {transform_indices = @transform_3, window_bounds = array<i64: 32, 128>}, {transform_indices = @transform_4, window_bounds = array<i64: 1, 128>}, {transform_indices = @transform_5, window_bounds = array<i64: 34, 128>}]} {
    %c0_i32 = arith.constant 0 : i32
    %0 = arith.cmpi eq, %arg1, %c0_i32 : i32
    %1 = arith.extui %0 : i1 to i32
    %c0_i32_0 = arith.constant 0 : i32
    %2 = arith.cmpi ne, %1, %c0_i32_0 : i32
    scf.if %2 {
      %c0_10 = arith.constant 0 : index
      %c0_11 = arith.constant 0 : index
      %19 = vector.load %arg2[%c0_10, %c0_11] : memref<34x32xbf16, #tpu.memory_space<vmem>>, vector<34x32xbf16>
      %20 = arith.extf %19 : vector<34x32xbf16> to vector<34x32xf32>
      %cst_12 = arith.constant dense<0.000000e+00> : vector<34xf32>
      %21 = vector.multi_reduction <add>, %20, %cst_12 [1] : vector<34x32xf32> to vector<34xf32>
      %22 = vector.shape_cast %21 : vector<34xf32> to vector<34x1xf32>
      %cst_13 = arith.constant 3.200000e+01 : f32
      %23 = vector.broadcast %cst_13 : f32 to vector<34x1xf32>
      %24 = arith.divf %22, %23 : vector<34x1xf32>
      %25 = vector.broadcast %24 : vector<34x1xf32> to vector<34x32xf32>
      %26 = arith.subf %20, %25 : vector<34x32xf32>
      %27 = arith.mulf %26, %26 : vector<34x32xf32>
      %cst_14 = arith.constant dense<0.000000e+00> : vector<34xf32>
      %28 = vector.multi_reduction <add>, %27, %cst_14 [1] : vector<34x32xf32> to vector<34xf32>
      %29 = vector.shape_cast %28 : vector<34xf32> to vector<34x1xf32>
      %cst_15 = arith.constant 3.200000e+01 : f32
      %30 = vector.broadcast %cst_15 : f32 to vector<34x1xf32>
      %31 = arith.divf %29, %30 : vector<34x1xf32>
      %32 = vector.broadcast %24 : vector<34x1xf32> to vector<34x32xf32>
      %33 = arith.subf %20, %32 : vector<34x32xf32>
      %cst_16 = arith.constant 9.99999974E-6 : f32
      %34 = vector.broadcast %cst_16 : f32 to vector<34x1xf32>
      %35 = arith.addf %31, %34 : vector<34x1xf32>
      %36 = math.rsqrt %35 : vector<34x1xf32>
      %37 = vector.broadcast %36 : vector<34x1xf32> to vector<34x32xf32>
      %38 = arith.mulf %33, %37 : vector<34x32xf32>
      %c0_17 = arith.constant 0 : index
      %c0_18 = arith.constant 0 : index
      %39 = vector.load %arg3[%c0_17, %c0_18] : memref<1x32xf32, #tpu.memory_space<vmem>>, vector<1x32xf32>
      %40 = vector.broadcast %39 : vector<1x32xf32> to vector<34x32xf32>
      %41 = arith.mulf %38, %40 : vector<34x32xf32>
      %c0_19 = arith.constant 0 : index
      %c0_20 = arith.constant 0 : index
      %42 = vector.load %arg4[%c0_19, %c0_20] : memref<1x32xf32, #tpu.memory_space<vmem>>, vector<1x32xf32>
      %43 = vector.broadcast %42 : vector<1x32xf32> to vector<34x32xf32>
      %44 = arith.addf %41, %43 : vector<34x32xf32>
      %45 = arith.truncf %44 : vector<34x32xf32> to vector<34x32xbf16>
      %c0_21 = arith.constant 0 : index
      %c0_22 = arith.constant 0 : index
      %46 = vector.load %arg8[%c0_21, %c0_22] : memref<34x32xbf16, #tpu.memory_space<vmem>>, vector<34x32xbf16>
      tpu.vector_store %arg8[%c0_21, %c0_22], %45 {strides = array<i32>} : memref<34x32xbf16, #tpu.memory_space<vmem>>, vector<34x32xbf16>,
    } else {
    }
    %c0 = arith.constant 0 : index
    %c0_1 = arith.constant 0 : index
    %3 = vector.load %arg8[%c0, %c0_1] : memref<34x32xbf16, #tpu.memory_space<vmem>>, vector<34x32xbf16>
    %c0_2 = arith.constant 0 : index
    %c0_3 = arith.constant 0 : index
    %4 = vector.load %arg5[%c0_2, %c0_3] : memref<32x128xbf16, #tpu.memory_space<vmem>>, vector<32x128xbf16>
    %cst = arith.constant dense<0.000000e+00> : vector<34x128xf32>
    %5 = tpu.matmul %3, %4, %cst {dimension_numbers = #tpu.dot_dimension_numbers<[1], [0], [0], [1], [0, 0, 1, 1], [], []>} : vector<34x32xbf16>, vector<32x128xbf16>, vector<34x128xf32> -> vector<34x128xf32>
    %c0_4 = arith.constant 0 : index
    %c0_5 = arith.constant 0 : index
    %6 = vector.load %arg6[%c0_4, %c0_5] : memref<1x128xf32, #tpu.memory_space<vmem>>, vector<1x128xf32>
    %7 = vector.broadcast %6 : vector<1x128xf32> to vector<34x128xf32>
    %8 = arith.addf %5, %7 : vector<34x128xf32>
    %cst_6 = arith.constant 1.702000e+00 : f32
    %9 = vector.broadcast %cst_6 : f32 to vector<34x128xf32>
    %10 = arith.mulf %9, %8 : vector<34x128xf32>
    %11 = arith.negf %10 : vector<34x128xf32>
    %12 = math.exp %11 : vector<34x128xf32>
    %cst_7 = arith.constant 1.000000e+00 : f32
    %13 = vector.broadcast %cst_7 : f32 to vector<34x128xf32>
    %14 = arith.addf %13, %12 : vector<34x128xf32>
    %15 = arith.divf %13, %14 : vector<34x128xf32>
    %16 = arith.mulf %8, %15 : vector<34x128xf32>
    %17 = arith.truncf %16 : vector<34x128xf32> to vector<34x128xbf16>
    %c0_8 = arith.constant 0 : index
    %c0_9 = arith.constant 0 : index
    %18 = vector.load %arg7[%c0_8, %c0_9] : memref<34x128xbf16, #tpu.memory_space<vmem>>, vector<34x128xbf16>
    tpu.vector_store %arg7[%c0_8, %c0_9], %17 {strides = array<i32>} : memref<34x128xbf16, #tpu.memory_space<vmem>>, vector<34x128xbf16>,
    return
  }
  func.func @transform_0(%arg0: i32, %arg1: i32) -> (i32, i32) {
    %c0_i32 = arith.constant 0 : i32
    %c0_i32_0 = arith.constant 0 : i32
    return %arg0, %c0_i32 : i32, i32
  }
  func.func @transform_1(%arg0: i32, %arg1: i32) -> (i32, i32) {
    %c0_i32 = arith.constant 0 : i32
    %c0_i32_0 = arith.constant 0 : i32
    %c0_i32_1 = arith.constant 0 : i32
    return %c0_i32, %c0_i32_0 : i32, i32
  }
  func.func @transform_2(%arg0: i32, %arg1: i32) -> (i32, i32) {
    %c0_i32 = arith.constant 0 : i32
    %c0_i32_0 = arith.constant 0 : i32
    %c0_i32_1 = arith.constant 0 : i32
    return %c0_i32, %c0_i32_0 : i32, i32
  }
  func.func @transform_3(%arg0: i32, %arg1: i32) -> (i32, i32) {
    %c0_i32 = arith.constant 0 : i32
    %c0_i32_0 = arith.constant 0 : i32
    return %c0_i32, %arg1 : i32, i32
  }
  func.func @transform_4(%arg0: i32, %arg1: i32) -> (i32, i32) {
    %c0_i32 = arith.constant 0 : i32
    %c0_i32_0 = arith.constant 0 : i32
    return %c0_i32, %arg1 : i32, i32
  }
  func.func @transform_5(%arg0: i32, %arg1: i32) -> (i32, i32) {
    %c0_i32 = arith.constant 0 : i32
    return %arg0, %arg1 : i32, i32
  }
}

module attributes {stable_mosaic.version = 11 : i64} {
  func.func @_matmul_kernel(%arg0: i32, %arg1: i32, %arg2: i32, %arg3: memref<34x128xbf16, #tpu.memory_space<vmem>>, %arg4: memref<128x32xbf16, #tpu.memory_space<vmem>>, %arg5: memref<1x32xf32, #tpu.memory_space<vmem>>, %arg6: memref<34x32xbf16, #tpu.memory_space<vmem>>, %arg7: memref<34x32xbf16, #tpu.memory_space<vmem>>, %arg8: memref<34x32xf32, #tpu.memory_space<vmem>>) attributes {dimension_semantics = [#tpu.dimension_semantics<parallel>, #tpu.dimension_semantics<parallel>, #tpu.dimension_semantics<arbitrary>], iteration_bounds = array<i64: 1, 1, 1>, scalar_prefetch = 0 : i64, scratch_operands = 1 : i64, tpu.core_type = #tpu.core_type<tc>, window_params = [{transform_indices = @transform_0, window_bounds = array<i64: 34, 128>}, {transform_indices = @transform_1, window_bounds = array<i64: 128, 32>}, {transform_indices = @transform_2, window_bounds = array<i64: 1, 32>}, {transform_indices = @transform_3, window_bounds = array<i64: 34, 32>}, {transform_indices = @transform_4, window_bounds = array<i64: 34, 32>}]} {
    %c0_i32 = arith.constant 0 : i32
    %0 = arith.cmpi eq, %arg2, %c0_i32 : i32
    %1 = arith.extui %0 : i1 to i32
    %c0_i32_0 = arith.constant 0 : i32
    %2 = arith.cmpi ne, %1, %c0_i32_0 : i32
    scf.if %2 {
      %cst_10 = arith.constant 0.000000e+00 : f32
      %12 = vector.broadcast %cst_10 : f32 to vector<34x32xf32>
      %c0_11 = arith.constant 0 : index
      %c0_12 = arith.constant 0 : index
      %13 = vector.load %arg8[%c0_11, %c0_12] : memref<34x32xf32, #tpu.memory_space<vmem>>, vector<34x32xf32>
      tpu.vector_store %arg8[%c0_11, %c0_12], %12 {strides = array<i32>} : memref<34x32xf32, #tpu.memory_space<vmem>>, vector<34x32xf32>,
    } else {
    }
    %c0 = arith.constant 0 : index
    %c0_1 = arith.constant 0 : index
    %3 = vector.load %arg8[%c0, %c0_1] : memref<34x32xf32, #tpu.memory_space<vmem>>, vector<34x32xf32>
    %c0_2 = arith.constant 0 : index
    %c0_3 = arith.constant 0 : index
    %4 = vector.load %arg3[%c0_2, %c0_3] : memref<34x128xbf16, #tpu.memory_space<vmem>>, vector<34x128xbf16>
    %c0_4 = arith.constant 0 : index
    %c0_5 = arith.constant 0 : index
    %5 = vector.load %arg4[%c0_4, %c0_5] : memref<128x32xbf16, #tpu.memory_space<vmem>>, vector<128x32xbf16>
    %cst = arith.constant dense<0.000000e+00> : vector<34x32xf32>
    %6 = tpu.matmul %4, %5, %cst {dimension_numbers = #tpu.dot_dimension_numbers<[1], [0], [0], [1], [0, 0, 1, 1], [], []>} : vector<34x128xbf16>, vector<128x32xbf16>, vector<34x32xf32> -> vector<34x32xf32>
    %7 = arith.addf %3, %6 : vector<34x32xf32>
    %c0_6 = arith.constant 0 : index
    %c0_7 = arith.constant 0 : index
    %8 = vector.load %arg8[%c0_6, %c0_7] : memref<34x32xf32, #tpu.memory_space<vmem>>, vector<34x32xf32>
    tpu.vector_store %arg8[%c0_6, %c0_7], %7 {strides = array<i32>} : memref<34x32xf32, #tpu.memory_space<vmem>>, vector<34x32xf32>,
    %c0_i32_8 = arith.constant 0 : i32
    %9 = arith.cmpi eq, %arg2, %c0_i32_8 : i32
    %10 = arith.extui %9 : i1 to i32
    %c0_i32_9 = arith.constant 0 : i32
    %11 = arith.cmpi ne, %10, %c0_i32_9 : i32
    scf.if %11 {
      %c0_10 = arith.constant 0 : index
      %c0_11 = arith.constant 0 : index
      %12 = vector.load %arg8[%c0_10, %c0_11] : memref<34x32xf32, #tpu.memory_space<vmem>>, vector<34x32xf32>
      %c0_12 = arith.constant 0 : index
      %c0_13 = arith.constant 0 : index
      %13 = vector.load %arg5[%c0_12, %c0_13] : memref<1x32xf32, #tpu.memory_space<vmem>>, vector<1x32xf32>
      %14 = vector.broadcast %13 : vector<1x32xf32> to vector<34x32xf32>
      %15 = arith.addf %12, %14 : vector<34x32xf32>
      %c0_14 = arith.constant 0 : index
      %c0_15 = arith.constant 0 : index
      %16 = vector.load %arg6[%c0_14, %c0_15] : memref<34x32xbf16, #tpu.memory_space<vmem>>, vector<34x32xbf16>
      %17 = arith.extf %16 : vector<34x32xbf16> to vector<34x32xf32>
      %18 = arith.addf %15, %17 : vector<34x32xf32>
      %19 = arith.truncf %18 : vector<34x32xf32> to vector<34x32xbf16>
      %c0_16 = arith.constant 0 : index
      %c0_17 = arith.constant 0 : index
      %20 = vector.load %arg7[%c0_16, %c0_17] : memref<34x32xbf16, #tpu.memory_space<vmem>>, vector<34x32xbf16>
      tpu.vector_store %arg7[%c0_16, %c0_17], %19 {strides = array<i32>} : memref<34x32xbf16, #tpu.memory_space<vmem>>, vector<34x32xbf16>,
    } else {
    }
    return
  }
  func.func @transform_0(%arg0: i32, %arg1: i32, %arg2: i32) -> (i32, i32) {
    %c0_i32 = arith.constant 0 : i32
    return %arg0, %arg2 : i32, i32
  }
  func.func @transform_1(%arg0: i32, %arg1: i32, %arg2: i32) -> (i32, i32) {
    %c0_i32 = arith.constant 0 : i32
    return %arg2, %arg1 : i32, i32
  }
  func.func @transform_2(%arg0: i32, %arg1: i32, %arg2: i32) -> (i32, i32) {
    %c0_i32 = arith.constant 0 : i32
    %c0_i32_0 = arith.constant 0 : i32
    return %c0_i32, %arg1 : i32, i32
  }
  func.func @transform_3(%arg0: i32, %arg1: i32, %arg2: i32) -> (i32, i32) {
    %c0_i32 = arith.constant 0 : i32
    return %arg0, %arg1 : i32, i32
  }
  func.func @transform_4(%arg0: i32, %arg1: i32, %arg2: i32) -> (i32, i32) {
    %c0_i32 = arith.constant 0 : i32
    return %arg0, %arg1 : i32, i32
  }
}

module attributes {stable_mosaic.version = 11 : i64} {
  func.func @_matmul_kernel(%arg0: i32, %arg1: i32, %arg2: i32, %arg3: memref<34x32xbf16, #tpu.memory_space<vmem>>, %arg4: memref<32x32xbf16, #tpu.memory_space<vmem>>, %arg5: memref<1x32xf32, #tpu.memory_space<vmem>>, %arg6: memref<34x32xbf16, #tpu.memory_space<vmem>>, %arg7: memref<34x32xbf16, #tpu.memory_space<vmem>>, %arg8: memref<34x32xf32, #tpu.memory_space<vmem>>) attributes {dimension_semantics = [#tpu.dimension_semantics<parallel>, #tpu.dimension_semantics<parallel>, #tpu.dimension_semantics<arbitrary>], iteration_bounds = array<i64: 1, 1, 1>, scalar_prefetch = 0 : i64, scratch_operands = 1 : i64, tpu.core_type = #tpu.core_type<tc>, window_params = [{transform_indices = @transform_0, window_bounds = array<i64: 34, 32>}, {transform_indices = @transform_1, window_bounds = array<i64: 32, 32>}, {transform_indices = @transform_2, window_bounds = array<i64: 1, 32>}, {transform_indices = @transform_3, window_bounds = array<i64: 34, 32>}, {transform_indices = @transform_4, window_bounds = array<i64: 34, 32>}]} {
    %c0_i32 = arith.constant 0 : i32
    %0 = arith.cmpi eq, %arg2, %c0_i32 : i32
    %1 = arith.extui %0 : i1 to i32
    %c0_i32_0 = arith.constant 0 : i32
    %2 = arith.cmpi ne, %1, %c0_i32_0 : i32
    scf.if %2 {
      %cst_10 = arith.constant 0.000000e+00 : f32
      %12 = vector.broadcast %cst_10 : f32 to vector<34x32xf32>
      %c0_11 = arith.constant 0 : index
      %c0_12 = arith.constant 0 : index
      %13 = vector.load %arg8[%c0_11, %c0_12] : memref<34x32xf32, #tpu.memory_space<vmem>>, vector<34x32xf32>
      tpu.vector_store %arg8[%c0_11, %c0_12], %12 {strides = array<i32>} : memref<34x32xf32, #tpu.memory_space<vmem>>, vector<34x32xf32>,
    } else {
    }
    %c0 = arith.constant 0 : index
    %c0_1 = arith.constant 0 : index
    %3 = vector.load %arg8[%c0, %c0_1] : memref<34x32xf32, #tpu.memory_space<vmem>>, vector<34x32xf32>
    %c0_2 = arith.constant 0 : index
    %c0_3 = arith.constant 0 : index
    %4 = vector.load %arg3[%c0_2, %c0_3] : memref<34x32xbf16, #tpu.memory_space<vmem>>, vector<34x32xbf16>
    %c0_4 = arith.constant 0 : index
    %c0_5 = arith.constant 0 : index
    %5 = vector.load %arg4[%c0_4, %c0_5] : memref<32x32xbf16, #tpu.memory_space<vmem>>, vector<32x32xbf16>
    %cst = arith.constant dense<0.000000e+00> : vector<34x32xf32>
    %6 = tpu.matmul %4, %5, %cst {dimension_numbers = #tpu.dot_dimension_numbers<[1], [0], [0], [1], [0, 0, 1, 1], [], []>} : vector<34x32xbf16>, vector<32x32xbf16>, vector<34x32xf32> -> vector<34x32xf32>
    %7 = arith.addf %3, %6 : vector<34x32xf32>
    %c0_6 = arith.constant 0 : index
    %c0_7 = arith.constant 0 : index
    %8 = vector.load %arg8[%c0_6, %c0_7] : memref<34x32xf32, #tpu.memory_space<vmem>>, vector<34x32xf32>
    tpu.vector_store %arg8[%c0_6, %c0_7], %7 {strides = array<i32>} : memref<34x32xf32, #tpu.memory_space<vmem>>, vector<34x32xf32>,
    %c0_i32_8 = arith.constant 0 : i32
    %9 = arith.cmpi eq, %arg2, %c0_i32_8 : i32
    %10 = arith.extui %9 : i1 to i32
    %c0_i32_9 = arith.constant 0 : i32
    %11 = arith.cmpi ne, %10, %c0_i32_9 : i32
    scf.if %11 {
      %c0_10 = arith.constant 0 : index
      %c0_11 = arith.constant 0 : index
      %12 = vector.load %arg8[%c0_10, %c0_11] : memref<34x32xf32, #tpu.memory_space<vmem>>, vector<34x32xf32>
      %c0_12 = arith.constant 0 : index
      %c0_13 = arith.constant 0 : index
      %13 = vector.load %arg5[%c0_12, %c0_13] : memref<1x32xf32, #tpu.memory_space<vmem>>, vector<1x32xf32>
      %14 = vector.broadcast %13 : vector<1x32xf32> to vector<34x32xf32>
      %15 = arith.addf %12, %14 : vector<34x32xf32>
      %c0_14 = arith.constant 0 : index
      %c0_15 = arith.constant 0 : index
      %16 = vector.load %arg6[%c0_14, %c0_15] : memref<34x32xbf16, #tpu.memory_space<vmem>>, vector<34x32xbf16>
      %17 = arith.extf %16 : vector<34x32xbf16> to vector<34x32xf32>
      %18 = arith.addf %15, %17 : vector<34x32xf32>
      %19 = arith.truncf %18 : vector<34x32xf32> to vector<34x32xbf16>
      %c0_16 = arith.constant 0 : index
      %c0_17 = arith.constant 0 : index
      %20 = vector.load %arg7[%c0_16, %c0_17] : memref<34x32xbf16, #tpu.memory_space<vmem>>, vector<34x32xbf16>
      tpu.vector_store %arg7[%c0_16, %c0_17], %19 {strides = array<i32>} : memref<34x32xbf16, #tpu.memory_space<vmem>>, vector<34x32xbf16>,
    } else {
    }
    return
  }
  func.func @transform_0(%arg0: i32, %arg1: i32, %arg2: i32) -> (i32, i32) {
    %c0_i32 = arith.constant 0 : i32
    return %arg0, %arg2 : i32, i32
  }
  func.func @transform_1(%arg0: i32, %arg1: i32, %arg2: i32) -> (i32, i32) {
    %c0_i32 = arith.constant 0 : i32
    return %arg2, %arg1 : i32, i32
  }
  func.func @transform_2(%arg0: i32, %arg1: i32, %arg2: i32) -> (i32, i32) {
    %c0_i32 = arith.constant 0 : i32
    %c0_i32_0 = arith.constant 0 : i32
    return %c0_i32, %arg1 : i32, i32
  }
  func.func @transform_3(%arg0: i32, %arg1: i32, %arg2: i32) -> (i32, i32) {
    %c0_i32 = arith.constant 0 : i32
    return %arg0, %arg1 : i32, i32
  }
  func.func @transform_4(%arg0: i32, %arg1: i32, %arg2: i32) -> (i32, i32) {
    %c0_i32 = arith.constant 0 : i32
    return %arg0, %arg1 : i32, i32
  }
}

module attributes {stable_mosaic.version = 11 : i64} {
  func.func @_ln_matmul_kernel(%arg0: i32, %arg1: i32, %arg2: memref<2x32xbf16, #tpu.memory_space<vmem>>, %arg3: memref<1x32xf32, #tpu.memory_space<vmem>>, %arg4: memref<1x32xf32, #tpu.memory_space<vmem>>, %arg5: memref<32x16xbf16, #tpu.memory_space<vmem>>, %arg6: memref<2x16xbf16, #tpu.memory_space<vmem>>, %arg7: memref<2x32xbf16, #tpu.memory_space<vmem>>) attributes {dimension_semantics = [#tpu.dimension_semantics<parallel>, #tpu.dimension_semantics<arbitrary>], iteration_bounds = array<i64: 1, 1>, scalar_prefetch = 0 : i64, scratch_operands = 1 : i64, tpu.core_type = #tpu.core_type<tc>, window_params = [{transform_indices = @transform_0, window_bounds = array<i64: 2, 32>}, {pipeline_mode = #tpu.pipeline_mode<synchronous>, transform_indices = @transform_1, window_bounds = array<i64: 1, 32>}, {pipeline_mode = #tpu.pipeline_mode<synchronous>, transform_indices = @transform_2, window_bounds = array<i64: 1, 32>}, {transform_indices = @transform_3, window_bounds = array<i64: 32, 16>}, {transform_indices = @transform_4, window_bounds = array<i64: 2, 16>}]} {
    %c0_i32 = arith.constant 0 : i32
    %0 = arith.cmpi eq, %arg1, %c0_i32 : i32
    %1 = arith.extui %0 : i1 to i32
    %c0_i32_0 = arith.constant 0 : i32
    %2 = arith.cmpi ne, %1, %c0_i32_0 : i32
    scf.if %2 {
      %c0_6 = arith.constant 0 : index
      %c0_7 = arith.constant 0 : index
      %8 = vector.load %arg2[%c0_6, %c0_7] : memref<2x32xbf16, #tpu.memory_space<vmem>>, vector<2x32xbf16>
      %9 = arith.extf %8 : vector<2x32xbf16> to vector<2x32xf32>
      %cst_8 = arith.constant dense<0.000000e+00> : vector<2xf32>
      %10 = vector.multi_reduction <add>, %9, %cst_8 [1] : vector<2x32xf32> to vector<2xf32>
      %11 = vector.shape_cast %10 : vector<2xf32> to vector<2x1xf32>
      %cst_9 = arith.constant 3.200000e+01 : f32
      %12 = vector.broadcast %cst_9 : f32 to vector<2x1xf32>
      %13 = arith.divf %11, %12 : vector<2x1xf32>
      %14 = vector.broadcast %13 : vector<2x1xf32> to vector<2x32xf32>
      %15 = arith.subf %9, %14 : vector<2x32xf32>
      %16 = arith.mulf %15, %15 : vector<2x32xf32>
      %cst_10 = arith.constant dense<0.000000e+00> : vector<2xf32>
      %17 = vector.multi_reduction <add>, %16, %cst_10 [1] : vector<2x32xf32> to vector<2xf32>
      %18 = vector.shape_cast %17 : vector<2xf32> to vector<2x1xf32>
      %cst_11 = arith.constant 3.200000e+01 : f32
      %19 = vector.broadcast %cst_11 : f32 to vector<2x1xf32>
      %20 = arith.divf %18, %19 : vector<2x1xf32>
      %21 = vector.broadcast %13 : vector<2x1xf32> to vector<2x32xf32>
      %22 = arith.subf %9, %21 : vector<2x32xf32>
      %cst_12 = arith.constant 9.99999974E-6 : f32
      %23 = vector.broadcast %cst_12 : f32 to vector<2x1xf32>
      %24 = arith.addf %20, %23 : vector<2x1xf32>
      %25 = math.rsqrt %24 : vector<2x1xf32>
      %26 = vector.broadcast %25 : vector<2x1xf32> to vector<2x32xf32>
      %27 = arith.mulf %22, %26 : vector<2x32xf32>
      %c0_13 = arith.constant 0 : index
      %c0_14 = arith.constant 0 : index
      %28 = vector.load %arg3[%c0_13, %c0_14] : memref<1x32xf32, #tpu.memory_space<vmem>>, vector<1x32xf32>
      %29 = vector.broadcast %28 : vector<1x32xf32> to vector<2x32xf32>
      %30 = arith.mulf %27, %29 : vector<2x32xf32>
      %c0_15 = arith.constant 0 : index
      %c0_16 = arith.constant 0 : index
      %31 = vector.load %arg4[%c0_15, %c0_16] : memref<1x32xf32, #tpu.memory_space<vmem>>, vector<1x32xf32>
      %32 = vector.broadcast %31 : vector<1x32xf32> to vector<2x32xf32>
      %33 = arith.addf %30, %32 : vector<2x32xf32>
      %34 = arith.truncf %33 : vector<2x32xf32> to vector<2x32xbf16>
      %c0_17 = arith.constant 0 : index
      %c0_18 = arith.constant 0 : index
      %35 = vector.load %arg7[%c0_17, %c0_18] : memref<2x32xbf16, #tpu.memory_space<vmem>>, vector<2x32xbf16>
      tpu.vector_store %arg7[%c0_17, %c0_18], %34 {strides = array<i32>} : memref<2x32xbf16, #tpu.memory_space<vmem>>, vector<2x32xbf16>,
    } else {
    }
    %c0 = arith.constant 0 : index
    %c0_1 = arith.constant 0 : index
    %3 = vector.load %arg7[%c0, %c0_1] : memref<2x32xbf16, #tpu.memory_space<vmem>>, vector<2x32xbf16>
    %c0_2 = arith.constant 0 : index
    %c0_3 = arith.constant 0 : index
    %4 = vector.load %arg5[%c0_2, %c0_3] : memref<32x16xbf16, #tpu.memory_space<vmem>>, vector<32x16xbf16>
    %cst = arith.constant dense<0.000000e+00> : vector<2x16xf32>
    %5 = tpu.matmul %3, %4, %cst {dimension_numbers = #tpu.dot_dimension_numbers<[1], [0], [0], [1], [0, 0, 1, 1], [], []>} : vector<2x32xbf16>, vector<32x16xbf16>, vector<2x16xf32> -> vector<2x16xf32>
    %6 = arith.truncf %5 : vector<2x16xf32> to vector<2x16xbf16>
    %c0_4 = arith.constant 0 : index
    %c0_5 = arith.constant 0 : index
    %7 = vector.load %arg6[%c0_4, %c0_5] : memref<2x16xbf16, #tpu.memory_space<vmem>>, vector<2x16xbf16>
    tpu.vector_store %arg6[%c0_4, %c0_5], %6 {strides = array<i32>} : memref<2x16xbf16, #tpu.memory_space<vmem>>, vector<2x16xbf16>,
    return
  }
  func.func @transform_0(%arg0: i32, %arg1: i32) -> (i32, i32) {
    %c0_i32 = arith.constant 0 : i32
    %c0_i32_0 = arith.constant 0 : i32
    return %arg0, %c0_i32 : i32, i32
  }
  func.func @transform_1(%arg0: i32, %arg1: i32) -> (i32, i32) {
    %c0_i32 = arith.constant 0 : i32
    %c0_i32_0 = arith.constant 0 : i32
    %c0_i32_1 = arith.constant 0 : i32
    return %c0_i32, %c0_i32_0 : i32, i32
  }
  func.func @transform_2(%arg0: i32, %arg1: i32) -> (i32, i32) {
    %c0_i32 = arith.constant 0 : i32
    %c0_i32_0 = arith.constant 0 : i32
    %c0_i32_1 = arith.constant 0 : i32
    return %c0_i32, %c0_i32_0 : i32, i32
  }
  func.func @transform_3(%arg0: i32, %arg1: i32) -> (i32, i32) {
    %c0_i32 = arith.constant 0 : i32
    %c0_i32_0 = arith.constant 0 : i32
    return %c0_i32, %arg1 : i32, i32
  }
  func.func @transform_4(%arg0: i32, %arg1: i32) -> (i32, i32) {
    %c0_i32 = arith.constant 0 : i32
    return %arg0, %arg1 : i32, i32
  }
}

</mosaic_0001>

<llo_original>
// kernel: vision_transformer_forward.13
$region0: #{vision_transformer_forward.13}
  #allocation0 [shape = 'u32[]', space=smem, size = 0x4, offset = 0x4, fixed_abs, tag = 'smem constant byte address 0x4 - core index']
  #allocation1 [shape = 'u32[144,128]{1,0:T(1,128)}', space=vmem, size = 0x12000, scoped, tag = 'internal scratch']
  #allocation2 [shape = 'f32[32,32]{1,0:T(8,128)}', space=vmem, size = 0x4000, scoped, tag = 'scratch operand']
  %s0 = inlined_call_operand.vmem [shape: bf16[32,48], index: 0, kind: input, shape index: {}]
  %s1 = inlined_call_operand.vmem [shape: bf16[48,32], index: 1, kind: input, shape index: {}]
  %s2 = inlined_call_operand.vmem [shape: bf16[32,32], index: 2, kind: output, shape index: {}]
  %s3 = sld [smem:[#allocation0]]
  $region26: #{vision_transformer_forward.13} parent=0
    _
  %s5 = ssub.s32 1, %s3
  %s6 = scalar_select 0, %s5, %s3
  // Predicated region
  $region2: #{vision_transformer_forward.13} parent=0 // pred_check
    _
  $region3: #{vision_transformer_forward.13} parent=0 // pred_check_branch
    %8 = sbr.rel (0) target = $region5
  $region4: #{vision_transformer_forward.13} parent=0 // pred_region
    _
  $region5: #{vision_transformer_forward.13} parent=0 // pred_fallthru
    _
  // Predicated region
  $region6: #{vision_transformer_forward.13} parent=0 // pred_check
    _
  $region7: #{vision_transformer_forward.13} parent=0 // pred_check_branch
    %10 = sbr.rel (0) target = $region9
  $region8: #{vision_transformer_forward.13} parent=0 // pred_region
    _
  $region9: #{vision_transformer_forward.13} parent=0 // pred_fallthru
    _
  %p12 = scmp.eq.s32.totalorder 0, 0
  // Predicated region
  $region10: #{vision_transformer_forward.13} parent=0 // pred_check
    %p13 = pneg %p12
  $region11: #{vision_transformer_forward.13} parent=0 // pred_check_branch
    %15 = sbr.rel (%p13) target = $region13
  $region12: #{vision_transformer_forward.13} parent=0 // pred_region
    %vm16 = vcmask 261120
    %17 = vst.msk [vmem:[#allocation2] sm:$0xff] %vm16, 0.0
    %18 = vst.msk [vmem:[#allocation2 + $0x8] sm:$0xff] %vm16, 0.0
    %19 = vst.msk [vmem:[#allocation2 + $0x10] sm:$0xff] %vm16, 0.0
    %20 = vst.msk [vmem:[#allocation2 + $0x18] sm:$0xff] %vm16, 0.0
  $region13: #{vision_transformer_forward.13} parent=0 // pred_fallthru
    _
  %v21 = vld [vmem:[#allocation2] sm:$0xff]
  %v22 = vld [vmem:[#allocation2 + $0x8] sm:$0xff]
  %v23 = vld [vmem:[#allocation2 + $0x10] sm:$0xff]
  %v24 = vld [vmem:[#allocation2 + $0x18] sm:$0xff]
  %v25 = vld [vmem:[%s0] sm:$0xf]
  %v26 = vld [vmem:[%s0 + $0x4] sm:$0xf]
  %v27 = vld [vmem:[%s0 + $0x8] sm:$0xf]
  %v28 = vld [vmem:[%s0 + $0xc] sm:$0xf]
  %v29 = vld [vmem:[%s1] sm:$0xf]
  %v30 = vld [vmem:[%s1 + $0x4] sm:$0xf]
  %v31 = vld [vmem:[%s1 + $0x8] sm:$0xf]
  %v32 = vld [vmem:[%s1 + $0xc] sm:$0xf]
  %v33 = vld [vmem:[%s1 + $0x10] sm:$0xf]
  %v34 = vld [vmem:[%s1 + $0x14] sm:$0xf]
  %v39 = vunpack.c.l.b16 %v25
  %v40 = vunpack.c.l.b16 %v26
  %v41 = vunpack.c.l.b16 %v27
  %v42 = vunpack.c.l.b16 %v28
  %v43 = vpack.c.b16 %v40, %v39
  %v44 = vpack.c.b16 %v42, %v41
  %v51 = vunpack.c.l.b16 %v29
  %v52 = vunpack.c.l.b16 %v30
  %v53 = vunpack.c.l.b16 %v31
  %v54 = vunpack.c.l.b16 %v32
  %v55 = vunpack.c.l.b16 %v33
  %v56 = vunpack.c.l.b16 %v34
  %v57 = vpack.c.b16 %v52, %v51
  %v58 = vpack.c.b16 %v54, %v53
  %v59 = vpack.c.b16 %v56, %v55
  %vm63 = vcmask 392192
  %v65 = vsel %vm63, %v43, 0
  %v68 = vsel %vm63, %v44, 0
  %70 = vmatprep.subr.bf16.mxu0 0
  %71 = vmatpush1.bf16.msra.mxu0 %v57
  %72 = vmatprep.subr.bf16.mxu0 0
  %73 = vmatpush1.bf16.msra.mxu0 %v58
  %74 = vmatprep.subr.bf16.mxu0 0
  %75 = vmatpush1.bf16.msra.mxu0 %v59
  %76 = vmatprep.subr.bf16.mxu0 0
  %77 = vmatpush1.bf16.msra.mxu0 0
  %78 = vmatprep.subr.bf16.mxu0 0
  %79 = vmatpush1.bf16.msra.mxu0 0
  %80 = vmatprep.subr.bf16.mxu0 0
  %81 = vmatpush1.bf16.msra.mxu0 0
  %82 = vmatprep.subr.bf16.mxu0 0
  %83 = vmatpush1.bf16.msra.mxu0 0
  %84 = vmatprep.subr.bf16.mxu0 0
  %85 = vmatpush1.bf16.msra.mxu0 0
  %86 = vmatprep.subr.bf16.mxu0 0
  %87 = vmatpush1.bf16.msra.mxu0 0
  %88 = vmatprep.subr.bf16.mxu0 0
  %89 = vmatpush1.bf16.msra.mxu0 0
  %90 = vmatprep.subr.bf16.mxu0 0
  %91 = vmatpush1.bf16.msra.mxu0 0
  %92 = vmatprep.subr.bf16.mxu0 0
  %93 = vmatpush1.bf16.msra.mxu0 0
  %94 = vmatprep.subr.bf16.mxu0 0
  %95 = vmatpush1.bf16.msra.mxu0 0
  %96 = vmatprep.subr.bf16.mxu0 0
  %97 = vmatpush1.bf16.msra.mxu0 0
  %98 = vmatprep.subr.bf16.mxu0 0
  %99 = vmatpush1.bf16.msra.mxu0 0
  %100 = vmatprep.subr.bf16.mxu0 0
  %101 = vmatpush1.bf16.msra.mxu0 0
  %102 = vmatprep.mubr.bf16.mxu0 0
  %103 = vmatmul.mubr.bf16.gmra.mrb[0].mxu0 %v65
  %v104 = vpop.f32.mrb[0].mxu0
  %v105 = vadd.f32 0.0, %v104
  %v106 = vpop.f32.mrb[0].mxu0
  %v107 = vpop.f32.mrb[0].mxu0
  %v108 = vadd.f32 0.0, %v107
  %v109 = vpop.f32.mrb[0].mxu0
  %110 = vmatprep.mubr.bf16.mxu0 0
  %111 = vmatmul.mubr.bf16.gmra.mrb[0].mxu0 %v68
  %v112 = vpop.f32.mrb[0].mxu0
  %v113 = vadd.f32 0.0, %v112
  %v114 = vpop.f32.mrb[0].mxu0
  %v115 = vpop.f32.mrb[0].mxu0
  %v116 = vadd.f32 0.0, %v115
  %v117 = vpop.f32.mrb[0].mxu0
  %118 = vdwg.mxu0
  %v119 = vadd.f32 %v21, %v105
  %v120 = vadd.f32 %v22, %v108
  %v121 = vadd.f32 %v23, %v113
  %v122 = vadd.f32 %v24, %v116
  %vm123 = vcmask 261120
  %124 = vst.msk [vmem:[#allocation2] sm:$0xff] %vm123, %v119
  %125 = vst.msk [vmem:[#allocation2 + $0x8] sm:$0xff] %vm123, %v120
  %126 = vst.msk [vmem:[#allocation2 + $0x10] sm:$0xff] %vm123, %v121
  %127 = vst.msk [vmem:[#allocation2 + $0x18] sm:$0xff] %vm123, %v122
  // Predicated region
  $region14: #{vision_transformer_forward.13} parent=0 // pred_check
    %p128 = pneg %p12
  $region15: #{vision_transformer_forward.13} parent=0 // pred_check_branch
    %130 = sbr.rel (%p128) target = $region17
  $region16: #{vision_transformer_forward.13} parent=0 // pred_region
    %v131 = vld [vmem:[#allocation2] sm:$0xff]
    %v132 = vld [vmem:[#allocation2 + $0x8] sm:$0xff]
    %v133 = vld [vmem:[#allocation2 + $0x10] sm:$0xff]
    %v134 = vld [vmem:[#allocation2 + $0x18] sm:$0xff]
    %v135 = vpack.c.bf16 %v132, %v131
    %v136 = vpack.c.bf16 %v134, %v133
    %v139 = vunpack.c.l.b16 %v135
    %v140 = vunpack.c.h.b16 %v135
    %v141 = vunpack.c.l.b16 %v136
    %v142 = vunpack.c.h.b16 %v136
    %v143 = vpack.c.b16 %v139, %v139
    %v144 = vpack.c.b16 %v140, %v140
    %v145 = vpack.c.b16 %v141, %v141
    %v146 = vpack.c.b16 %v142, %v142
    %vm151 = vcmask 257024
    %152 = vst.msk [vmem:[%s2] sm:$0xf] %vm151, %v143
    %153 = vst.msk [vmem:[%s2 + $0x4] sm:$0xf] %vm151, %v144
    %154 = vst.msk [vmem:[%s2 + $0x8] sm:$0xf] %vm151, %v145
    %155 = vst.msk [vmem:[%s2 + $0xc] sm:$0xf] %vm151, %v146
  $region17: #{vision_transformer_forward.13} parent=0 // pred_fallthru
    _
  // Predicated region
  $region18: #{vision_transformer_forward.13} parent=0 // pred_check
    _
  $region19: #{vision_transformer_forward.13} parent=0 // pred_check_branch
    %157 = sbr.rel (0) target = $region21
  $region20: #{vision_transformer_forward.13} parent=0 // pred_region
    _
  $region21: #{vision_transformer_forward.13} parent=0 // pred_fallthru
    _
  // Predicated region
  $region22: #{vision_transformer_forward.13} parent=0 // pred_check
    _
  $region23: #{vision_transformer_forward.13} parent=0 // pred_check_branch
    %159 = sbr.rel (0) target = $region25
  $region24: #{vision_transformer_forward.13} parent=0 // pred_region
    _
  $region25: #{vision_transformer_forward.13} parent=0 // pred_fallthru
    _

// kernel: vision_transformer_forward.14
$region0: #{vision_transformer_forward.14}
  #allocation0 [shape = 'u32[]', space=smem, size = 0x4, offset = 0x4, fixed_abs, tag = 'smem constant byte address 0x4 - core index']
  #allocation1 [shape = 'u32[144,128]{1,0:T(1,128)}', space=vmem, size = 0x12000, scoped, tag = 'internal scratch']
  %s0 = inlined_call_operand.vmem [shape: bf16[34,32], index: 0, kind: input, shape index: {}]
  %s1 = inlined_call_operand.vmem [shape: f32[1,32], index: 1, kind: input, shape index: {}]
  %s2 = inlined_call_operand.vmem [shape: f32[1,32], index: 2, kind: input, shape index: {}]
  %s3 = inlined_call_operand.vmem [shape: bf16[34,32], index: 3, kind: output, shape index: {}]
  %s4 = sld [smem:[#allocation0]]
  $region22: #{vision_transformer_forward.14} parent=0
    _
  %s6 = ssub.s32 1, %s4
  %s7 = scalar_select 0, %s6, %s4
  // Predicated region
  $region2: #{vision_transformer_forward.14} parent=0 // pred_check
    _
  $region3: #{vision_transformer_forward.14} parent=0 // pred_check_branch
    %9 = sbr.rel (0) target = $region5
  $region4: #{vision_transformer_forward.14} parent=0 // pred_region
    _
  $region5: #{vision_transformer_forward.14} parent=0 // pred_fallthru
    _
  // Predicated region
  $region6: #{vision_transformer_forward.14} parent=0 // pred_check
    _
  $region7: #{vision_transformer_forward.14} parent=0 // pred_check_branch
    %11 = sbr.rel (0) target = $region9
  $region8: #{vision_transformer_forward.14} parent=0 // pred_region
    _
  $region9: #{vision_transformer_forward.14} parent=0 // pred_fallthru
    _
  // Predicated region
  $region10: #{vision_transformer_forward.14} parent=0 // pred_check
    _
  $region11: #{vision_transformer_forward.14} parent=0 // pred_check_branch
    %13 = sbr.rel (0) target = $region13
  $region12: #{vision_transformer_forward.14} parent=0 // pred_region
    _
  $region13: #{vision_transformer_forward.14} parent=0 // pred_fallthru
    _
  %v14 = vld [vmem:[%s0] sm:$0xf]
  %v15 = vld [vmem:[%s0 + $0x4] sm:$0xf]
  %v16 = vld [vmem:[%s0 + $0x8] sm:$0xf]
  %v17 = vld [vmem:[%s0 + $0xc] sm:$0xf]
  %v18 = vld [vmem:[%s0 + $0x10] sm:$0x1]
  %v19 = vunpack.c.l.bf16 %v14
  %v20 = vunpack.c.l.bf16 %v15
  %v21 = vunpack.c.l.bf16 %v16
  %v22 = vunpack.c.l.bf16 %v17
  %v23 = vunpack.c.l.bf16 %v18
  %vm24 = vcmask 261120
  %v25 = vsel %vm24, %v19, 0.0
  %26 = vadd.xlane.f32.xlu0 %v25
  %v27 = vpop.xlane.xlu0 %26
  %v28 = vsel %vm24, %v20, 0.0
  %29 = vadd.xlane.f32.xlu0 %v28
  %v30 = vpop.xlane.xlu0 %29
  %v31 = vsel %vm24, %v21, 0.0
  %32 = vadd.xlane.f32.xlu0 %v31
  %v33 = vpop.xlane.xlu0 %32
  %v34 = vsel %vm24, %v22, 0.0
  %35 = vadd.xlane.f32.xlu0 %v34
  %v36 = vpop.xlane.xlu0 %35
  %vm37 = vcmask 254976
  %v38 = vsel %vm37, %v23, 0.0
  %39 = vadd.xlane.f32.xlu0 %v38
  %v40 = vpop.xlane.xlu0 %39
  %v41 = vrcp.pop 32.0
  %v42 = vmul.f32 %v27, %v41
  %v43 = vmul.f32 %v30, %v41
  %v44 = vmul.f32 %v33, %v41
  %v45 = vmul.f32 %v36, %v41
  %v46 = vmul.f32 %v40, %v41
  %v47 = vsub.f32 %v19, %v42
  %v48 = vsub.f32 %v20, %v43
  %v49 = vsub.f32 %v21, %v44
  %v50 = vsub.f32 %v22, %v45
  %v51 = vsub.f32 %v23, %v46
  %v52 = vmul.f32 %v47, %v47
  %v53 = vmul.f32 %v48, %v48
  %v54 = vmul.f32 %v49, %v49
  %v55 = vmul.f32 %v50, %v50
  %v56 = vmul.f32 %v51, %v51
  %v57 = vsel %vm24, %v52, 0.0
  %58 = vadd.xlane.f32.xlu0 %v57
  %v59 = vpop.xlane.xlu0 %58
  %v60 = vsel %vm24, %v53, 0.0
  %61 = vadd.xlane.f32.xlu0 %v60
  %v62 = vpop.xlane.xlu0 %61
  %v63 = vsel %vm24, %v54, 0.0
  %64 = vadd.xlane.f32.xlu0 %v63
  %v65 = vpop.xlane.xlu0 %64
  %v66 = vsel %vm24, %v55, 0.0
  %67 = vadd.xlane.f32.xlu0 %v66
  %v68 = vpop.xlane.xlu0 %67
  %v69 = vsel %vm37, %v56, 0.0
  %70 = vadd.xlane.f32.xlu0 %v69
  %v71 = vpop.xlane.xlu0 %70
  %v72 = vmul.f32 %v59, %v41
  %v73 = vmul.f32 %v62, %v41
  %v74 = vmul.f32 %v65, %v41
  %v75 = vmul.f32 %v68, %v41
  %v76 = vmul.f32 %v71, %v41
  %v77 = vadd.f32 %v72, 1e-05
  %v78 = vadd.f32 %v73, 1e-05
  %v79 = vadd.f32 %v74, 1e-05
  %v80 = vadd.f32 %v75, 1e-05
  %v81 = vadd.f32 %v76, 1e-05
  %v82 = vrsqrt.pop %v77
  %v83 = vrsqrt.pop %v78
  %v84 = vrsqrt.pop %v79
  %v85 = vrsqrt.pop %v80
  %v86 = vrsqrt.pop %v81
  %v87 = vmul.f32 %v47, %v82
  %v88 = vmul.f32 %v48, %v83
  %v89 = vmul.f32 %v49, %v84
  %v90 = vmul.f32 %v50, %v85
  %v91 = vmul.f32 %v51, %v86
  %v92 = vld [vmem:[%s1] sm:$0x1]
  %v94 = vlaneseq
  %v95 = vshrl.u32 %v94, 7
  %v96 = vsub.s32 0, %v95
  %v97 = vrot.slane %v92, %v96
  %v99 = vmul.f32 %v87, %v97
  %v100 = vmul.f32 %v88, %v97
  %v101 = vmul.f32 %v89, %v97
  %v102 = vmul.f32 %v90, %v97
  %v103 = vmul.f32 %v91, %v97
  %v104 = vld [vmem:[%s2] sm:$0x1]
  %v106 = vlaneseq
  %v107 = vshrl.u32 %v106, 7
  %v108 = vsub.s32 0, %v107
  %v109 = vrot.slane %v104, %v108
  %v111 = vadd.f32 %v99, %v109
  %v112 = vadd.f32 %v100, %v109
  %v113 = vadd.f32 %v101, %v109
  %v114 = vadd.f32 %v102, %v109
  %v115 = vadd.f32 %v103, %v109
  %v116 = vpack.c.bf16 %v112, %v111
  %v117 = vpack.c.bf16 %v114, %v113
  %v118 = vpack.c.bf16 %v115, %v115
  %v122 = vunpack.c.l.b16 %v116
  %v123 = vunpack.c.h.b16 %v116
  %v124 = vunpack.c.l.b16 %v117
  %v125 = vunpack.c.h.b16 %v117
  %v126 = vunpack.c.l.b16 %v118
  %v127 = vpack.c.b16 %v122, %v122
  %v128 = vpack.c.b16 %v123, %v123
  %v129 = vpack.c.b16 %v124, %v124
  %v130 = vpack.c.b16 %v125, %v125
  %v131 = vpack.c.b16 %v126, %v126
  %vm137 = vcmask 257024
  %138 = vst.msk [vmem:[%s3] sm:$0xf] %vm137, %v127
  %139 = vst.msk [vmem:[%s3 + $0x4] sm:$0xf] %vm137, %v128
  %140 = vst.msk [vmem:[%s3 + $0x8] sm:$0xf] %vm137, %v129
  %141 = vst.msk [vmem:[%s3 + $0xc] sm:$0xf] %vm137, %v130
  %vm142 = vcmask 253952
  %143 = vst.msk [vmem:[%s3 + $0x10] sm:$0x1] %vm142, %v131
  // Predicated region
  $region14: #{vision_transformer_forward.14} parent=0 // pred_check
    _
  $region15: #{vision_transformer_forward.14} parent=0 // pred_check_branch
    %145 = sbr.rel (0) target = $region17
  $region16: #{vision_transformer_forward.14} parent=0 // pred_region
    _
  $region17: #{vision_transformer_forward.14} parent=0 // pred_fallthru
    _
  // Predicated region
  $region18: #{vision_transformer_forward.14} parent=0 // pred_check
    _
  $region19: #{vision_transformer_forward.14} parent=0 // pred_check_branch
    %147 = sbr.rel (0) target = $region21
  $region20: #{vision_transformer_forward.14} parent=0 // pred_region
    _
  $region21: #{vision_transformer_forward.14} parent=0 // pred_fallthru
    _

// kernel: vision_transformer_forward.15
$region0: #{vision_transformer_forward.15}
  #allocation0 [shape = 'u32[]', space=smem, size = 0x4, offset = 0x4, fixed_abs, tag = 'smem constant byte address 0x4 - core index']
  #allocation1 [shape = 'u32[144,128]{1,0:T(1,128)}', space=vmem, size = 0x12000, scoped, tag = 'internal scratch']
  #allocation2 [shape = 'bf16[34,32]{1,0:T(8,128)(2,1)}', space=vmem, size = 0x2800, scoped, tag = 'scratch operand']
  %s0 = inlined_call_operand.vmem [shape: bf16[34,32], index: 0, kind: input, shape index: {}]
  %s1 = inlined_call_operand.vmem [shape: f32[1,32], index: 1, kind: input, shape index: {}]
  %s2 = inlined_call_operand.vmem [shape: f32[1,32], index: 2, kind: input, shape index: {}]
  %s3 = inlined_call_operand.vmem [shape: bf16[32,96], index: 3, kind: input, shape index: {}]
  %s4 = inlined_call_operand.vmem [shape: f32[1,96], index: 4, kind: input, shape index: {}]
  %s5 = inlined_call_operand.vmem [shape: bf16[34,96], index: 5, kind: output, shape index: {}]
  %s6 = sld [smem:[#allocation0]]
  $region34: #{vision_transformer_forward.15} parent=0
    _
  %s8 = ssub.s32 1, %s6
  %s9 = scalar_select 0, %s8, %s6
  // Predicated region
  $region2: #{vision_transformer_forward.15} parent=0 // pred_check
    _
  $region3: #{vision_transformer_forward.15} parent=0 // pred_check_branch
    %11 = sbr.rel (0) target = $region5
  $region4: #{vision_transformer_forward.15} parent=0 // pred_region
    _
  $region5: #{vision_transformer_forward.15} parent=0 // pred_fallthru
    _
  // Predicated region
  $region6: #{vision_transformer_forward.15} parent=0 // pred_check
    _
  $region7: #{vision_transformer_forward.15} parent=0 // pred_check_branch
    %13 = sbr.rel (0) target = $region9
  $region8: #{vision_transformer_forward.15} parent=0 // pred_region
    _
  $region9: #{vision_transformer_forward.15} parent=0 // pred_fallthru
    _
  // Predicated region
  $region10: #{vision_transformer_forward.15} parent=0 // pred_check
    _
  $region11: #{vision_transformer_forward.15} parent=0 // pred_check_branch
    %15 = sbr.rel (0) target = $region13
  $region12: #{vision_transformer_forward.15} parent=0 // pred_region
    _
  $region13: #{vision_transformer_forward.15} parent=0 // pred_fallthru
    _
  // Predicated region
  $region14: #{vision_transformer_forward.15} parent=0 // pred_check
    _
  $region15: #{vision_transformer_forward.15} parent=0 // pred_check_branch
    %17 = sbr.rel (0) target = $region17
  $region16: #{vision_transformer_forward.15} parent=0 // pred_region
    _
  $region17: #{vision_transformer_forward.15} parent=0 // pred_fallthru
    _
  // Predicated region
  $region18: #{vision_transformer_forward.15} parent=0 // pred_check
    _
  $region19: #{vision_transformer_forward.15} parent=0 // pred_check_branch
    %19 = sbr.rel (0) target = $region21
  $region20: #{vision_transformer_forward.15} parent=0 // pred_region
    _
  $region21: #{vision_transformer_forward.15} parent=0 // pred_fallthru
    _
  %p21 = scmp.eq.s32.totalorder 0, 0
  // Predicated region
  $region22: #{vision_transformer_forward.15} parent=0 // pred_check
    %p22 = pneg %p21
  $region23: #{vision_transformer_forward.15} parent=0 // pred_check_branch
    %24 = sbr.rel (%p22) target = $region25
  $region24: #{vision_transformer_forward.15} parent=0 // pred_region
    %v25 = vld [vmem:[%s0] sm:$0xf]
    %v26 = vld [vmem:[%s0 + $0x4] sm:$0xf]
    %v27 = vld [vmem:[%s0 + $0x8] sm:$0xf]
    %v28 = vld [vmem:[%s0 + $0xc] sm:$0xf]
    %v29 = vld [vmem:[%s0 + $0x10] sm:$0x1]
    %v30 = vunpack.c.l.bf16 %v25
    %v31 = vunpack.c.l.bf16 %v26
    %v32 = vunpack.c.l.bf16 %v27
    %v33 = vunpack.c.l.bf16 %v28
    %v34 = vunpack.c.l.bf16 %v29
    %vm35 = vcmask 261120
    %v36 = vsel %vm35, %v30, 0.0
    %37 = vadd.xlane.f32.xlu0 %v36
    %v38 = vpop.xlane.xlu0 %37
    %v39 = vsel %vm35, %v31, 0.0
    %40 = vadd.xlane.f32.xlu0 %v39
    %v41 = vpop.xlane.xlu0 %40
    %v42 = vsel %vm35, %v32, 0.0
    %43 = vadd.xlane.f32.xlu0 %v42
    %v44 = vpop.xlane.xlu0 %43
    %v45 = vsel %vm35, %v33, 0.0
    %46 = vadd.xlane.f32.xlu0 %v45
    %v47 = vpop.xlane.xlu0 %46
    %vm48 = vcmask 254976
    %v49 = vsel %vm48, %v34, 0.0
    %50 = vadd.xlane.f32.xlu0 %v49
    %v51 = vpop.xlane.xlu0 %50
    %v52 = vrcp.pop 32.0
    %v53 = vmul.f32 %v38, %v52
    %v54 = vmul.f32 %v41, %v52
    %v55 = vmul.f32 %v44, %v52
    %v56 = vmul.f32 %v47, %v52
    %v57 = vmul.f32 %v51, %v52
    %v58 = vsub.f32 %v30, %v53
    %v59 = vsub.f32 %v31, %v54
    %v60 = vsub.f32 %v32, %v55
    %v61 = vsub.f32 %v33, %v56
    %v62 = vsub.f32 %v34, %v57
    %v63 = vmul.f32 %v58, %v58
    %v64 = vmul.f32 %v59, %v59
    %v65 = vmul.f32 %v60, %v60
    %v66 = vmul.f32 %v61, %v61
    %v67 = vmul.f32 %v62, %v62
    %v68 = vsel %vm35, %v63, 0.0
    %69 = vadd.xlane.f32.xlu0 %v68
    %v70 = vpop.xlane.xlu0 %69
    %v71 = vsel %vm35, %v64, 0.0
    %72 = vadd.xlane.f32.xlu0 %v71
    %v73 = vpop.xlane.xlu0 %72
    %v74 = vsel %vm35, %v65, 0.0
    %75 = vadd.xlane.f32.xlu0 %v74
    %v76 = vpop.xlane.xlu0 %75
    %v77 = vsel %vm35, %v66, 0.0
    %78 = vadd.xlane.f32.xlu0 %v77
    %v79 = vpop.xlane.xlu0 %78
    %v80 = vsel %vm48, %v67, 0.0
    %81 = vadd.xlane.f32.xlu0 %v80
    %v82 = vpop.xlane.xlu0 %81
    %v83 = vmul.f32 %v70, %v52
    %v84 = vmul.f32 %v73, %v52
    %v85 = vmul.f32 %v76, %v52
    %v86 = vmul.f32 %v79, %v52
    %v87 = vmul.f32 %v82, %v52
    %v88 = vadd.f32 %v83, 1e-05
    %v89 = vadd.f32 %v84, 1e-05
    %v90 = vadd.f32 %v85, 1e-05
    %v91 = vadd.f32 %v86, 1e-05
    %v92 = vadd.f32 %v87, 1e-05
    %v93 = vrsqrt.pop %v88
    %v94 = vrsqrt.pop %v89
    %v95 = vrsqrt.pop %v90
    %v96 = vrsqrt.pop %v91
    %v97 = vrsqrt.pop %v92
    %v98 = vmul.f32 %v58, %v93
    %v99 = vmul.f32 %v59, %v94
    %v100 = vmul.f32 %v60, %v95
    %v101 = vmul.f32 %v61, %v96
    %v102 = vmul.f32 %v62, %v97
    %v103 = vld [vmem:[%s1] sm:$0x1]
    %v105 = vlaneseq
    %v106 = vshrl.u32 %v105, 7
    %v107 = vsub.s32 0, %v106
    %v108 = vrot.slane %v103, %v107
    %v110 = vmul.f32 %v98, %v108
    %v111 = vmul.f32 %v99, %v108
    %v112 = vmul.f32 %v100, %v108
    %v113 = vmul.f32 %v101, %v108
    %v114 = vmul.f32 %v102, %v108
    %v115 = vld [vmem:[%s2] sm:$0x1]
    %v117 = vlaneseq
    %v118 = vshrl.u32 %v117, 7
    %v119 = vsub.s32 0, %v118
    %v120 = vrot.slane %v115, %v119
    %v122 = vadd.f32 %v110, %v120
    %v123 = vadd.f32 %v111, %v120
    %v124 = vadd.f32 %v112, %v120
    %v125 = vadd.f32 %v113, %v120
    %v126 = vadd.f32 %v114, %v120
    %v127 = vpack.c.bf16 %v123, %v122
    %v128 = vpack.c.bf16 %v125, %v124
    %v129 = vpack.c.bf16 %v126, %v126
    %v133 = vunpack.c.l.b16 %v127
    %v134 = vunpack.c.h.b16 %v127
    %v135 = vunpack.c.l.b16 %v128
    %v136 = vunpack.c.h.b16 %v128
    %v137 = vunpack.c.l.b16 %v129
    %v138 = vpack.c.b16 %v133, %v133
    %v139 = vpack.c.b16 %v134, %v134
    %v140 = vpack.c.b16 %v135, %v135
    %v141 = vpack.c.b16 %v136, %v136
    %v142 = vpack.c.b16 %v137, %v137
    %vm148 = vcmask 257024
    %149 = vst.msk [vmem:[#allocation2] sm:$0xf] %vm148, %v138
    %150 = vst.msk [vmem:[#allocation2 + $0x4] sm:$0xf] %vm148, %v139
    %151 = vst.msk [vmem:[#allocation2 + $0x8] sm:$0xf] %vm148, %v140
    %152 = vst.msk [vmem:[#allocation2 + $0xc] sm:$0xf] %vm148, %v141
    %vm153 = vcmask 253952
    %154 = vst.msk [vmem:[#allocation2 + $0x10] sm:$0x1] %vm153, %v142
  $region25: #{vision_transformer_forward.15} parent=0 // pred_fallthru
    _
  %v155 = vld [vmem:[#allocation2] sm:$0xf]
  %v156 = vld [vmem:[#allocation2 + $0x4] sm:$0xf]
  %v157 = vld [vmem:[#allocation2 + $0x8] sm:$0xf]
  %v158 = vld [vmem:[#allocation2 + $0xc] sm:$0xf]
  %v159 = vld [vmem:[#allocation2 + $0x10] sm:$0x1]
  %v160 = vld [vmem:[%s3] sm:$0xf]
  %v161 = vld [vmem:[%s3 + $0x4] sm:$0xf]
  %v162 = vld [vmem:[%s3 + $0x8] sm:$0xf]
  %v163 = vld [vmem:[%s3 + $0xc] sm:$0xf]
  %v164 = vld [vmem:[%s4] sm:$0x1]
  %v166 = vlaneseq
  %v167 = vshrl.u32 %v166, 7
  %v168 = vsub.s32 0, %v167
  %v169 = vrot.slane %v164, %v168
  %v176 = vunpack.c.l.b16 %v155
  %v177 = vunpack.c.l.b16 %v156
  %v178 = vunpack.c.l.b16 %v157
  %v179 = vunpack.c.l.b16 %v158
  %v180 = vunpack.c.l.b16 %v159
  %v181 = vpack.c.b16 %v177, %v176
  %v182 = vpack.c.b16 %v179, %v178
  %v183 = vpack.c.b16 %v180, %v180
  %v188 = vunpack.c.l.b16 %v160
  %v189 = vunpack.c.l.b16 %v161
  %v190 = vunpack.c.l.b16 %v162
  %v191 = vunpack.c.l.b16 %v163
  %v192 = vpack.c.b16 %v189, %v188
  %v193 = vpack.c.b16 %v191, %v190
  %vm196 = vcmask 261120
  %v198 = vsel %vm196, %v181, 0
  %v201 = vsel %vm196, %v182, 0
  %v204 = vsel %vm196, %v183, 0
  %206 = vmatprep.subr.bf16.mxu0 0
  %207 = vmatpush1.bf16.msra.mxu0 %v192
  %208 = vmatprep.subr.bf16.mxu0 0
  %209 = vmatpush1.bf16.msra.mxu0 %v193
  %210 = vmatprep.subr.bf16.mxu0 0
  %211 = vmatpush1.bf16.msra.mxu0 0
  %212 = vmatprep.subr.bf16.mxu0 0
  %213 = vmatpush1.bf16.msra.mxu0 0
  %214 = vmatprep.subr.bf16.mxu0 0
  %215 = vmatpush1.bf16.msra.mxu0 0
  %216 = vmatprep.subr.bf16.mxu0 0
  %217 = vmatpush1.bf16.msra.mxu0 0
  %218 = vmatprep.subr.bf16.mxu0 0
  %219 = vmatpush1.bf16.msra.mxu0 0
  %220 = vmatprep.subr.bf16.mxu0 0
  %221 = vmatpush1.bf16.msra.mxu0 0
  %222 = vmatprep.subr.bf16.mxu0 0
  %223 = vmatpush1.bf16.msra.mxu0 0
  %224 = vmatprep.subr.bf16.mxu0 0
  %225 = vmatpush1.bf16.msra.mxu0 0
  %226 = vmatprep.subr.bf16.mxu0 0
  %227 = vmatpush1.bf16.msra.mxu0 0
  %228 = vmatprep.subr.bf16.mxu0 0
  %229 = vmatpush1.bf16.msra.mxu0 0
  %230 = vmatprep.subr.bf16.mxu0 0
  %231 = vmatpush1.bf16.msra.mxu0 0
  %232 = vmatprep.subr.bf16.mxu0 0
  %233 = vmatpush1.bf16.msra.mxu0 0
  %234 = vmatprep.subr.bf16.mxu0 0
  %235 = vmatpush1.bf16.msra.mxu0 0
  %236 = vmatprep.subr.bf16.mxu0 0
  %237 = vmatpush1.bf16.msra.mxu0 0
  %238 = vmatprep.mubr.bf16.mxu0 0
  %239 = vmatmul.mubr.bf16.gmra.mrb[0].mxu0 %v198
  %v240 = vpop.f32.mrb[0].mxu0
  %v241 = vadd.f32 %v169, %v240
  %v242 = vpop.f32.mrb[0].mxu0
  %v243 = vpop.f32.mrb[0].mxu0
  %v244 = vadd.f32 %v169, %v243
  %v245 = vpop.f32.mrb[0].mxu0
  %246 = vmatprep.mubr.bf16.mxu0 0
  %247 = vmatmul.mubr.bf16.gmra.mrb[0].mxu0 %v201
  %v248 = vpop.f32.mrb[0].mxu0
  %v249 = vadd.f32 %v169, %v248
  %v250 = vpop.f32.mrb[0].mxu0
  %v251 = vpop.f32.mrb[0].mxu0
  %v252 = vadd.f32 %v169, %v251
  %v253 = vpop.f32.mrb[0].mxu0
  %254 = vmatprep.mubr.bf16.mxu0 0
  %255 = vmatmul.mubr.bf16.gmra.mrb[0].mxu0 %v204
  %v256 = vpop.f32.mrb[0].mxu0
  %v257 = vadd.f32 %v169, %v256
  %v258 = vpop.f32.mrb[0].mxu0
  %v259 = vpop.f32.mrb[0].mxu0
  %v260 = vpop.f32.mrb[0].mxu0
  %261 = vdwg.mxu0
  %v262 = vpack.c.bf16 %v244, %v241
  %v263 = vpack.c.bf16 %v252, %v249
  %v264 = vpack.c.bf16 %v257, %v257
  %v268 = vunpack.c.l.b16 %v262
  %v269 = vunpack.c.h.b16 %v262
  %v270 = vunpack.c.l.b16 %v263
  %v271 = vunpack.c.h.b16 %v263
  %v272 = vunpack.c.l.b16 %v264
  %v273 = vpack.c.b16 %v268, %v268
  %v274 = vpack.c.b16 %v269, %v269
  %v275 = vpack.c.b16 %v270, %v270
  %v276 = vpack.c.b16 %v271, %v271
  %v277 = vpack.c.b16 %v272, %v272
  %vm283 = vcmask 781312
  %284 = vst.msk [vmem:[%s5] sm:$0xf] %vm283, %v273
  %285 = vst.msk [vmem:[%s5 + $0x4] sm:$0xf] %vm283, %v274
  %286 = vst.msk [vmem:[%s5 + $0x8] sm:$0xf] %vm283, %v275
  %287 = vst.msk [vmem:[%s5 + $0xc] sm:$0xf] %vm283, %v276
  %vm288 = vcmask 778240
  %289 = vst.msk [vmem:[%s5 + $0x10] sm:$0x1] %vm288, %v277
  // Predicated region
  $region26: #{vision_transformer_forward.15} parent=0 // pred_check
    _
  $region27: #{vision_transformer_forward.15} parent=0 // pred_check_branch
    %291 = sbr.rel (0) target = $region29
  $region28: #{vision_transformer_forward.15} parent=0 // pred_region
    _
  $region29: #{vision_transformer_forward.15} parent=0 // pred_fallthru
    _
  // Predicated region
  $region30: #{vision_transformer_forward.15} parent=0 // pred_check
    _
  $region31: #{vision_transformer_forward.15} parent=0 // pred_check_branch
    %293 = sbr.rel (0) target = $region33
  $region32: #{vision_transformer_forward.15} parent=0 // pred_region
    _
  $region33: #{vision_transformer_forward.15} parent=0 // pred_fallthru
    _

// kernel: vision_transformer_forward.16
$region0: #{vision_transformer_forward.16}
  #allocation0 [shape = 'u32[]', space=smem, size = 0x4, offset = 0x4, fixed_abs, tag = 'smem constant byte address 0x4 - core index']
  #allocation1 [shape = 'u32[144,128]{1,0:T(1,128)}', space=vmem, size = 0x12000, scoped, tag = 'internal scratch']
  %s0 = inlined_call_operand.vmem [shape: bf16[2,17,96], index: 0, kind: input, shape index: {}]
  %s1 = inlined_call_operand.vmem [shape: bf16[2,17,32], index: 1, kind: output, shape index: {}]
  %s2 = sld [smem:[#allocation0]]
  $region37: #{vision_transformer_forward.16} parent=0
    _
  %s4 = ssub.s32 1, %s2
  %s5 = scalar_select 0, %s4, %s2
  loop: start=0, step=1, limit=4
  $region2: #{vision_transformer_forward.16} parent=0 // loop_pre_header
    _
  $region3: #{vision_transformer_forward.16} parent=0 // loop_header
    %s7 = sphi 0, %s11
    %p8 = scmp.ge.s32.totalorder %s7, 4
    %s14 = sphi 0, %s26
    %s15 = sphi 0, %s22
    %s16 = sphi 0, %s14
    %s17 = sphi 0, %s15
    %s18 = sphi 0, %s16
    %s19 = sphi 0, %s17
    %s29 = sphi 0, %s31
    %s32 = sphi 0, %s29
    %s33 = sphi 0, %s32
    %s49 = sphi 0, %s33
    %s57 = sphi 0, %s59
    %s60 = sphi 0, %s57
    %s61 = sphi 0, %s60
    %s77 = sphi 0, %s61
  $region4: #{vision_transformer_forward.16} parent=0 // loop_header_branch
    %10 = sbr.rel (%p8) target = $region8
  $region5: #{vision_transformer_forward.16} parent=0 // loop_body
    %s12 = ssub.s32 %s7, 1
    %s13 = ssub.s32 %s7, 2
    %s20 = sadd.s32 1, %s15
    %p21 = scmp.ge.s32.totalorder %s20, 1
    %s22 = scalar_select %p21, 0, %s20
    %s23 = sadd.s32 1, %s14
    %s24 = scalar_select %p21, %s23, %s14
    %p25 = scmp.ge.s32.totalorder %s24, 2
    %s26 = scalar_select %p25, 0, %s24
    %s27 = ssub.s32 %s14, %s26
    %p28 = scmp.eq.s32.totalorder %s27, 0
    %s30 = sadd.s32 %s29, 1
    %s31 = scalar_select %p28, %s29, %s30
    %p34 = pneg %p28
    %p35 = scmp.eq.s32.totalorder %s7, 1
    %p36 = por %p34, %p35
    %p37 = scmp.ne.s32.totalorder %s29, %s32
    %p38 = scmp.eq.s32.totalorder %s7, 0
    %p39 = por %p37, %p38
    %p40 = scmp.ne.s32.totalorder %s29, %s32
    %p41 = scmp.eq.s32.totalorder %s12, 1
    %p42 = por %p40, %p41
    %p43 = scmp.ne.s32.totalorder %s32, %s33
    %p44 = scmp.eq.s32.totalorder %s12, 0
    %p45 = por %p43, %p44
    %p46 = scmp.ne.s32.totalorder %s32, %s33
    %p47 = scmp.eq.s32.totalorder %s13, 1
    %p48 = por %p46, %p47
    %p50 = scmp.ne.s32.totalorder %s33, %s49
    %p51 = scmp.eq.s32.totalorder %s13, 0
    %p52 = por %p50, %p51
    %s53 = ssub.s32 %s14, %s26
    %s54 = ssub.s32 %s15, %s22
    %s55 = sor.u32 %s53, %s54
    %p56 = scmp.eq.s32.totalorder %s55, 0
    %s58 = sadd.s32 %s57, 1
    %s59 = scalar_select %p56, %s57, %s58
    %p62 = pneg %p56
    %p63 = scmp.eq.s32.totalorder %s7, 1
    %p64 = por %p62, %p63
    %p65 = scmp.ne.s32.totalorder %s57, %s60
    %p66 = scmp.eq.s32.totalorder %s7, 0
    %p67 = por %p65, %p66
    %p68 = scmp.ne.s32.totalorder %s57, %s60
    %p69 = scmp.eq.s32.totalorder %s12, 1
    %p70 = por %p68, %p69
    %p71 = scmp.ne.s32.totalorder %s60, %s61
    %p72 = scmp.eq.s32.totalorder %s12, 0
    %p73 = por %p71, %p72
    %p74 = scmp.ne.s32.totalorder %s60, %s61
    %p75 = scmp.eq.s32.totalorder %s13, 1
    %p76 = por %p74, %p75
    %p78 = scmp.ne.s32.totalorder %s61, %s77
    %p79 = scmp.eq.s32.totalorder %s13, 0
    %p80 = por %p78, %p79
    %p81 = scmp.le.s32.totalorder 1, %s7
    %p82 = scmp.lt.s32.totalorder %s7, 3
    %p83 = pnand %p81, %p82
    %p84 = pneg %p83
    // Predicated region
    $region9: #{vision_transformer_forward.16} parent=5 // pred_check
      _
    $region10: #{vision_transformer_forward.16} parent=5 // pred_check_branch
      %86 = sbr.rel (%p83) target = $region12
    $region11: #{vision_transformer_forward.16} parent=5 // pred_region
      %s87 = ssub.s32 %s7, 1
    $region12: #{vision_transformer_forward.16} parent=5 // pred_fallthru
      _
    %p88 = scmp.lt.s32.totalorder %s7, 2
    // Predicated region
    $region13: #{vision_transformer_forward.16} parent=5 // pred_check
      %p89 = pneg %p88
    $region14: #{vision_transformer_forward.16} parent=5 // pred_check_branch
      %91 = sbr.rel (%p89) target = $region16
    $region15: #{vision_transformer_forward.16} parent=5 // pred_region
      // Predicated region
      $region17: #{vision_transformer_forward.16} parent=15 // pred_check
        %p92 = pneg %p39
      $region18: #{vision_transformer_forward.16} parent=15 // pred_check_branch
        %94 = sbr.rel (%p92) target = $region20
      $region19: #{vision_transformer_forward.16} parent=15 // pred_region
        %p95 = scmp.lt.s32.totalorder %s14, 1
        %s96 = scalar_select %p95, %s14, 1
        %s97 = smul.addr %s96, 3
        %s98 = smul.addr %s97, 4
        %s99 = scalar_lea.vmem %s0, %s98
      $region20: #{vision_transformer_forward.16} parent=15 // pred_fallthru
        _
    $region16: #{vision_transformer_forward.16} parent=5 // pred_fallthru
      _
    %p100 = scmp.le.s32.totalorder 1, %s7
    %p101 = scmp.lt.s32.totalorder %s7, 3
    %p102 = pnand %p100, %p101
    %p103 = pneg %p102
    // Predicated region
    $region21: #{vision_transformer_forward.16} parent=5 // pred_check
      _
    $region22: #{vision_transformer_forward.16} parent=5 // pred_check_branch
      %105 = sbr.rel (%p102) target = $region24
    $region23: #{vision_transformer_forward.16} parent=5 // pred_region
      %s106 = ssub.s32 %s7, 1
      %p107 = scmp.lt.s32.totalorder %s16, 1
      %s108 = scalar_select %p107, %s16, 1
      %s109 = smul.addr %s108, 3
      %s110 = smul.addr %s109, 4
      %s111 = scalar_lea.vmem %s0, %s110
      %p112 = pneg %p45
      %p113 = pneg %p42
      %p114 = pneg %p73
      %p115 = pneg %p70
      %s116 = smul.u32 3, %s17
      %p117 = scmp.lt.s32.totalorder %s16, 1
      %s118 = scalar_select %p117, %s16, 1
      %p119 = scmp.lt.s32.totalorder %s116, 2
      %s120 = scalar_select %p119, %s116, 2
      %s121 = smul.addr %s118, 3
      %s122 = sadd.s32 %s120, %s121
      %s123 = smul.addr %s122, 4
      %s124 = scalar_lea.vmem %s1, %s123
      %p125 = scmp.lt.s32.totalorder %s16, 1
      %s126 = scalar_select %p125, %s16, 1
      %s127 = smul.addr %s126, 3
      %s128 = smul.addr %s127, 4
      %s129 = scalar_lea.vmem %s0, %s128
      %s130 = smul.u32 3, %s17
      %p131 = scmp.lt.s32.totalorder %s16, 1
      %s132 = scalar_select %p131, %s16, 1
      %p133 = scmp.lt.s32.totalorder %s130, 2
      %s134 = scalar_select %p133, %s130, 2
      %s135 = smul.addr %s132, 3
      %s136 = sadd.s32 %s134, %s135
      %s137 = smul.addr %s136, 4
      %s138 = scalar_lea.vmem %s1, %s137
      %s139 = smul.u32 3, %s17
      %v141 = vld [vmem:[%s129] sm:$0xf]
      %v142 = vld [vmem:[%s129 + $0x4] sm:$0xf]
      %v143 = vld [vmem:[%s129 + $0x8] sm:$0x1]
      %v147 = vunpack.c.l.b16 %v141
      %v148 = vunpack.c.l.b16 %v142
      %v149 = vunpack.c.l.b16 %v143
      %v150 = vpack.c.b16 %v148, %v147
      %v151 = vpack.c.b16 %v149, %v149
      %152 = vrot.lane.b32.xlu0 %v150, 96
      %v153 = vpop.permute.xlu0 %152
      %154 = vrot.lane.b32.xlu0 %v151, 96
      %v155 = vpop.permute.xlu0 %154
      %vm156 = vcmask 64512
      %v158 = vsel %vm156, %v150, 0
      %v161 = vsel %vm156, %v151, 0
      %v164 = vsel %vm156, %v153, 0
      %v167 = vsel %vm156, %v155, 0
      %169 = vmatprep.subr.bf16.mxu0 0
      %170 = vmatpush1.bf16.xpose.msra.mxu0 %v164
      %171 = vmatprep.subr.bf16.mxu0 0
      %172 = vmatpush1.bf16.xpose.msra.mxu0 %v167
      %173 = vmatprep.subr.bf16.mxu0 0
      %174 = vmatpush1.bf16.xpose.msra.mxu0 0
      %175 = vmatprep.subr.bf16.mxu0 0
      %176 = vmatpush1.bf16.xpose.msra.mxu0 0
      %177 = vmatprep.subr.bf16.mxu0 0
      %178 = vmatpush1.bf16.xpose.msra.mxu0 0
      %179 = vmatprep.subr.bf16.mxu0 0
      %180 = vmatpush1.bf16.xpose.msra.mxu0 0
      %181 = vmatprep.subr.bf16.mxu0 0
      %182 = vmatpush1.bf16.xpose.msra.mxu0 0
      %183 = vmatprep.subr.bf16.mxu0 0
      %184 = vmatpush1.bf16.xpose.msra.mxu0 0
      %185 = vmatprep.subr.bf16.mxu0 0
      %186 = vmatpush1.bf16.xpose.msra.mxu0 0
      %187 = vmatprep.subr.bf16.mxu0 0
      %188 = vmatpush1.bf16.xpose.msra.mxu0 0
      %189 = vmatprep.subr.bf16.mxu0 0
      %190 = vmatpush1.bf16.xpose.msra.mxu0 0
      %191 = vmatprep.subr.bf16.mxu0 0
      %192 = vmatpush1.bf16.xpose.msra.mxu0 0
      %193 = vmatprep.subr.bf16.mxu0 0
      %194 = vmatpush1.bf16.xpose.msra.mxu0 0
      %195 = vmatprep.subr.bf16.mxu0 0
      %196 = vmatpush1.bf16.xpose.msra.mxu0 0
      %197 = vmatprep.subr.bf16.mxu0 0
      %198 = vmatpush1.bf16.xpose.msra.mxu0 0
      %199 = vmatprep.subr.bf16.mxu0 0
      %200 = vmatpush1.bf16.xpose.msra.mxu0 0
      %201 = vmatprep.mubr.bf16.mxu0 0
      %202 = vmatmul.mubr.bf16.gmra.mrb[0].mxu0 %v158
      %v203 = vpop.f32.mrb[0].mxu0
      %v204 = vadd.f32 0.0, %v203
      %v205 = vpop.f32.mrb[0].mxu0
      %v206 = vpop.f32.mrb[0].mxu0
      %v207 = vadd.f32 0.0, %v206
      %v208 = vpop.f32.mrb[0].mxu0
      %209 = vmatprep.mubr.bf16.mxu0 0
      %210 = vmatmul.mubr.bf16.gmra.mrb[0].mxu0 %v161
      %v211 = vpop.f32.mrb[0].mxu0
      %v212 = vadd.f32 0.0, %v211
      %v213 = vpop.f32.mrb[0].mxu0
      %v214 = vpop.f32.mrb[0].mxu0
      %v215 = vpop.f32.mrb[0].mxu0
      %216 = vdwg.mxu0
      %vm217 = vcmask 138240
      %v218 = vsel %vm217, %v204, -inf
      %219 = vmax.xlane.f32.xlu0 %v218
      %v220 = vpop.xlane.xlu0 %219
      %v221 = vsel %vm217, %v207, -inf
      %222 = vmax.xlane.f32.xlu0 %v221
      %v223 = vpop.xlane.xlu0 %222
      %vm224 = vcmask 131072
      %v225 = vsel %vm224, %v212, -inf
      %226 = vmax.xlane.f32.xlu0 %v225
      %v227 = vpop.xlane.xlu0 %226
      %v228 = vsub.f32 %v204, %v220
      %v229 = vsub.f32 %v207, %v223
      %v230 = vsub.f32 %v212, %v227
      %v231 = vmul.f32 %v228, 1.442695
      %v232 = vpow.pop %v231
      %v233 = vmul.f32 %v229, 1.442695
      %v234 = vpow.pop %v233
      %v235 = vmul.f32 %v230, 1.442695
      %v236 = vpow.pop %v235
      %v237 = vsel %vm217, %v232, 0.0
      %238 = vadd.xlane.f32.xlu0 %v237
      %v239 = vpop.xlane.xlu0 %238
      %v240 = vsel %vm217, %v234, 0.0
      %241 = vadd.xlane.f32.xlu0 %v240
      %v242 = vpop.xlane.xlu0 %241
      %v243 = vsel %vm224, %v236, 0.0
      %244 = vadd.xlane.f32.xlu0 %v243
      %v245 = vpop.xlane.xlu0 %244
      %v246 = vpack.c.bf16 %v234, %v232
      %v247 = vpack.c.bf16 %v236, %v236
      %248 = vrot.lane.b32.xlu0 %v150, 64
      %v249 = vpop.permute.xlu0 %248
      %250 = vrot.lane.b32.xlu0 %v151, 64
      %v251 = vpop.permute.xlu0 %250
      %v254 = vsel %vm217, %v246, 0
      %v257 = vsel %vm217, %v247, 0
      %vm259 = vcmask 1040384
      %v260 = vsel 0, 4294967295, 65535
      %v261 = vsel %vm259, %v260, 0
      %v263 = vand.u32 %v251, %v261
      %265 = vmatprep.subr.bf16.mxu0 0
      %266 = vmatpush1.bf16.msra.mxu0 %v249
      %267 = vmatprep.subr.bf16.mxu0 0
      %268 = vmatpush1.bf16.msra.mxu0 %v263
      %269 = vmatprep.subr.bf16.mxu0 0
      %270 = vmatpush1.bf16.msra.mxu0 0
      %271 = vmatprep.subr.bf16.mxu0 0
      %272 = vmatpush1.bf16.msra.mxu0 0
      %273 = vmatprep.subr.bf16.mxu0 0
      %274 = vmatpush1.bf16.msra.mxu0 0
      %275 = vmatprep.subr.bf16.mxu0 0
      %276 = vmatpush1.bf16.msra.mxu0 0
      %277 = vmatprep.subr.bf16.mxu0 0
      %278 = vmatpush1.bf16.msra.mxu0 0
      %279 = vmatprep.subr.bf16.mxu0 0
      %280 = vmatpush1.bf16.msra.mxu0 0
      %281 = vmatprep.subr.bf16.mxu0 0
      %282 = vmatpush1.bf16.msra.mxu0 0
      %283 = vmatprep.subr.bf16.mxu0 0
      %284 = vmatpush1.bf16.msra.mxu0 0
      %285 = vmatprep.subr.bf16.mxu0 0
      %286 = vmatpush1.bf16.msra.mxu0 0
      %287 = vmatprep.subr.bf16.mxu0 0
      %288 = vmatpush1.bf16.msra.mxu0 0
      %289 = vmatprep.subr.bf16.mxu0 0
      %290 = vmatpush1.bf16.msra.mxu0 0
      %291 = vmatprep.subr.bf16.mxu0 0
      %292 = vmatpush1.bf16.msra.mxu0 0
      %293 = vmatprep.subr.bf16.mxu0 0
      %294 = vmatpush1.bf16.msra.mxu0 0
      %295 = vmatprep.subr.bf16.mxu0 0
      %296 = vmatpush1.bf16.msra.mxu0 0
      %297 = vmatprep.mubr.bf16.mxu0 0
      %298 = vmatmul.mubr.bf16.gmra.mrb[0].mxu0 %v254
      %v299 = vpop.f32.mrb[0].mxu0
      %v300 = vadd.f32 0.0, %v299
      %v301 = vpop.f32.mrb[0].mxu0
      %v302 = vpop.f32.mrb[0].mxu0
      %v303 = vadd.f32 0.0, %v302
      %v304 = vpop.f32.mrb[0].mxu0
      %305 = vmatprep.mubr.bf16.mxu0 0
      %306 = vmatmul.mubr.bf16.gmra.mrb[0].mxu0 %v257
      %v307 = vpop.f32.mrb[0].mxu0
      %v308 = vadd.f32 0.0, %v307
      %v309 = vpop.f32.mrb[0].mxu0
      %v310 = vpop.f32.mrb[0].mxu0
      %v311 = vpop.f32.mrb[0].mxu0
      %312 = vdwg.mxu0
      %v313 = vrcp.pop %v239
      %v314 = vrcp.pop %v242
      %v315 = vrcp.pop %v245
      %v316 = vmul.f32 %v300, %v313
      %v317 = vmul.f32 %v303, %v314
      %v318 = vmul.f32 %v308, %v315
      %v319 = vpack.c.bf16 %v317, %v316
      %v320 = vpack.c.bf16 %v318, %v318
      %v323 = vunpack.c.l.b16 %v319
      %v324 = vunpack.c.h.b16 %v319
      %v325 = vunpack.c.l.b16 %v320
      %v326 = vpack.c.b16 %v323, %v323
      %v327 = vpack.c.b16 %v324, %v324
      %v328 = vpack.c.b16 %v325, %v325
      %vm332 = vcmask 60416
      %333 = vst.msk [vmem:[%s138] sm:$0xf] %vm332, %v326
      %334 = vst.msk [vmem:[%s138 + $0x4] sm:$0xf] %vm332, %v327
      %vm335 = vcmask 57344
      %vm336 = vsmask.f32 256
      %vm337 = vmand %vm335, %vm336
      %v338 = vld [vmem:[%s138 + $0x8] sm:$0x1]
      %v339 = vsel %vm337, %v328, %v338
      %340 = vst [vmem:[%s138 + $0x8] sm:$0x1] %v339
      %v341 = vld [vmem:[%s129] sm:$0xf]
      %v342 = vld [vmem:[%s129 + $0x4] sm:$0xf]
      %v343 = vld [vmem:[%s129 + $0x8] sm:$0x1]
      %v347 = vunpack.c.l.b16 %v341
      %v348 = vunpack.c.l.b16 %v342
      %v349 = vunpack.c.l.b16 %v343
      %v350 = vpack.c.b16 %v348, %v347
      %v351 = vpack.c.b16 %v349, %v349
      %352 = vrot.lane.b32.xlu0 %v350, 120
      %v353 = vpop.permute.xlu0 %352
      %354 = vrot.lane.b32.xlu0 %v351, 120
      %v355 = vpop.permute.xlu0 %354
      %356 = vrot.lane.b32.xlu0 %v350, 88
      %v357 = vpop.permute.xlu0 %356
      %358 = vrot.lane.b32.xlu0 %v351, 88
      %v359 = vpop.permute.xlu0 %358
      %v361 = vsel %vm156, %v353, 0
      %v364 = vsel %vm156, %v355, 0
      %v367 = vsel %vm156, %v357, 0
      %v370 = vsel %vm156, %v359, 0
      %372 = vmatprep.subr.bf16.mxu0 0
      %373 = vmatpush1.bf16.xpose.msra.mxu0 %v367
      %374 = vmatprep.subr.bf16.mxu0 0
      %375 = vmatpush1.bf16.xpose.msra.mxu0 %v370
      %376 = vmatprep.subr.bf16.mxu0 0
      %377 = vmatpush1.bf16.xpose.msra.mxu0 0
      %378 = vmatprep.subr.bf16.mxu0 0
      %379 = vmatpush1.bf16.xpose.msra.mxu0 0
      %380 = vmatprep.subr.bf16.mxu0 0
      %381 = vmatpush1.bf16.xpose.msra.mxu0 0
      %382 = vmatprep.subr.bf16.mxu0 0
      %383 = vmatpush1.bf16.xpose.msra.mxu0 0
      %384 = vmatprep.subr.bf16.mxu0 0
      %385 = vmatpush1.bf16.xpose.msra.mxu0 0
      %386 = vmatprep.subr.bf16.mxu0 0
      %387 = vmatpush1.bf16.xpose.msra.mxu0 0
      %388 = vmatprep.subr.bf16.mxu0 0
      %389 = vmatpush1.bf16.xpose.msra.mxu0 0
      %390 = vmatprep.subr.bf16.mxu0 0
      %391 = vmatpush1.bf16.xpose.msra.mxu0 0
      %392 = vmatprep.subr.bf16.mxu0 0
      %393 = vmatpush1.bf16.xpose.msra.mxu0 0
      %394 = vmatprep.subr.bf16.mxu0 0
      %395 = vmatpush1.bf16.xpose.msra.mxu0 0
      %396 = vmatprep.subr.bf16.mxu0 0
      %397 = vmatpush1.bf16.xpose.msra.mxu0 0
      %398 = vmatprep.subr.bf16.mxu0 0
      %399 = vmatpush1.bf16.xpose.msra.mxu0 0
      %400 = vmatprep.subr.bf16.mxu0 0
      %401 = vmatpush1.bf16.xpose.msra.mxu0 0
      %402 = vmatprep.subr.bf16.mxu0 0
      %403 = vmatpush1.bf16.xpose.msra.mxu0 0
      %404 = vmatprep.mubr.bf16.mxu0 0
      %405 = vmatmul.mubr.bf16.gmra.mrb[0].mxu0 %v361
      %v406 = vpop.f32.mrb[0].mxu0
      %v407 = vadd.f32 0.0, %v406
      %v408 = vpop.f32.mrb[0].mxu0
      %v409 = vpop.f32.mrb[0].mxu0
      %v410 = vadd.f32 0.0, %v409
      %v411 = vpop.f32.mrb[0].mxu0
      %412 = vmatprep.mubr.bf16.mxu0 0
      %413 = vmatmul.mubr.bf16.gmra.mrb[0].mxu0 %v364
      %v414 = vpop.f32.mrb[0].mxu0
      %v415 = vadd.f32 0.0, %v414
      %v416 = vpop.f32.mrb[0].mxu0
      %v417 = vpop.f32.mrb[0].mxu0
      %v418 = vpop.f32.mrb[0].mxu0
      %419 = vdwg.mxu0
      %v420 = vsel %vm217, %v407, -inf
      %421 = vmax.xlane.f32.xlu0 %v420
      %v422 = vpop.xlane.xlu0 %421
      %v423 = vsel %vm217, %v410, -inf
      %424 = vmax.xlane.f32.xlu0 %v423
      %v425 = vpop.xlane.xlu0 %424
      %v426 = vsel %vm224, %v415, -inf
      %427 = vmax.xlane.f32.xlu0 %v426
      %v428 = vpop.xlane.xlu0 %427
      %v429 = vsub.f32 %v407, %v422
      %v430 = vsub.f32 %v410, %v425
      %v431 = vsub.f32 %v415, %v428
      %v432 = vmul.f32 %v429, 1.442695
      %v433 = vpow.pop %v432
      %v434 = vmul.f32 %v430, 1.442695
      %v435 = vpow.pop %v434
      %v436 = vmul.f32 %v431, 1.442695
      %v437 = vpow.pop %v436
      %v438 = vsel %vm217, %v433, 0.0
      %439 = vadd.xlane.f32.xlu0 %v438
      %v440 = vpop.xlane.xlu0 %439
      %v441 = vsel %vm217, %v435, 0.0
      %442 = vadd.xlane.f32.xlu0 %v441
      %v443 = vpop.xlane.xlu0 %442
      %v444 = vsel %vm224, %v437, 0.0
      %445 = vadd.xlane.f32.xlu0 %v444
      %v446 = vpop.xlane.xlu0 %445
      %v447 = vpack.c.bf16 %v435, %v433
      %v448 = vpack.c.bf16 %v437, %v437
      %449 = vrot.lane.b32.xlu0 %v350, 56
      %v450 = vpop.permute.xlu0 %449
      %451 = vrot.lane.b32.xlu0 %v351, 56
      %v452 = vpop.permute.xlu0 %451
      %v455 = vsel %vm217, %v447, 0
      %v458 = vsel %vm217, %v448, 0
      %v461 = vand.u32 %v452, %v261
      %463 = vmatprep.subr.bf16.mxu0 0
      %464 = vmatpush1.bf16.msra.mxu0 %v450
      %465 = vmatprep.subr.bf16.mxu0 0
      %466 = vmatpush1.bf16.msra.mxu0 %v461
      %467 = vmatprep.subr.bf16.mxu0 0
      %468 = vmatpush1.bf16.msra.mxu0 0
      %469 = vmatprep.subr.bf16.mxu0 0
      %470 = vmatpush1.bf16.msra.mxu0 0
      %471 = vmatprep.subr.bf16.mxu0 0
      %472 = vmatpush1.bf16.msra.mxu0 0
      %473 = vmatprep.subr.bf16.mxu0 0
      %474 = vmatpush1.bf16.msra.mxu0 0
      %475 = vmatprep.subr.bf16.mxu0 0
      %476 = vmatpush1.bf16.msra.mxu0 0
      %477 = vmatprep.subr.bf16.mxu0 0
      %478 = vmatpush1.bf16.msra.mxu0 0
      %479 = vmatprep.subr.bf16.mxu0 0
      %480 = vmatpush1.bf16.msra.mxu0 0
      %481 = vmatprep.subr.bf16.mxu0 0
      %482 = vmatpush1.bf16.msra.mxu0 0
      %483 = vmatprep.subr.bf16.mxu0 0
      %484 = vmatpush1.bf16.msra.mxu0 0
      %485 = vmatprep.subr.bf16.mxu0 0
      %486 = vmatpush1.bf16.msra.mxu0 0
      %487 = vmatprep.subr.bf16.mxu0 0
      %488 = vmatpush1.bf16.msra.mxu0 0
      %489 = vmatprep.subr.bf16.mxu0 0
      %490 = vmatpush1.bf16.msra.mxu0 0
      %491 = vmatprep.subr.bf16.mxu0 0
      %492 = vmatpush1.bf16.msra.mxu0 0
      %493 = vmatprep.subr.bf16.mxu0 0
      %494 = vmatpush1.bf16.msra.mxu0 0
      %495 = vmatprep.mubr.bf16.mxu0 0
      %496 = vmatmul.mubr.bf16.gmra.mrb[0].mxu0 %v455
      %v497 = vpop.f32.mrb[0].mxu0
      %v498 = vadd.f32 0.0, %v497
      %v499 = vpop.f32.mrb[0].mxu0
      %v500 = vpop.f32.mrb[0].mxu0
      %v501 = vadd.f32 0.0, %v500
      %v502 = vpop.f32.mrb[0].mxu0
      %503 = vmatprep.mubr.bf16.mxu0 0
      %504 = vmatmul.mubr.bf16.gmra.mrb[0].mxu0 %v458
      %v505 = vpop.f32.mrb[0].mxu0
      %v506 = vadd.f32 0.0, %v505
      %v507 = vpop.f32.mrb[0].mxu0
      %v508 = vpop.f32.mrb[0].mxu0
      %v509 = vpop.f32.mrb[0].mxu0
      %510 = vdwg.mxu0
      %v511 = vrcp.pop %v440
      %v512 = vrcp.pop %v443
      %v513 = vrcp.pop %v446
      %v514 = vmul.f32 %v498, %v511
      %v515 = vmul.f32 %v501, %v512
      %v516 = vmul.f32 %v506, %v513
      %v517 = vpack.c.bf16 %v515, %v514
      %v518 = vpack.c.bf16 %v516, %v516
      %v521 = vunpack.c.l.b16 %v517
      %v522 = vunpack.c.h.b16 %v517
      %v523 = vunpack.c.l.b16 %v518
      %v524 = vpack.c.b16 %v521, %v521
      %v525 = vpack.c.b16 %v522, %v522
      %v526 = vpack.c.b16 %v523, %v523
      %527 = vrot.lane.b32.xlu0 %v524, 8
      %v528 = vpop.permute.xlu0 %527
      %529 = vrot.lane.b32.xlu0 %v525, 8
      %v530 = vpop.permute.xlu0 %529
      %531 = vrot.lane.b32.xlu0 %v526, 8
      %v532 = vpop.permute.xlu0 %531
      %vm536 = vcmask 126016
      %537 = vst.msk [vmem:[%s138] sm:$0xf] %vm536, %v528
      %538 = vst.msk [vmem:[%s138 + $0x4] sm:$0xf] %vm536, %v530
      %vm539 = vcmask 122944
      %vm540 = vmand %vm539, %vm336
      %v541 = vld [vmem:[%s138 + $0x8] sm:$0x1]
      %v542 = vsel %vm540, %v532, %v541
      %543 = vst [vmem:[%s138 + $0x8] sm:$0x1] %v542
      %v544 = vld [vmem:[%s129] sm:$0xf]
      %v545 = vld [vmem:[%s129 + $0x4] sm:$0xf]
      %v546 = vld [vmem:[%s129 + $0x8] sm:$0x1]
      %v550 = vunpack.c.l.b16 %v544
      %v551 = vunpack.c.l.b16 %v545
      %v552 = vunpack.c.l.b16 %v546
      %v553 = vpack.c.b16 %v551, %v550
      %v554 = vpack.c.b16 %v552, %v552
      %555 = vrot.lane.b32.xlu0 %v553, 112
      %v556 = vpop.permute.xlu0 %555
      %557 = vrot.lane.b32.xlu0 %v554, 112
      %v558 = vpop.permute.xlu0 %557
      %559 = vrot.lane.b32.xlu0 %v553, 80
      %v560 = vpop.permute.xlu0 %559
      %561 = vrot.lane.b32.xlu0 %v554, 80
      %v562 = vpop.permute.xlu0 %561
      %v564 = vsel %vm156, %v556, 0
      %v567 = vsel %vm156, %v558, 0
      %v570 = vsel %vm156, %v560, 0
      %v573 = vsel %vm156, %v562, 0
      %575 = vmatprep.subr.bf16.mxu0 0
      %576 = vmatpush1.bf16.xpose.msra.mxu0 %v570
      %577 = vmatprep.subr.bf16.mxu0 0
      %578 = vmatpush1.bf16.xpose.msra.mxu0 %v573
      %579 = vmatprep.subr.bf16.mxu0 0
      %580 = vmatpush1.bf16.xpose.msra.mxu0 0
      %581 = vmatprep.subr.bf16.mxu0 0
      %582 = vmatpush1.bf16.xpose.msra.mxu0 0
      %583 = vmatprep.subr.bf16.mxu0 0
      %584 = vmatpush1.bf16.xpose.msra.mxu0 0
      %585 = vmatprep.subr.bf16.mxu0 0
      %586 = vmatpush1.bf16.xpose.msra.mxu0 0
      %587 = vmatprep.subr.bf16.mxu0 0
      %588 = vmatpush1.bf16.xpose.msra.mxu0 0
      %589 = vmatprep.subr.bf16.mxu0 0
      %590 = vmatpush1.bf16.xpose.msra.mxu0 0
      %591 = vmatprep.subr.bf16.mxu0 0
      %592 = vmatpush1.bf16.xpose.msra.mxu0 0
      %593 = vmatprep.subr.bf16.mxu0 0
      %594 = vmatpush1.bf16.xpose.msra.mxu0 0
      %595 = vmatprep.subr.bf16.mxu0 0
      %596 = vmatpush1.bf16.xpose.msra.mxu0 0
      %597 = vmatprep.subr.bf16.mxu0 0
      %598 = vmatpush1.bf16.xpose.msra.mxu0 0
      %599 = vmatprep.subr.bf16.mxu0 0
      %600 = vmatpush1.bf16.xpose.msra.mxu0 0
      %601 = vmatprep.subr.bf16.mxu0 0
      %602 = vmatpush1.bf16.xpose.msra.mxu0 0
      %603 = vmatprep.subr.bf16.mxu0 0
      %604 = vmatpush1.bf16.xpose.msra.mxu0 0
      %605 = vmatprep.subr.bf16.mxu0 0
      %606 = vmatpush1.bf16.xpose.msra.mxu0 0
      %607 = vmatprep.mubr.bf16.mxu0 0
      %608 = vmatmul.mubr.bf16.gmra.mrb[0].mxu0 %v564
      %v609 = vpop.f32.mrb[0].mxu0
      %v610 = vadd.f32 0.0, %v609
      %v611 = vpop.f32.mrb[0].mxu0
      %v612 = vpop.f32.mrb[0].mxu0
      %v613 = vadd.f32 0.0, %v612
      %v614 = vpop.f32.mrb[0].mxu0
      %615 = vmatprep.mubr.bf16.mxu0 0
      %616 = vmatmul.mubr.bf16.gmra.mrb[0].mxu0 %v567
      %v617 = vpop.f32.mrb[0].mxu0
      %v618 = vadd.f32 0.0, %v617
      %v619 = vpop.f32.mrb[0].mxu0
      %v620 = vpop.f32.mrb[0].mxu0
      %v621 = vpop.f32.mrb[0].mxu0
      %622 = vdwg.mxu0
      %v623 = vsel %vm217, %v610, -inf
      %624 = vmax.xlane.f32.xlu0 %v623
      %v625 = vpop.xlane.xlu0 %624
      %v626 = vsel %vm217, %v613, -inf
      %627 = vmax.xlane.f32.xlu0 %v626
      %v628 = vpop.xlane.xlu0 %627
      %v629 = vsel %vm224, %v618, -inf
      %630 = vmax.xlane.f32.xlu0 %v629
      %v631 = vpop.xlane.xlu0 %630
      %v632 = vsub.f32 %v610, %v625
      %v633 = vsub.f32 %v613, %v628
      %v634 = vsub.f32 %v618, %v631
      %v635 = vmul.f32 %v632, 1.442695
      %v636 = vpow.pop %v635
      %v637 = vmul.f32 %v633, 1.442695
      %v638 = vpow.pop %v637
      %v639 = vmul.f32 %v634, 1.442695
      %v640 = vpow.pop %v639
      %v641 = vsel %vm217, %v636, 0.0
      %642 = vadd.xlane.f32.xlu0 %v641
      %v643 = vpop.xlane.xlu0 %642
      %v644 = vsel %vm217, %v638, 0.0
      %645 = vadd.xlane.f32.xlu0 %v644
      %v646 = vpop.xlane.xlu0 %645
      %v647 = vsel %vm224, %v640, 0.0
      %648 = vadd.xlane.f32.xlu0 %v647
      %v649 = vpop.xlane.xlu0 %648
      %v650 = vpack.c.bf16 %v638, %v636
      %v651 = vpack.c.bf16 %v640, %v640
      %652 = vrot.lane.b32.xlu0 %v553, 48
      %v653 = vpop.permute.xlu0 %652
      %654 = vrot.lane.b32.xlu0 %v554, 48
      %v655 = vpop.permute.xlu0 %654
      %v658 = vsel %vm217, %v650, 0
      %v661 = vsel %vm217, %v651, 0
      %v664 = vand.u32 %v655, %v261
      %666 = vmatprep.subr.bf16.mxu0 0
      %667 = vmatpush1.bf16.msra.mxu0 %v653
      %668 = vmatprep.subr.bf16.mxu0 0
      %669 = vmatpush1.bf16.msra.mxu0 %v664
      %670 = vmatprep.subr.bf16.mxu0 0
      %671 = vmatpush1.bf16.msra.mxu0 0
      %672 = vmatprep.subr.bf16.mxu0 0
      %673 = vmatpush1.bf16.msra.mxu0 0
      %674 = vmatprep.subr.bf16.mxu0 0
      %675 = vmatpush1.bf16.msra.mxu0 0
      %676 = vmatprep.subr.bf16.mxu0 0
      %677 = vmatpush1.bf16.msra.mxu0 0
      %678 = vmatprep.subr.bf16.mxu0 0
      %679 = vmatpush1.bf16.msra.mxu0 0
      %680 = vmatprep.subr.bf16.mxu0 0
      %681 = vmatpush1.bf16.msra.mxu0 0
      %682 = vmatprep.subr.bf16.mxu0 0
      %683 = vmatpush1.bf16.msra.mxu0 0
      %684 = vmatprep.subr.bf16.mxu0 0
      %685 = vmatpush1.bf16.msra.mxu0 0
      %686 = vmatprep.subr.bf16.mxu0 0
      %687 = vmatpush1.bf16.msra.mxu0 0
      %688 = vmatprep.subr.bf16.mxu0 0
      %689 = vmatpush1.bf16.msra.mxu0 0
      %690 = vmatprep.subr.bf16.mxu0 0
      %691 = vmatpush1.bf16.msra.mxu0 0
      %692 = vmatprep.subr.bf16.mxu0 0
      %693 = vmatpush1.bf16.msra.mxu0 0
      %694 = vmatprep.subr.bf16.mxu0 0
      %695 = vmatpush1.bf16.msra.mxu0 0
      %696 = vmatprep.subr.bf16.mxu0 0
      %697 = vmatpush1.bf16.msra.mxu0 0
      %698 = vmatprep.mubr.bf16.mxu0 0
      %699 = vmatmul.mubr.bf16.gmra.mrb[0].mxu0 %v658
      %v700 = vpop.f32.mrb[0].mxu0
      %v701 = vadd.f32 0.0, %v700
      %v702 = vpop.f32.mrb[0].mxu0
      %v703 = vpop.f32.mrb[0].mxu0
      %v704 = vadd.f32 0.0, %v703
      %v705 = vpop.f32.mrb[0].mxu0
      %706 = vmatprep.mubr.bf16.mxu0 0
      %707 = vmatmul.mubr.bf16.gmra.mrb[0].mxu0 %v661
      %v708 = vpop.f32.mrb[0].mxu0
      %v709 = vadd.f32 0.0, %v708
      %v710 = vpop.f32.mrb[0].mxu0
      %v711 = vpop.f32.mrb[0].mxu0
      %v712 = vpop.f32.mrb[0].mxu0
      %713 = vdwg.mxu0
      %v714 = vrcp.pop %v643
      %v715 = vrcp.pop %v646
      %v716 = vrcp.pop %v649
      %v717 = vmul.f32 %v701, %v714
      %v718 = vmul.f32 %v704, %v715
      %v719 = vmul.f32 %v709, %v716
      %v720 = vpack.c.bf16 %v718, %v717
      %v721 = vpack.c.bf16 %v719, %v719
      %v724 = vunpack.c.l.b16 %v720
      %v725 = vunpack.c.h.b16 %v720
      %v726 = vunpack.c.l.b16 %v721
      %v727 = vpack.c.b16 %v724, %v724
      %v728 = vpack.c.b16 %v725, %v725
      %v729 = vpack.c.b16 %v726, %v726
      %730 = vrot.lane.b32.xlu0 %v727, 16
      %v731 = vpop.permute.xlu0 %730
      %732 = vrot.lane.b32.xlu0 %v728, 16
      %v733 = vpop.permute.xlu0 %732
      %734 = vrot.lane.b32.xlu0 %v729, 16
      %v735 = vpop.permute.xlu0 %734
      %vm739 = vcmask 191616
      %740 = vst.msk [vmem:[%s138] sm:$0xf] %vm739, %v731
      %741 = vst.msk [vmem:[%s138 + $0x4] sm:$0xf] %vm739, %v733
      %vm742 = vcmask 188544
      %vm743 = vmand %vm742, %vm336
      %v744 = vld [vmem:[%s138 + $0x8] sm:$0x1]
      %v745 = vsel %vm743, %v735, %v744
      %746 = vst [vmem:[%s138 + $0x8] sm:$0x1] %v745
      %v747 = vld [vmem:[%s129] sm:$0xf]
      %v748 = vld [vmem:[%s129 + $0x4] sm:$0xf]
      %v749 = vld [vmem:[%s129 + $0x8] sm:$0x1]
      %v753 = vunpack.c.l.b16 %v747
      %v754 = vunpack.c.l.b16 %v748
      %v755 = vunpack.c.l.b16 %v749
      %v756 = vpack.c.b16 %v754, %v753
      %v757 = vpack.c.b16 %v755, %v755
      %758 = vrot.lane.b32.xlu0 %v756, 104
      %v759 = vpop.permute.xlu0 %758
      %760 = vrot.lane.b32.xlu0 %v757, 104
      %v761 = vpop.permute.xlu0 %760
      %762 = vrot.lane.b32.xlu0 %v756, 72
      %v763 = vpop.permute.xlu0 %762
      %764 = vrot.lane.b32.xlu0 %v757, 72
      %v765 = vpop.permute.xlu0 %764
      %v767 = vsel %vm156, %v759, 0
      %v770 = vsel %vm156, %v761, 0
      %v773 = vsel %vm156, %v763, 0
      %v776 = vsel %vm156, %v765, 0
      %778 = vmatprep.subr.bf16.mxu0 0
      %779 = vmatpush1.bf16.xpose.msra.mxu0 %v773
      %780 = vmatprep.subr.bf16.mxu0 0
      %781 = vmatpush1.bf16.xpose.msra.mxu0 %v776
      %782 = vmatprep.subr.bf16.mxu0 0
      %783 = vmatpush1.bf16.xpose.msra.mxu0 0
      %784 = vmatprep.subr.bf16.mxu0 0
      %785 = vmatpush1.bf16.xpose.msra.mxu0 0
      %786 = vmatprep.subr.bf16.mxu0 0
      %787 = vmatpush1.bf16.xpose.msra.mxu0 0
      %788 = vmatprep.subr.bf16.mxu0 0
      %789 = vmatpush1.bf16.xpose.msra.mxu0 0
      %790 = vmatprep.subr.bf16.mxu0 0
      %791 = vmatpush1.bf16.xpose.msra.mxu0 0
      %792 = vmatprep.subr.bf16.mxu0 0
      %793 = vmatpush1.bf16.xpose.msra.mxu0 0
      %794 = vmatprep.subr.bf16.mxu0 0
      %795 = vmatpush1.bf16.xpose.msra.mxu0 0
      %796 = vmatprep.subr.bf16.mxu0 0
      %797 = vmatpush1.bf16.xpose.msra.mxu0 0
      %798 = vmatprep.subr.bf16.mxu0 0
      %799 = vmatpush1.bf16.xpose.msra.mxu0 0
      %800 = vmatprep.subr.bf16.mxu0 0
      %801 = vmatpush1.bf16.xpose.msra.mxu0 0
      %802 = vmatprep.subr.bf16.mxu0 0
      %803 = vmatpush1.bf16.xpose.msra.mxu0 0
      %804 = vmatprep.subr.bf16.mxu0 0
      %805 = vmatpush1.bf16.xpose.msra.mxu0 0
      %806 = vmatprep.subr.bf16.mxu0 0
      %807 = vmatpush1.bf16.xpose.msra.mxu0 0
      %808 = vmatprep.subr.bf16.mxu0 0
      %809 = vmatpush1.bf16.xpose.msra.mxu0 0
      %810 = vmatprep.mubr.bf16.mxu0 0
      %811 = vmatmul.mubr.bf16.gmra.mrb[0].mxu0 %v767
      %v812 = vpop.f32.mrb[0].mxu0
      %v813 = vadd.f32 0.0, %v812
      %v814 = vpop.f32.mrb[0].mxu0
      %v815 = vpop.f32.mrb[0].mxu0
      %v816 = vadd.f32 0.0, %v815
      %v817 = vpop.f32.mrb[0].mxu0
      %818 = vmatprep.mubr.bf16.mxu0 0
      %819 = vmatmul.mubr.bf16.gmra.mrb[0].mxu0 %v770
      %v820 = vpop.f32.mrb[0].mxu0
      %v821 = vadd.f32 0.0, %v820
      %v822 = vpop.f32.mrb[0].mxu0
      %v823 = vpop.f32.mrb[0].mxu0
      %v824 = vpop.f32.mrb[0].mxu0
      %825 = vdwg.mxu0
      %v826 = vsel %vm217, %v813, -inf
      %827 = vmax.xlane.f32.xlu0 %v826
      %v828 = vpop.xlane.xlu0 %827
      %v829 = vsel %vm217, %v816, -inf
      %830 = vmax.xlane.f32.xlu0 %v829
      %v831 = vpop.xlane.xlu0 %830
      %v832 = vsel %vm224, %v821, -inf
      %833 = vmax.xlane.f32.xlu0 %v832
      %v834 = vpop.xlane.xlu0 %833
      %v835 = vsub.f32 %v813, %v828
      %v836 = vsub.f32 %v816, %v831
      %v837 = vsub.f32 %v821, %v834
      %v838 = vmul.f32 %v835, 1.442695
      %v839 = vpow.pop %v838
      %v840 = vmul.f32 %v836, 1.442695
      %v841 = vpow.pop %v840
      %v842 = vmul.f32 %v837, 1.442695
      %v843 = vpow.pop %v842
      %v844 = vsel %vm217, %v839, 0.0
      %845 = vadd.xlane.f32.xlu0 %v844
      %v846 = vpop.xlane.xlu0 %845
      %v847 = vsel %vm217, %v841, 0.0
      %848 = vadd.xlane.f32.xlu0 %v847
      %v849 = vpop.xlane.xlu0 %848
      %v850 = vsel %vm224, %v843, 0.0
      %851 = vadd.xlane.f32.xlu0 %v850
      %v852 = vpop.xlane.xlu0 %851
      %v853 = vpack.c.bf16 %v841, %v839
      %v854 = vpack.c.bf16 %v843, %v843
      %855 = vrot.lane.b32.xlu0 %v756, 40
      %v856 = vpop.permute.xlu0 %855
      %857 = vrot.lane.b32.xlu0 %v757, 40
      %v858 = vpop.permute.xlu0 %857
      %v861 = vsel %vm217, %v853, 0
      %v864 = vsel %vm217, %v854, 0
      %v867 = vand.u32 %v858, %v261
      %869 = vmatprep.subr.bf16.mxu0 0
      %870 = vmatpush1.bf16.msra.mxu0 %v856
      %871 = vmatprep.subr.bf16.mxu0 0
      %872 = vmatpush1.bf16.msra.mxu0 %v867
      %873 = vmatprep.subr.bf16.mxu0 0
      %874 = vmatpush1.bf16.msra.mxu0 0
      %875 = vmatprep.subr.bf16.mxu0 0
      %876 = vmatpush1.bf16.msra.mxu0 0
      %877 = vmatprep.subr.bf16.mxu0 0
      %878 = vmatpush1.bf16.msra.mxu0 0
      %879 = vmatprep.subr.bf16.mxu0 0
      %880 = vmatpush1.bf16.msra.mxu0 0
      %881 = vmatprep.subr.bf16.mxu0 0
      %882 = vmatpush1.bf16.msra.mxu0 0
      %883 = vmatprep.subr.bf16.mxu0 0
      %884 = vmatpush1.bf16.msra.mxu0 0
      %885 = vmatprep.subr.bf16.mxu0 0
      %886 = vmatpush1.bf16.msra.mxu0 0
      %887 = vmatprep.subr.bf16.mxu0 0
      %888 = vmatpush1.bf16.msra.mxu0 0
      %889 = vmatprep.subr.bf16.mxu0 0
      %890 = vmatpush1.bf16.msra.mxu0 0
      %891 = vmatprep.subr.bf16.mxu0 0
      %892 = vmatpush1.bf16.msra.mxu0 0
      %893 = vmatprep.subr.bf16.mxu0 0
      %894 = vmatpush1.bf16.msra.mxu0 0
      %895 = vmatprep.subr.bf16.mxu0 0
      %896 = vmatpush1.bf16.msra.mxu0 0
      %897 = vmatprep.subr.bf16.mxu0 0
      %898 = vmatpush1.bf16.msra.mxu0 0
      %899 = vmatprep.subr.bf16.mxu0 0
      %900 = vmatpush1.bf16.msra.mxu0 0
      %901 = vmatprep.mubr.bf16.mxu0 0
      %902 = vmatmul.mubr.bf16.gmra.mrb[0].mxu0 %v861
      %v903 = vpop.f32.mrb[0].mxu0
      %v904 = vadd.f32 0.0, %v903
      %v905 = vpop.f32.mrb[0].mxu0
      %v906 = vpop.f32.mrb[0].mxu0
      %v907 = vadd.f32 0.0, %v906
      %v908 = vpop.f32.mrb[0].mxu0
      %909 = vmatprep.mubr.bf16.mxu0 0
      %910 = vmatmul.mubr.bf16.gmra.mrb[0].mxu0 %v864
      %v911 = vpop.f32.mrb[0].mxu0
      %v912 = vadd.f32 0.0, %v911
      %v913 = vpop.f32.mrb[0].mxu0
      %v914 = vpop.f32.mrb[0].mxu0
      %v915 = vpop.f32.mrb[0].mxu0
      %916 = vdwg.mxu0
      %v917 = vrcp.pop %v846
      %v918 = vrcp.pop %v849
      %v919 = vrcp.pop %v852
      %v920 = vmul.f32 %v904, %v917
      %v921 = vmul.f32 %v907, %v918
      %v922 = vmul.f32 %v912, %v919
      %v923 = vpack.c.bf16 %v921, %v920
      %v924 = vpack.c.bf16 %v922, %v922
      %v927 = vunpack.c.l.b16 %v923
      %v928 = vunpack.c.h.b16 %v923
      %v929 = vunpack.c.l.b16 %v924
      %v930 = vpack.c.b16 %v927, %v927
      %v931 = vpack.c.b16 %v928, %v928
      %v932 = vpack.c.b16 %v929, %v929
      %933 = vrot.lane.b32.xlu0 %v930, 24
      %v934 = vpop.permute.xlu0 %933
      %935 = vrot.lane.b32.xlu0 %v931, 24
      %v936 = vpop.permute.xlu0 %935
      %937 = vrot.lane.b32.xlu0 %v932, 24
      %v938 = vpop.permute.xlu0 %937
      %vm942 = vcmask 257216
      %943 = vst.msk [vmem:[%s138] sm:$0xf] %vm942, %v934
      %944 = vst.msk [vmem:[%s138 + $0x4] sm:$0xf] %vm942, %v936
      %vm945 = vcmask 254144
      %vm946 = vmand %vm945, %vm336
      %v947 = vld [vmem:[%s138 + $0x8] sm:$0x1]
      %v948 = vsel %vm946, %v938, %v947
      %949 = vst [vmem:[%s138 + $0x8] sm:$0x1] %v948
      %s950 = smul.u32 3, %s17
      %p951 = scmp.lt.s32.totalorder %s16, 1
      %s952 = scalar_select %p951, %s16, 1
      %p953 = scmp.lt.s32.totalorder %s950, 2
      %s954 = scalar_select %p953, %s950, 2
      %s955 = smul.addr %s952, 3
      %s956 = sadd.s32 %s954, %s955
      %s957 = smul.addr %s956, 4
      %s958 = scalar_lea.vmem %s1, %s957
      // Predicated region
      $region25: #{vision_transformer_forward.16} parent=23 // pred_check
        %p959 = pneg %p70
      $region26: #{vision_transformer_forward.16} parent=23 // pred_check_branch
        %961 = sbr.rel (%p959) target = $region28
      $region27: #{vision_transformer_forward.16} parent=23 // pred_region
        %s962 = smul.u32 3, %s17
      $region28: #{vision_transformer_forward.16} parent=23 // pred_fallthru
        _
    $region24: #{vision_transformer_forward.16} parent=5 // pred_fallthru
      _
    %p963 = scmp.le.s32.totalorder 2, %s7
    // Predicated region
    $region29: #{vision_transformer_forward.16} parent=5 // pred_check
      %p964 = pneg %p963
    $region30: #{vision_transformer_forward.16} parent=5 // pred_check_branch
      %966 = sbr.rel (%p964) target = $region32
    $region31: #{vision_transformer_forward.16} parent=5 // pred_region
      %s967 = ssub.s32 %s7, 2
      // Predicated region
      $region33: #{vision_transformer_forward.16} parent=31 // pred_check
        %p968 = pneg %p76
      $region34: #{vision_transformer_forward.16} parent=31 // pred_check_branch
        %970 = sbr.rel (%p968) target = $region36
      $region35: #{vision_transformer_forward.16} parent=31 // pred_region
        %s971 = smul.u32 3, %s19
        %p972 = scmp.lt.s32.totalorder %s18, 1
        %s973 = scalar_select %p972, %s18, 1
        %p974 = scmp.lt.s32.totalorder %s971, 2
        %s975 = scalar_select %p974, %s971, 2
        %s976 = smul.addr %s973, 3
        %s977 = sadd.s32 %s975, %s976
        %s978 = smul.addr %s977, 4
        %s979 = scalar_lea.vmem %s1, %s978
      $region36: #{vision_transformer_forward.16} parent=31 // pred_fallthru
        _
    $region32: #{vision_transformer_forward.16} parent=5 // pred_fallthru
      _
  $region6: #{vision_transformer_forward.16} parent=0 // loop_footer
    %s11 = sadd.s32 1, %s7
  $region7: #{vision_transformer_forward.16} parent=0 // loop_footer_branch
    %6 = sbr.rel target = $region3
  $region8: #{vision_transformer_forward.16} parent=0 // loop_exit
    _

// kernel: vision_transformer_forward.18
$region0: #{vision_transformer_forward.18}
  #allocation0 [shape = 'u32[]', space=smem, size = 0x4, offset = 0x4, fixed_abs, tag = 'smem constant byte address 0x4 - core index']
  #allocation1 [shape = 'u32[144,128]{1,0:T(1,128)}', space=vmem, size = 0x12000, scoped, tag = 'internal scratch']
  #allocation2 [shape = 'bf16[34,32]{1,0:T(8,128)(2,1)}', space=vmem, size = 0x2800, scoped, tag = 'scratch operand']
  %s0 = inlined_call_operand.vmem [shape: bf16[34,32], index: 0, kind: input, shape index: {}]
  %s1 = inlined_call_operand.vmem [shape: f32[1,32], index: 1, kind: input, shape index: {}]
  %s2 = inlined_call_operand.vmem [shape: f32[1,32], index: 2, kind: input, shape index: {}]
  %s3 = inlined_call_operand.vmem [shape: bf16[32,128], index: 3, kind: input, shape index: {}]
  %s4 = inlined_call_operand.vmem [shape: f32[1,128], index: 4, kind: input, shape index: {}]
  %s5 = inlined_call_operand.vmem [shape: bf16[34,128], index: 5, kind: output, shape index: {}]
  %s6 = sld [smem:[#allocation0]]
  $region34: #{vision_transformer_forward.18} parent=0
    _
  %s8 = ssub.s32 1, %s6
  %s9 = scalar_select 0, %s8, %s6
  // Predicated region
  $region2: #{vision_transformer_forward.18} parent=0 // pred_check
    _
  $region3: #{vision_transformer_forward.18} parent=0 // pred_check_branch
    %11 = sbr.rel (0) target = $region5
  $region4: #{vision_transformer_forward.18} parent=0 // pred_region
    _
  $region5: #{vision_transformer_forward.18} parent=0 // pred_fallthru
    _
  // Predicated region
  $region6: #{vision_transformer_forward.18} parent=0 // pred_check
    _
  $region7: #{vision_transformer_forward.18} parent=0 // pred_check_branch
    %13 = sbr.rel (0) target = $region9
  $region8: #{vision_transformer_forward.18} parent=0 // pred_region
    _
  $region9: #{vision_transformer_forward.18} parent=0 // pred_fallthru
    _
  // Predicated region
  $region10: #{vision_transformer_forward.18} parent=0 // pred_check
    _
  $region11: #{vision_transformer_forward.18} parent=0 // pred_check_branch
    %15 = sbr.rel (0) target = $region13
  $region12: #{vision_transformer_forward.18} parent=0 // pred_region
    _
  $region13: #{vision_transformer_forward.18} parent=0 // pred_fallthru
    _
  // Predicated region
  $region14: #{vision_transformer_forward.18} parent=0 // pred_check
    _
  $region15: #{vision_transformer_forward.18} parent=0 // pred_check_branch
    %17 = sbr.rel (0) target = $region17
  $region16: #{vision_transformer_forward.18} parent=0 // pred_region
    _
  $region17: #{vision_transformer_forward.18} parent=0 // pred_fallthru
    _
  // Predicated region
  $region18: #{vision_transformer_forward.18} parent=0 // pred_check
    _
  $region19: #{vision_transformer_forward.18} parent=0 // pred_check_branch
    %19 = sbr.rel (0) target = $region21
  $region20: #{vision_transformer_forward.18} parent=0 // pred_region
    _
  $region21: #{vision_transformer_forward.18} parent=0 // pred_fallthru
    _
  %p21 = scmp.eq.s32.totalorder 0, 0
  // Predicated region
  $region22: #{vision_transformer_forward.18} parent=0 // pred_check
    %p22 = pneg %p21
  $region23: #{vision_transformer_forward.18} parent=0 // pred_check_branch
    %24 = sbr.rel (%p22) target = $region25
  $region24: #{vision_transformer_forward.18} parent=0 // pred_region
    %v25 = vld [vmem:[%s0] sm:$0xf]
    %v26 = vld [vmem:[%s0 + $0x4] sm:$0xf]
    %v27 = vld [vmem:[%s0 + $0x8] sm:$0xf]
    %v28 = vld [vmem:[%s0 + $0xc] sm:$0xf]
    %v29 = vld [vmem:[%s0 + $0x10] sm:$0x1]
    %v30 = vunpack.c.l.bf16 %v25
    %v31 = vunpack.c.l.bf16 %v26
    %v32 = vunpack.c.l.bf16 %v27
    %v33 = vunpack.c.l.bf16 %v28
    %v34 = vunpack.c.l.bf16 %v29
    %vm35 = vcmask 261120
    %v36 = vsel %vm35, %v30, 0.0
    %37 = vadd.xlane.f32.xlu0 %v36
    %v38 = vpop.xlane.xlu0 %37
    %v39 = vsel %vm35, %v31, 0.0
    %40 = vadd.xlane.f32.xlu0 %v39
    %v41 = vpop.xlane.xlu0 %40
    %v42 = vsel %vm35, %v32, 0.0
    %43 = vadd.xlane.f32.xlu0 %v42
    %v44 = vpop.xlane.xlu0 %43
    %v45 = vsel %vm35, %v33, 0.0
    %46 = vadd.xlane.f32.xlu0 %v45
    %v47 = vpop.xlane.xlu0 %46
    %vm48 = vcmask 254976
    %v49 = vsel %vm48, %v34, 0.0
    %50 = vadd.xlane.f32.xlu0 %v49
    %v51 = vpop.xlane.xlu0 %50
    %v52 = vrcp.pop 32.0
    %v53 = vmul.f32 %v38, %v52
    %v54 = vmul.f32 %v41, %v52
    %v55 = vmul.f32 %v44, %v52
    %v56 = vmul.f32 %v47, %v52
    %v57 = vmul.f32 %v51, %v52
    %v58 = vsub.f32 %v30, %v53
    %v59 = vsub.f32 %v31, %v54
    %v60 = vsub.f32 %v32, %v55
    %v61 = vsub.f32 %v33, %v56
    %v62 = vsub.f32 %v34, %v57
    %v63 = vmul.f32 %v58, %v58
    %v64 = vmul.f32 %v59, %v59
    %v65 = vmul.f32 %v60, %v60
    %v66 = vmul.f32 %v61, %v61
    %v67 = vmul.f32 %v62, %v62
    %v68 = vsel %vm35, %v63, 0.0
    %69 = vadd.xlane.f32.xlu0 %v68
    %v70 = vpop.xlane.xlu0 %69
    %v71 = vsel %vm35, %v64, 0.0
    %72 = vadd.xlane.f32.xlu0 %v71
    %v73 = vpop.xlane.xlu0 %72
    %v74 = vsel %vm35, %v65, 0.0
    %75 = vadd.xlane.f32.xlu0 %v74
    %v76 = vpop.xlane.xlu0 %75
    %v77 = vsel %vm35, %v66, 0.0
    %78 = vadd.xlane.f32.xlu0 %v77
    %v79 = vpop.xlane.xlu0 %78
    %v80 = vsel %vm48, %v67, 0.0
    %81 = vadd.xlane.f32.xlu0 %v80
    %v82 = vpop.xlane.xlu0 %81
    %v83 = vmul.f32 %v70, %v52
    %v84 = vmul.f32 %v73, %v52
    %v85 = vmul.f32 %v76, %v52
    %v86 = vmul.f32 %v79, %v52
    %v87 = vmul.f32 %v82, %v52
    %v88 = vadd.f32 %v83, 1e-05
    %v89 = vadd.f32 %v84, 1e-05
    %v90 = vadd.f32 %v85, 1e-05
    %v91 = vadd.f32 %v86, 1e-05
    %v92 = vadd.f32 %v87, 1e-05
    %v93 = vrsqrt.pop %v88
    %v94 = vrsqrt.pop %v89
    %v95 = vrsqrt.pop %v90
    %v96 = vrsqrt.pop %v91
    %v97 = vrsqrt.pop %v92
    %v98 = vmul.f32 %v58, %v93
    %v99 = vmul.f32 %v59, %v94
    %v100 = vmul.f32 %v60, %v95
    %v101 = vmul.f32 %v61, %v96
    %v102 = vmul.f32 %v62, %v97
    %v103 = vld [vmem:[%s1] sm:$0x1]
    %v105 = vlaneseq
    %v106 = vshrl.u32 %v105, 7
    %v107 = vsub.s32 0, %v106
    %v108 = vrot.slane %v103, %v107
    %v110 = vmul.f32 %v98, %v108
    %v111 = vmul.f32 %v99, %v108
    %v112 = vmul.f32 %v100, %v108
    %v113 = vmul.f32 %v101, %v108
    %v114 = vmul.f32 %v102, %v108
    %v115 = vld [vmem:[%s2] sm:$0x1]
    %v117 = vlaneseq
    %v118 = vshrl.u32 %v117, 7
    %v119 = vsub.s32 0, %v118
    %v120 = vrot.slane %v115, %v119
    %v122 = vadd.f32 %v110, %v120
    %v123 = vadd.f32 %v111, %v120
    %v124 = vadd.f32 %v112, %v120
    %v125 = vadd.f32 %v113, %v120
    %v126 = vadd.f32 %v114, %v120
    %v127 = vpack.c.bf16 %v123, %v122
    %v128 = vpack.c.bf16 %v125, %v124
    %v129 = vpack.c.bf16 %v126, %v126
    %v133 = vunpack.c.l.b16 %v127
    %v134 = vunpack.c.h.b16 %v127
    %v135 = vunpack.c.l.b16 %v128
    %v136 = vunpack.c.h.b16 %v128
    %v137 = vunpack.c.l.b16 %v129
    %v138 = vpack.c.b16 %v133, %v133
    %v139 = vpack.c.b16 %v134, %v134
    %v140 = vpack.c.b16 %v135, %v135
    %v141 = vpack.c.b16 %v136, %v136
    %v142 = vpack.c.b16 %v137, %v137
    %vm148 = vcmask 257024
    %149 = vst.msk [vmem:[#allocation2] sm:$0xf] %vm148, %v138
    %150 = vst.msk [vmem:[#allocation2 + $0x4] sm:$0xf] %vm148, %v139
    %151 = vst.msk [vmem:[#allocation2 + $0x8] sm:$0xf] %vm148, %v140
    %152 = vst.msk [vmem:[#allocation2 + $0xc] sm:$0xf] %vm148, %v141
    %vm153 = vcmask 253952
    %154 = vst.msk [vmem:[#allocation2 + $0x10] sm:$0x1] %vm153, %v142
  $region25: #{vision_transformer_forward.18} parent=0 // pred_fallthru
    _
  %v155 = vld [vmem:[#allocation2] sm:$0xf]
  %v156 = vld [vmem:[#allocation2 + $0x4] sm:$0xf]
  %v157 = vld [vmem:[#allocation2 + $0x8] sm:$0xf]
  %v158 = vld [vmem:[#allocation2 + $0xc] sm:$0xf]
  %v159 = vld [vmem:[#allocation2 + $0x10] sm:$0x1]
  %v160 = vld [vmem:[%s3] sm:$0xf]
  %v161 = vld [vmem:[%s3 + $0x4] sm:$0xf]
  %v162 = vld [vmem:[%s3 + $0x8] sm:$0xf]
  %v163 = vld [vmem:[%s3 + $0xc] sm:$0xf]
  %v164 = vld [vmem:[%s4] sm:$0x1]
  %v166 = vlaneseq
  %v167 = vshrl.u32 %v166, 7
  %v168 = vsub.s32 0, %v167
  %v169 = vrot.slane %v164, %v168
  %v176 = vunpack.c.l.b16 %v155
  %v177 = vunpack.c.l.b16 %v156
  %v178 = vunpack.c.l.b16 %v157
  %v179 = vunpack.c.l.b16 %v158
  %v180 = vunpack.c.l.b16 %v159
  %v181 = vpack.c.b16 %v177, %v176
  %v182 = vpack.c.b16 %v179, %v178
  %v183 = vpack.c.b16 %v180, %v180
  %v188 = vunpack.c.l.b16 %v160
  %v189 = vunpack.c.l.b16 %v161
  %v190 = vunpack.c.l.b16 %v162
  %v191 = vunpack.c.l.b16 %v163
  %v192 = vpack.c.b16 %v189, %v188
  %v193 = vpack.c.b16 %v191, %v190
  %vm196 = vcmask 261120
  %v198 = vsel %vm196, %v181, 0
  %v201 = vsel %vm196, %v182, 0
  %v204 = vsel %vm196, %v183, 0
  %206 = vmatprep.subr.bf16.mxu0 0
  %207 = vmatpush1.bf16.msra.mxu0 %v192
  %208 = vmatprep.subr.bf16.mxu0 0
  %209 = vmatpush1.bf16.msra.mxu0 %v193
  %210 = vmatprep.subr.bf16.mxu0 0
  %211 = vmatpush1.bf16.msra.mxu0 0
  %212 = vmatprep.subr.bf16.mxu0 0
  %213 = vmatpush1.bf16.msra.mxu0 0
  %214 = vmatprep.subr.bf16.mxu0 0
  %215 = vmatpush1.bf16.msra.mxu0 0
  %216 = vmatprep.subr.bf16.mxu0 0
  %217 = vmatpush1.bf16.msra.mxu0 0
  %218 = vmatprep.subr.bf16.mxu0 0
  %219 = vmatpush1.bf16.msra.mxu0 0
  %220 = vmatprep.subr.bf16.mxu0 0
  %221 = vmatpush1.bf16.msra.mxu0 0
  %222 = vmatprep.subr.bf16.mxu0 0
  %223 = vmatpush1.bf16.msra.mxu0 0
  %224 = vmatprep.subr.bf16.mxu0 0
  %225 = vmatpush1.bf16.msra.mxu0 0
  %226 = vmatprep.subr.bf16.mxu0 0
  %227 = vmatpush1.bf16.msra.mxu0 0
  %228 = vmatprep.subr.bf16.mxu0 0
  %229 = vmatpush1.bf16.msra.mxu0 0
  %230 = vmatprep.subr.bf16.mxu0 0
  %231 = vmatpush1.bf16.msra.mxu0 0
  %232 = vmatprep.subr.bf16.mxu0 0
  %233 = vmatpush1.bf16.msra.mxu0 0
  %234 = vmatprep.subr.bf16.mxu0 0
  %235 = vmatpush1.bf16.msra.mxu0 0
  %236 = vmatprep.subr.bf16.mxu0 0
  %237 = vmatpush1.bf16.msra.mxu0 0
  %238 = vmatprep.mubr.bf16.mxu0 0
  %239 = vmatmul.mubr.bf16.gmra.mrb[0].mxu0 %v198
  %v240 = vpop.f32.mrb[0].mxu0
  %v241 = vadd.f32 %v169, %v240
  %v242 = vpop.f32.mrb[0].mxu0
  %v243 = vpop.f32.mrb[0].mxu0
  %v244 = vadd.f32 %v169, %v243
  %v245 = vpop.f32.mrb[0].mxu0
  %246 = vmatprep.mubr.bf16.mxu0 0
  %247 = vmatmul.mubr.bf16.gmra.mrb[0].mxu0 %v201
  %v248 = vpop.f32.mrb[0].mxu0
  %v249 = vadd.f32 %v169, %v248
  %v250 = vpop.f32.mrb[0].mxu0
  %v251 = vpop.f32.mrb[0].mxu0
  %v252 = vadd.f32 %v169, %v251
  %v253 = vpop.f32.mrb[0].mxu0
  %254 = vmatprep.mubr.bf16.mxu0 0
  %255 = vmatmul.mubr.bf16.gmra.mrb[0].mxu0 %v204
  %v256 = vpop.f32.mrb[0].mxu0
  %v257 = vadd.f32 %v169, %v256
  %v258 = vpop.f32.mrb[0].mxu0
  %v259 = vpop.f32.mrb[0].mxu0
  %v260 = vpop.f32.mrb[0].mxu0
  %261 = vdwg.mxu0
  %v262 = vmul.f32 %v241, 1.702
  %v263 = vmul.f32 %v244, 1.702
  %v264 = vmul.f32 %v249, 1.702
  %v265 = vmul.f32 %v252, 1.702
  %v266 = vmul.f32 %v257, 1.702
  %v267 = vxor.u32 %v262, 2147483648
  %v268 = vxor.u32 %v263, 2147483648
  %v269 = vxor.u32 %v264, 2147483648
  %v270 = vxor.u32 %v265, 2147483648
  %v271 = vxor.u32 %v266, 2147483648
  %v272 = vmul.f32 %v267, 1.442695
  %v273 = vpow.pop %v272
  %v274 = vmul.f32 %v268, 1.442695
  %v275 = vpow.pop %v274
  %v276 = vmul.f32 %v269, 1.442695
  %v277 = vpow.pop %v276
  %v278 = vmul.f32 %v270, 1.442695
  %v279 = vpow.pop %v278
  %v280 = vmul.f32 %v271, 1.442695
  %v281 = vpow.pop %v280
  %v282 = vadd.f32 %v273, 1.0
  %v283 = vadd.f32 %v275, 1.0
  %v284 = vadd.f32 %v277, 1.0
  %v285 = vadd.f32 %v279, 1.0
  %v286 = vadd.f32 %v281, 1.0
  %v287 = vrcp.pop %v282
  %v288 = vmul.f32 1.0, %v287
  %v289 = vrcp.pop %v283
  %v290 = vmul.f32 1.0, %v289
  %v291 = vrcp.pop %v284
  %v292 = vmul.f32 1.0, %v291
  %v293 = vrcp.pop %v285
  %v294 = vmul.f32 1.0, %v293
  %v295 = vrcp.pop %v286
  %v296 = vmul.f32 1.0, %v295
  %v297 = vmul.f32 %v241, %v288
  %v298 = vmul.f32 %v244, %v290
  %v299 = vmul.f32 %v249, %v292
  %v300 = vmul.f32 %v252, %v294
  %v301 = vmul.f32 %v257, %v296
  %v302 = vpack.c.bf16 %v298, %v297
  %v303 = vpack.c.bf16 %v300, %v299
  %v304 = vpack.c.bf16 %v301, %v301
  %v308 = vunpack.c.l.b16 %v302
  %v309 = vunpack.c.h.b16 %v302
  %v310 = vunpack.c.l.b16 %v303
  %v311 = vunpack.c.h.b16 %v303
  %v312 = vunpack.c.l.b16 %v304
  %v313 = vpack.c.b16 %v308, %v308
  %v314 = vpack.c.b16 %v309, %v309
  %v315 = vpack.c.b16 %v310, %v310
  %v316 = vpack.c.b16 %v311, %v311
  %v317 = vpack.c.b16 %v312, %v312
  %323 = vst [vmem:[%s5] sm:$0xf] %v313
  %324 = vst [vmem:[%s5 + $0x4] sm:$0xf] %v314
  %325 = vst [vmem:[%s5 + $0x8] sm:$0xf] %v315
  %326 = vst [vmem:[%s5 + $0xc] sm:$0xf] %v316
  %327 = vst [vmem:[%s5 + $0x10] sm:$0x1] %v317
  // Predicated region
  $region26: #{vision_transformer_forward.18} parent=0 // pred_check
    _
  $region27: #{vision_transformer_forward.18} parent=0 // pred_check_branch
    %329 = sbr.rel (0) target = $region29
  $region28: #{vision_transformer_forward.18} parent=0 // pred_region
    _
  $region29: #{vision_transformer_forward.18} parent=0 // pred_fallthru
    _
  // Predicated region
  $region30: #{vision_transformer_forward.18} parent=0 // pred_check
    _
  $region31: #{vision_transformer_forward.18} parent=0 // pred_check_branch
    %331 = sbr.rel (0) target = $region33
  $region32: #{vision_transformer_forward.18} parent=0 // pred_region
    _
  $region33: #{vision_transformer_forward.18} parent=0 // pred_fallthru
    _

// kernel: vision_transformer_forward.19
$region0: #{vision_transformer_forward.19}
  #allocation0 [shape = 'u32[]', space=smem, size = 0x4, offset = 0x4, fixed_abs, tag = 'smem constant byte address 0x4 - core index']
  #allocation1 [shape = 'u32[144,128]{1,0:T(1,128)}', space=vmem, size = 0x12000, scoped, tag = 'internal scratch']
  #allocation2 [shape = 'f32[34,32]{1,0:T(8,128)}', space=vmem, size = 0x5000, scoped, tag = 'scratch operand']
  %s0 = inlined_call_operand.vmem [shape: bf16[34,128], index: 0, kind: input, shape index: {}]
  %s1 = inlined_call_operand.vmem [shape: bf16[128,32], index: 1, kind: input, shape index: {}]
  %s2 = inlined_call_operand.vmem [shape: f32[1,32], index: 2, kind: input, shape index: {}]
  %s3 = inlined_call_operand.vmem [shape: bf16[34,32], index: 3, kind: input, shape index: {}]
  %s4 = inlined_call_operand.vmem [shape: bf16[34,32], index: 4, kind: output, shape index: {}]
  %s5 = sld [smem:[#allocation0]]
  $region34: #{vision_transformer_forward.19} parent=0
    _
  %s7 = ssub.s32 1, %s5
  %s8 = scalar_select 0, %s7, %s5
  // Predicated region
  $region2: #{vision_transformer_forward.19} parent=0 // pred_check
    _
  $region3: #{vision_transformer_forward.19} parent=0 // pred_check_branch
    %10 = sbr.rel (0) target = $region5
  $region4: #{vision_transformer_forward.19} parent=0 // pred_region
    _
  $region5: #{vision_transformer_forward.19} parent=0 // pred_fallthru
    _
  // Predicated region
  $region6: #{vision_transformer_forward.19} parent=0 // pred_check
    _
  $region7: #{vision_transformer_forward.19} parent=0 // pred_check_branch
    %12 = sbr.rel (0) target = $region9
  $region8: #{vision_transformer_forward.19} parent=0 // pred_region
    _
  $region9: #{vision_transformer_forward.19} parent=0 // pred_fallthru
    _
  // Predicated region
  $region10: #{vision_transformer_forward.19} parent=0 // pred_check
    _
  $region11: #{vision_transformer_forward.19} parent=0 // pred_check_branch
    %14 = sbr.rel (0) target = $region13
  $region12: #{vision_transformer_forward.19} parent=0 // pred_region
    _
  $region13: #{vision_transformer_forward.19} parent=0 // pred_fallthru
    _
  // Predicated region
  $region14: #{vision_transformer_forward.19} parent=0 // pred_check
    _
  $region15: #{vision_transformer_forward.19} parent=0 // pred_check_branch
    %16 = sbr.rel (0) target = $region17
  $region16: #{vision_transformer_forward.19} parent=0 // pred_region
    _
  $region17: #{vision_transformer_forward.19} parent=0 // pred_fallthru
    _
  %p18 = scmp.eq.s32.totalorder 0, 0
  // Predicated region
  $region18: #{vision_transformer_forward.19} parent=0 // pred_check
    %p19 = pneg %p18
  $region19: #{vision_transformer_forward.19} parent=0 // pred_check_branch
    %21 = sbr.rel (%p19) target = $region21
  $region20: #{vision_transformer_forward.19} parent=0 // pred_region
    %vm22 = vcmask 261120
    %23 = vst.msk [vmem:[#allocation2] sm:$0xff] %vm22, 0.0
    %24 = vst.msk [vmem:[#allocation2 + $0x8] sm:$0xff] %vm22, 0.0
    %25 = vst.msk [vmem:[#allocation2 + $0x10] sm:$0xff] %vm22, 0.0
    %26 = vst.msk [vmem:[#allocation2 + $0x18] sm:$0xff] %vm22, 0.0
    %vm27 = vcmask 254976
    %28 = vst.msk [vmem:[#allocation2 + $0x20] sm:$0x3] %vm27, 0.0
  $region21: #{vision_transformer_forward.19} parent=0 // pred_fallthru
    _
  %v29 = vld [vmem:[#allocation2] sm:$0xff]
  %v30 = vld [vmem:[#allocation2 + $0x8] sm:$0xff]
  %v31 = vld [vmem:[#allocation2 + $0x10] sm:$0xff]
  %v32 = vld [vmem:[#allocation2 + $0x18] sm:$0xff]
  %v33 = vld [vmem:[#allocation2 + $0x20] sm:$0x3]
  %v34 = vld [vmem:[%s0] sm:$0xf]
  %v35 = vld [vmem:[%s0 + $0x4] sm:$0xf]
  %v36 = vld [vmem:[%s0 + $0x8] sm:$0xf]
  %v37 = vld [vmem:[%s0 + $0xc] sm:$0xf]
  %v38 = vld [vmem:[%s0 + $0x10] sm:$0x1]
  %v39 = vld [vmem:[%s1] sm:$0xf]
  %v40 = vld [vmem:[%s1 + $0x4] sm:$0xf]
  %v41 = vld [vmem:[%s1 + $0x8] sm:$0xf]
  %v42 = vld [vmem:[%s1 + $0xc] sm:$0xf]
  %v43 = vld [vmem:[%s1 + $0x10] sm:$0xf]
  %v44 = vld [vmem:[%s1 + $0x14] sm:$0xf]
  %v45 = vld [vmem:[%s1 + $0x18] sm:$0xf]
  %v46 = vld [vmem:[%s1 + $0x1c] sm:$0xf]
  %v47 = vld [vmem:[%s1 + $0x20] sm:$0xf]
  %v48 = vld [vmem:[%s1 + $0x24] sm:$0xf]
  %v49 = vld [vmem:[%s1 + $0x28] sm:$0xf]
  %v50 = vld [vmem:[%s1 + $0x2c] sm:$0xf]
  %v51 = vld [vmem:[%s1 + $0x30] sm:$0xf]
  %v52 = vld [vmem:[%s1 + $0x34] sm:$0xf]
  %v53 = vld [vmem:[%s1 + $0x38] sm:$0xf]
  %v54 = vld [vmem:[%s1 + $0x3c] sm:$0xf]
  %v60 = vunpack.c.l.b16 %v34
  %v61 = vunpack.c.l.b16 %v35
  %v62 = vunpack.c.l.b16 %v36
  %v63 = vunpack.c.l.b16 %v37
  %v64 = vunpack.c.l.b16 %v38
  %v65 = vpack.c.b16 %v61, %v60
  %v66 = vpack.c.b16 %v63, %v62
  %v67 = vpack.c.b16 %v64, %v64
  %v87 = vunpack.c.l.b16 %v39
  %v88 = vunpack.c.l.b16 %v40
  %v89 = vunpack.c.l.b16 %v41
  %v90 = vunpack.c.l.b16 %v42
  %v91 = vunpack.c.l.b16 %v43
  %v92 = vunpack.c.l.b16 %v44
  %v93 = vunpack.c.l.b16 %v45
  %v94 = vunpack.c.l.b16 %v46
  %v95 = vunpack.c.l.b16 %v47
  %v96 = vunpack.c.l.b16 %v48
  %v97 = vunpack.c.l.b16 %v49
  %v98 = vunpack.c.l.b16 %v50
  %v99 = vunpack.c.l.b16 %v51
  %v100 = vunpack.c.l.b16 %v52
  %v101 = vunpack.c.l.b16 %v53
  %v102 = vunpack.c.l.b16 %v54
  %v103 = vpack.c.b16 %v88, %v87
  %v104 = vpack.c.b16 %v90, %v89
  %v105 = vpack.c.b16 %v92, %v91
  %v106 = vpack.c.b16 %v94, %v93
  %v107 = vpack.c.b16 %v96, %v95
  %v108 = vpack.c.b16 %v98, %v97
  %v109 = vpack.c.b16 %v100, %v99
  %v110 = vpack.c.b16 %v102, %v101
  %119 = vmatprep.subr.bf16.mxu0 0
  %120 = vmatpush1.bf16.msra.mxu0 %v103
  %121 = vmatprep.subr.bf16.mxu0 0
  %122 = vmatpush1.bf16.msra.mxu0 %v104
  %123 = vmatprep.subr.bf16.mxu0 0
  %124 = vmatpush1.bf16.msra.mxu0 %v105
  %125 = vmatprep.subr.bf16.mxu0 0
  %126 = vmatpush1.bf16.msra.mxu0 %v106
  %127 = vmatprep.subr.bf16.mxu0 0
  %128 = vmatpush1.bf16.msra.mxu0 %v107
  %129 = vmatprep.subr.bf16.mxu0 0
  %130 = vmatpush1.bf16.msra.mxu0 %v108
  %131 = vmatprep.subr.bf16.mxu0 0
  %132 = vmatpush1.bf16.msra.mxu0 %v109
  %133 = vmatprep.subr.bf16.mxu0 0
  %134 = vmatpush1.bf16.msra.mxu0 %v110
  %135 = vmatprep.subr.bf16.mxu0 0
  %136 = vmatpush1.bf16.msra.mxu0 0
  %137 = vmatprep.subr.bf16.mxu0 0
  %138 = vmatpush1.bf16.msra.mxu0 0
  %139 = vmatprep.subr.bf16.mxu0 0
  %140 = vmatpush1.bf16.msra.mxu0 0
  %141 = vmatprep.subr.bf16.mxu0 0
  %142 = vmatpush1.bf16.msra.mxu0 0
  %143 = vmatprep.subr.bf16.mxu0 0
  %144 = vmatpush1.bf16.msra.mxu0 0
  %145 = vmatprep.subr.bf16.mxu0 0
  %146 = vmatpush1.bf16.msra.mxu0 0
  %147 = vmatprep.subr.bf16.mxu0 0
  %148 = vmatpush1.bf16.msra.mxu0 0
  %149 = vmatprep.subr.bf16.mxu0 0
  %150 = vmatpush1.bf16.msra.mxu0 0
  %151 = vmatprep.mubr.bf16.mxu0 0
  %152 = vmatmul.mubr.bf16.gmra.mrb[0].mxu0 %v65
  %v153 = vpop.f32.mrb[0].mxu0
  %v154 = vadd.f32 0.0, %v153
  %v155 = vpop.f32.mrb[0].mxu0
  %v156 = vpop.f32.mrb[0].mxu0
  %v157 = vadd.f32 0.0, %v156
  %v158 = vpop.f32.mrb[0].mxu0
  %159 = vmatprep.mubr.bf16.mxu0 0
  %160 = vmatmul.mubr.bf16.gmra.mrb[0].mxu0 %v66
  %v161 = vpop.f32.mrb[0].mxu0
  %v162 = vadd.f32 0.0, %v161
  %v163 = vpop.f32.mrb[0].mxu0
  %v164 = vpop.f32.mrb[0].mxu0
  %v165 = vadd.f32 0.0, %v164
  %v166 = vpop.f32.mrb[0].mxu0
  %167 = vmatprep.mubr.bf16.mxu0 0
  %168 = vmatmul.mubr.bf16.gmra.mrb[0].mxu0 %v67
  %v169 = vpop.f32.mrb[0].mxu0
  %v170 = vadd.f32 0.0, %v169
  %v171 = vpop.f32.mrb[0].mxu0
  %v172 = vpop.f32.mrb[0].mxu0
  %v173 = vpop.f32.mrb[0].mxu0
  %174 = vdwg.mxu0
  %v175 = vadd.f32 %v29, %v154
  %v176 = vadd.f32 %v30, %v157
  %v177 = vadd.f32 %v31, %v162
  %v178 = vadd.f32 %v32, %v165
  %v179 = vadd.f32 %v33, %v170
  %vm180 = vcmask 261120
  %181 = vst.msk [vmem:[#allocation2] sm:$0xff] %vm180, %v175
  %182 = vst.msk [vmem:[#allocation2 + $0x8] sm:$0xff] %vm180, %v176
  %183 = vst.msk [vmem:[#allocation2 + $0x10] sm:$0xff] %vm180, %v177
  %184 = vst.msk [vmem:[#allocation2 + $0x18] sm:$0xff] %vm180, %v178
  %vm185 = vcmask 254976
  %186 = vst.msk [vmem:[#allocation2 + $0x20] sm:$0x3] %vm185, %v179
  // Predicated region
  $region22: #{vision_transformer_forward.19} parent=0 // pred_check
    %p187 = pneg %p18
  $region23: #{vision_transformer_forward.19} parent=0 // pred_check_branch
    %189 = sbr.rel (%p187) target = $region25
  $region24: #{vision_transformer_forward.19} parent=0 // pred_region
    %v190 = vld [vmem:[#allocation2] sm:$0xff]
    %v191 = vld [vmem:[#allocation2 + $0x8] sm:$0xff]
    %v192 = vld [vmem:[#allocation2 + $0x10] sm:$0xff]
    %v193 = vld [vmem:[#allocation2 + $0x18] sm:$0xff]
    %v194 = vld [vmem:[#allocation2 + $0x20] sm:$0x3]
    %v195 = vld [vmem:[%s2] sm:$0x1]
    %v197 = vlaneseq
    %v198 = vshrl.u32 %v197, 7
    %v199 = vsub.s32 0, %v198
    %v200 = vrot.slane %v195, %v199
    %v202 = vadd.f32 %v190, %v200
    %v203 = vadd.f32 %v191, %v200
    %v204 = vadd.f32 %v192, %v200
    %v205 = vadd.f32 %v193, %v200
    %v206 = vadd.f32 %v194, %v200
    %v207 = vld [vmem:[%s3] sm:$0xf]
    %v208 = vld [vmem:[%s3 + $0x4] sm:$0xf]
    %v209 = vld [vmem:[%s3 + $0x8] sm:$0xf]
    %v210 = vld [vmem:[%s3 + $0xc] sm:$0xf]
    %v211 = vld [vmem:[%s3 + $0x10] sm:$0x1]
    %v212 = vunpack.c.l.bf16 %v207
    %v213 = vunpack.c.l.bf16 %v208
    %v214 = vunpack.c.l.bf16 %v209
    %v215 = vunpack.c.l.bf16 %v210
    %v216 = vunpack.c.l.bf16 %v211
    %v217 = vadd.f32 %v202, %v212
    %v218 = vadd.f32 %v203, %v213
    %v219 = vadd.f32 %v204, %v214
    %v220 = vadd.f32 %v205, %v215
    %v221 = vadd.f32 %v206, %v216
    %v222 = vpack.c.bf16 %v218, %v217
    %v223 = vpack.c.bf16 %v220, %v219
    %v224 = vpack.c.bf16 %v221, %v221
    %v228 = vunpack.c.l.b16 %v222
    %v229 = vunpack.c.h.b16 %v222
    %v230 = vunpack.c.l.b16 %v223
    %v231 = vunpack.c.h.b16 %v223
    %v232 = vunpack.c.l.b16 %v224
    %v233 = vpack.c.b16 %v228, %v228
    %v234 = vpack.c.b16 %v229, %v229
    %v235 = vpack.c.b16 %v230, %v230
    %v236 = vpack.c.b16 %v231, %v231
    %v237 = vpack.c.b16 %v232, %v232
    %vm243 = vcmask 257024
    %244 = vst.msk [vmem:[%s4] sm:$0xf] %vm243, %v233
    %245 = vst.msk [vmem:[%s4 + $0x4] sm:$0xf] %vm243, %v234
    %246 = vst.msk [vmem:[%s4 + $0x8] sm:$0xf] %vm243, %v235
    %247 = vst.msk [vmem:[%s4 + $0xc] sm:$0xf] %vm243, %v236
    %vm248 = vcmask 253952
    %249 = vst.msk [vmem:[%s4 + $0x10] sm:$0x1] %vm248, %v237
  $region25: #{vision_transformer_forward.19} parent=0 // pred_fallthru
    _
  // Predicated region
  $region26: #{vision_transformer_forward.19} parent=0 // pred_check
    _
  $region27: #{vision_transformer_forward.19} parent=0 // pred_check_branch
    %251 = sbr.rel (0) target = $region29
  $region28: #{vision_transformer_forward.19} parent=0 // pred_region
    _
  $region29: #{vision_transformer_forward.19} parent=0 // pred_fallthru
    _
  // Predicated region
  $region30: #{vision_transformer_forward.19} parent=0 // pred_check
    _
  $region31: #{vision_transformer_forward.19} parent=0 // pred_check_branch
    %253 = sbr.rel (0) target = $region33
  $region32: #{vision_transformer_forward.19} parent=0 // pred_region
    _
  $region33: #{vision_transformer_forward.19} parent=0 // pred_fallthru
    _

// kernel: vision_transformer_forward.17
$region0: #{vision_transformer_forward.17}
  #allocation0 [shape = 'u32[]', space=smem, size = 0x4, offset = 0x4, fixed_abs, tag = 'smem constant byte address 0x4 - core index']
  #allocation1 [shape = 'u32[144,128]{1,0:T(1,128)}', space=vmem, size = 0x12000, scoped, tag = 'internal scratch']
  #allocation2 [shape = 'f32[34,32]{1,0:T(8,128)}', space=vmem, size = 0x5000, scoped, tag = 'scratch operand']
  %s0 = inlined_call_operand.vmem [shape: bf16[34,32], index: 0, kind: input, shape index: {}]
  %s1 = inlined_call_operand.vmem [shape: bf16[32,32], index: 1, kind: input, shape index: {}]
  %s2 = inlined_call_operand.vmem [shape: f32[1,32], index: 2, kind: input, shape index: {}]
  %s3 = inlined_call_operand.vmem [shape: bf16[34,32], index: 3, kind: input, shape index: {}]
  %s4 = inlined_call_operand.vmem [shape: bf16[34,32], index: 4, kind: output, shape index: {}]
  %s5 = sld [smem:[#allocation0]]
  $region34: #{vision_transformer_forward.17} parent=0
    _
  %s7 = ssub.s32 1, %s5
  %s8 = scalar_select 0, %s7, %s5
  // Predicated region
  $region2: #{vision_transformer_forward.17} parent=0 // pred_check
    _
  $region3: #{vision_transformer_forward.17} parent=0 // pred_check_branch
    %10 = sbr.rel (0) target = $region5
  $region4: #{vision_transformer_forward.17} parent=0 // pred_region
    _
  $region5: #{vision_transformer_forward.17} parent=0 // pred_fallthru
    _
  // Predicated region
  $region6: #{vision_transformer_forward.17} parent=0 // pred_check
    _
  $region7: #{vision_transformer_forward.17} parent=0 // pred_check_branch
    %12 = sbr.rel (0) target = $region9
  $region8: #{vision_transformer_forward.17} parent=0 // pred_region
    _
  $region9: #{vision_transformer_forward.17} parent=0 // pred_fallthru
    _
  // Predicated region
  $region10: #{vision_transformer_forward.17} parent=0 // pred_check
    _
  $region11: #{vision_transformer_forward.17} parent=0 // pred_check_branch
    %14 = sbr.rel (0) target = $region13
  $region12: #{vision_transformer_forward.17} parent=0 // pred_region
    _
  $region13: #{vision_transformer_forward.17} parent=0 // pred_fallthru
    _
  // Predicated region
  $region14: #{vision_transformer_forward.17} parent=0 // pred_check
    _
  $region15: #{vision_transformer_forward.17} parent=0 // pred_check_branch
    %16 = sbr.rel (0) target = $region17
  $region16: #{vision_transformer_forward.17} parent=0 // pred_region
    _
  $region17: #{vision_transformer_forward.17} parent=0 // pred_fallthru
    _
  %p18 = scmp.eq.s32.totalorder 0, 0
  // Predicated region
  $region18: #{vision_transformer_forward.17} parent=0 // pred_check
    %p19 = pneg %p18
  $region19: #{vision_transformer_forward.17} parent=0 // pred_check_branch
    %21 = sbr.rel (%p19) target = $region21
  $region20: #{vision_transformer_forward.17} parent=0 // pred_region
    %vm22 = vcmask 261120
    %23 = vst.msk [vmem:[#allocation2] sm:$0xff] %vm22, 0.0
    %24 = vst.msk [vmem:[#allocation2 + $0x8] sm:$0xff] %vm22, 0.0
    %25 = vst.msk [vmem:[#allocation2 + $0x10] sm:$0xff] %vm22, 0.0
    %26 = vst.msk [vmem:[#allocation2 + $0x18] sm:$0xff] %vm22, 0.0
    %vm27 = vcmask 254976
    %28 = vst.msk [vmem:[#allocation2 + $0x20] sm:$0x3] %vm27, 0.0
  $region21: #{vision_transformer_forward.17} parent=0 // pred_fallthru
    _
  %v29 = vld [vmem:[#allocation2] sm:$0xff]
  %v30 = vld [vmem:[#allocation2 + $0x8] sm:$0xff]
  %v31 = vld [vmem:[#allocation2 + $0x10] sm:$0xff]
  %v32 = vld [vmem:[#allocation2 + $0x18] sm:$0xff]
  %v33 = vld [vmem:[#allocation2 + $0x20] sm:$0x3]
  %v34 = vld [vmem:[%s0] sm:$0xf]
  %v35 = vld [vmem:[%s0 + $0x4] sm:$0xf]
  %v36 = vld [vmem:[%s0 + $0x8] sm:$0xf]
  %v37 = vld [vmem:[%s0 + $0xc] sm:$0xf]
  %v38 = vld [vmem:[%s0 + $0x10] sm:$0x1]
  %v39 = vld [vmem:[%s1] sm:$0xf]
  %v40 = vld [vmem:[%s1 + $0x4] sm:$0xf]
  %v41 = vld [vmem:[%s1 + $0x8] sm:$0xf]
  %v42 = vld [vmem:[%s1 + $0xc] sm:$0xf]
  %v48 = vunpack.c.l.b16 %v34
  %v49 = vunpack.c.l.b16 %v35
  %v50 = vunpack.c.l.b16 %v36
  %v51 = vunpack.c.l.b16 %v37
  %v52 = vunpack.c.l.b16 %v38
  %v53 = vpack.c.b16 %v49, %v48
  %v54 = vpack.c.b16 %v51, %v50
  %v55 = vpack.c.b16 %v52, %v52
  %v60 = vunpack.c.l.b16 %v39
  %v61 = vunpack.c.l.b16 %v40
  %v62 = vunpack.c.l.b16 %v41
  %v63 = vunpack.c.l.b16 %v42
  %v64 = vpack.c.b16 %v61, %v60
  %v65 = vpack.c.b16 %v63, %v62
  %vm68 = vcmask 261120
  %v70 = vsel %vm68, %v53, 0
  %v73 = vsel %vm68, %v54, 0
  %v76 = vsel %vm68, %v55, 0
  %78 = vmatprep.subr.bf16.mxu0 0
  %79 = vmatpush1.bf16.msra.mxu0 %v64
  %80 = vmatprep.subr.bf16.mxu0 0
  %81 = vmatpush1.bf16.msra.mxu0 %v65
  %82 = vmatprep.subr.bf16.mxu0 0
  %83 = vmatpush1.bf16.msra.mxu0 0
  %84 = vmatprep.subr.bf16.mxu0 0
  %85 = vmatpush1.bf16.msra.mxu0 0
  %86 = vmatprep.subr.bf16.mxu0 0
  %87 = vmatpush1.bf16.msra.mxu0 0
  %88 = vmatprep.subr.bf16.mxu0 0
  %89 = vmatpush1.bf16.msra.mxu0 0
  %90 = vmatprep.subr.bf16.mxu0 0
  %91 = vmatpush1.bf16.msra.mxu0 0
  %92 = vmatprep.subr.bf16.mxu0 0
  %93 = vmatpush1.bf16.msra.mxu0 0
  %94 = vmatprep.subr.bf16.mxu0 0
  %95 = vmatpush1.bf16.msra.mxu0 0
  %96 = vmatprep.subr.bf16.mxu0 0
  %97 = vmatpush1.bf16.msra.mxu0 0
  %98 = vmatprep.subr.bf16.mxu0 0
  %99 = vmatpush1.bf16.msra.mxu0 0
  %100 = vmatprep.subr.bf16.mxu0 0
  %101 = vmatpush1.bf16.msra.mxu0 0
  %102 = vmatprep.subr.bf16.mxu0 0
  %103 = vmatpush1.bf16.msra.mxu0 0
  %104 = vmatprep.subr.bf16.mxu0 0
  %105 = vmatpush1.bf16.msra.mxu0 0
  %106 = vmatprep.subr.bf16.mxu0 0
  %107 = vmatpush1.bf16.msra.mxu0 0
  %108 = vmatprep.subr.bf16.mxu0 0
  %109 = vmatpush1.bf16.msra.mxu0 0
  %110 = vmatprep.mubr.bf16.mxu0 0
  %111 = vmatmul.mubr.bf16.gmra.mrb[0].mxu0 %v70
  %v112 = vpop.f32.mrb[0].mxu0
  %v113 = vadd.f32 0.0, %v112
  %v114 = vpop.f32.mrb[0].mxu0
  %v115 = vpop.f32.mrb[0].mxu0
  %v116 = vadd.f32 0.0, %v115
  %v117 = vpop.f32.mrb[0].mxu0
  %118 = vmatprep.mubr.bf16.mxu0 0
  %119 = vmatmul.mubr.bf16.gmra.mrb[0].mxu0 %v73
  %v120 = vpop.f32.mrb[0].mxu0
  %v121 = vadd.f32 0.0, %v120
  %v122 = vpop.f32.mrb[0].mxu0
  %v123 = vpop.f32.mrb[0].mxu0
  %v124 = vadd.f32 0.0, %v123
  %v125 = vpop.f32.mrb[0].mxu0
  %126 = vmatprep.mubr.bf16.mxu0 0
  %127 = vmatmul.mubr.bf16.gmra.mrb[0].mxu0 %v76
  %v128 = vpop.f32.mrb[0].mxu0
  %v129 = vadd.f32 0.0, %v128
  %v130 = vpop.f32.mrb[0].mxu0
  %v131 = vpop.f32.mrb[0].mxu0
  %v132 = vpop.f32.mrb[0].mxu0
  %133 = vdwg.mxu0
  %v134 = vadd.f32 %v29, %v113
  %v135 = vadd.f32 %v30, %v116
  %v136 = vadd.f32 %v31, %v121
  %v137 = vadd.f32 %v32, %v124
  %v138 = vadd.f32 %v33, %v129
  %139 = vst.msk [vmem:[#allocation2] sm:$0xff] %vm68, %v134
  %140 = vst.msk [vmem:[#allocation2 + $0x8] sm:$0xff] %vm68, %v135
  %141 = vst.msk [vmem:[#allocation2 + $0x10] sm:$0xff] %vm68, %v136
  %142 = vst.msk [vmem:[#allocation2 + $0x18] sm:$0xff] %vm68, %v137
  %vm143 = vcmask 254976
  %144 = vst.msk [vmem:[#allocation2 + $0x20] sm:$0x3] %vm143, %v138
  // Predicated region
  $region22: #{vision_transformer_forward.17} parent=0 // pred_check
    %p145 = pneg %p18
  $region23: #{vision_transformer_forward.17} parent=0 // pred_check_branch
    %147 = sbr.rel (%p145) target = $region25
  $region24: #{vision_transformer_forward.17} parent=0 // pred_region
    %v148 = vld [vmem:[#allocation2] sm:$0xff]
    %v149 = vld [vmem:[#allocation2 + $0x8] sm:$0xff]
    %v150 = vld [vmem:[#allocation2 + $0x10] sm:$0xff]
    %v151 = vld [vmem:[#allocation2 + $0x18] sm:$0xff]
    %v152 = vld [vmem:[#allocation2 + $0x20] sm:$0x3]
    %v153 = vld [vmem:[%s2] sm:$0x1]
    %v155 = vlaneseq
    %v156 = vshrl.u32 %v155, 7
    %v157 = vsub.s32 0, %v156
    %v158 = vrot.slane %v153, %v157
    %v160 = vadd.f32 %v148, %v158
    %v161 = vadd.f32 %v149, %v158
    %v162 = vadd.f32 %v150, %v158
    %v163 = vadd.f32 %v151, %v158
    %v164 = vadd.f32 %v152, %v158
    %v165 = vld [vmem:[%s3] sm:$0xf]
    %v166 = vld [vmem:[%s3 + $0x4] sm:$0xf]
    %v167 = vld [vmem:[%s3 + $0x8] sm:$0xf]
    %v168 = vld [vmem:[%s3 + $0xc] sm:$0xf]
    %v169 = vld [vmem:[%s3 + $0x10] sm:$0x1]
    %v170 = vunpack.c.l.bf16 %v165
    %v171 = vunpack.c.l.bf16 %v166
    %v172 = vunpack.c.l.bf16 %v167
    %v173 = vunpack.c.l.bf16 %v168
    %v174 = vunpack.c.l.bf16 %v169
    %v175 = vadd.f32 %v160, %v170
    %v176 = vadd.f32 %v161, %v171
    %v177 = vadd.f32 %v162, %v172
    %v178 = vadd.f32 %v163, %v173
    %v179 = vadd.f32 %v164, %v174
    %v180 = vpack.c.bf16 %v176, %v175
    %v181 = vpack.c.bf16 %v178, %v177
    %v182 = vpack.c.bf16 %v179, %v179
    %v186 = vunpack.c.l.b16 %v180
    %v187 = vunpack.c.h.b16 %v180
    %v188 = vunpack.c.l.b16 %v181
    %v189 = vunpack.c.h.b16 %v181
    %v190 = vunpack.c.l.b16 %v182
    %v191 = vpack.c.b16 %v186, %v186
    %v192 = vpack.c.b16 %v187, %v187
    %v193 = vpack.c.b16 %v188, %v188
    %v194 = vpack.c.b16 %v189, %v189
    %v195 = vpack.c.b16 %v190, %v190
    %vm201 = vcmask 257024
    %202 = vst.msk [vmem:[%s4] sm:$0xf] %vm201, %v191
    %203 = vst.msk [vmem:[%s4 + $0x4] sm:$0xf] %vm201, %v192
    %204 = vst.msk [vmem:[%s4 + $0x8] sm:$0xf] %vm201, %v193
    %205 = vst.msk [vmem:[%s4 + $0xc] sm:$0xf] %vm201, %v194
    %vm206 = vcmask 253952
    %207 = vst.msk [vmem:[%s4 + $0x10] sm:$0x1] %vm206, %v195
  $region25: #{vision_transformer_forward.17} parent=0 // pred_fallthru
    _
  // Predicated region
  $region26: #{vision_transformer_forward.17} parent=0 // pred_check
    _
  $region27: #{vision_transformer_forward.17} parent=0 // pred_check_branch
    %209 = sbr.rel (0) target = $region29
  $region28: #{vision_transformer_forward.17} parent=0 // pred_region
    _
  $region29: #{vision_transformer_forward.17} parent=0 // pred_fallthru
    _
  // Predicated region
  $region30: #{vision_transformer_forward.17} parent=0 // pred_check
    _
  $region31: #{vision_transformer_forward.17} parent=0 // pred_check_branch
    %211 = sbr.rel (0) target = $region33
  $region32: #{vision_transformer_forward.17} parent=0 // pred_region
    _
  $region33: #{vision_transformer_forward.17} parent=0 // pred_fallthru
    _

// kernel: vision_transformer_forward.25
$region0: #{vision_transformer_forward.25}
  #allocation0 [shape = 'u32[]', space=smem, size = 0x4, offset = 0x4, fixed_abs, tag = 'smem constant byte address 0x4 - core index']
  #allocation1 [shape = 'u32[144,128]{1,0:T(1,128)}', space=vmem, size = 0x12000, scoped, tag = 'internal scratch']
  #allocation2 [shape = 'bf16[2,32]{1,0:T(2,128)(2,1)}', space=vmem, size = 0x200, scoped, tag = 'scratch operand']
  %s0 = inlined_call_operand.vmem [shape: bf16[2,32], index: 0, kind: input, shape index: {}]
  %s1 = inlined_call_operand.vmem [shape: f32[1,32], index: 1, kind: input, shape index: {}]
  %s2 = inlined_call_operand.vmem [shape: f32[1,32], index: 2, kind: input, shape index: {}]
  %s3 = inlined_call_operand.vmem [shape: bf16[32,16], index: 3, kind: input, shape index: {}]
  %s4 = inlined_call_operand.vmem [shape: bf16[2,16], index: 4, kind: output, shape index: {}]
  %s5 = sld [smem:[#allocation0]]
  $region30: #{vision_transformer_forward.25} parent=0
    _
  %s7 = ssub.s32 1, %s5
  %s8 = scalar_select 0, %s7, %s5
  // Predicated region
  $region2: #{vision_transformer_forward.25} parent=0 // pred_check
    _
  $region3: #{vision_transformer_forward.25} parent=0 // pred_check_branch
    %10 = sbr.rel (0) target = $region5
  $region4: #{vision_transformer_forward.25} parent=0 // pred_region
    _
  $region5: #{vision_transformer_forward.25} parent=0 // pred_fallthru
    _
  // Predicated region
  $region6: #{vision_transformer_forward.25} parent=0 // pred_check
    _
  $region7: #{vision_transformer_forward.25} parent=0 // pred_check_branch
    %12 = sbr.rel (0) target = $region9
  $region8: #{vision_transformer_forward.25} parent=0 // pred_region
    _
  $region9: #{vision_transformer_forward.25} parent=0 // pred_fallthru
    _
  // Predicated region
  $region10: #{vision_transformer_forward.25} parent=0 // pred_check
    _
  $region11: #{vision_transformer_forward.25} parent=0 // pred_check_branch
    %14 = sbr.rel (0) target = $region13
  $region12: #{vision_transformer_forward.25} parent=0 // pred_region
    _
  $region13: #{vision_transformer_forward.25} parent=0 // pred_fallthru
    _
  // Predicated region
  $region14: #{vision_transformer_forward.25} parent=0 // pred_check
    _
  $region15: #{vision_transformer_forward.25} parent=0 // pred_check_branch
    %16 = sbr.rel (0) target = $region17
  $region16: #{vision_transformer_forward.25} parent=0 // pred_region
    _
  $region17: #{vision_transformer_forward.25} parent=0 // pred_fallthru
    _
  %p18 = scmp.eq.s32.totalorder 0, 0
  // Predicated region
  $region18: #{vision_transformer_forward.25} parent=0 // pred_check
    %p19 = pneg %p18
  $region19: #{vision_transformer_forward.25} parent=0 // pred_check_branch
    %21 = sbr.rel (%p19) target = $region21
  $region20: #{vision_transformer_forward.25} parent=0 // pred_region
    %v22 = vld [vmem:[%s0] sm:$0x1]
    %v23 = vunpack.c.l.bf16 %v22
    %vm24 = vcmask 254976
    %v25 = vsel %vm24, %v23, 0.0
    %26 = vadd.xlane.f32.xlu0 %v25
    %v27 = vpop.xlane.xlu0 %26
    %v28 = vrcp.pop 32.0
    %v29 = vmul.f32 %v27, %v28
    %v30 = vsub.f32 %v23, %v29
    %v31 = vmul.f32 %v30, %v30
    %v32 = vsel %vm24, %v31, 0.0
    %33 = vadd.xlane.f32.xlu0 %v32
    %v34 = vpop.xlane.xlu0 %33
    %v35 = vmul.f32 %v34, %v28
    %v36 = vadd.f32 %v35, 1e-05
    %v37 = vrsqrt.pop %v36
    %v38 = vmul.f32 %v30, %v37
    %v39 = vld [vmem:[%s1] sm:$0x1]
    %v41 = vlaneseq
    %v42 = vshrl.u32 %v41, 7
    %v43 = vsub.s32 0, %v42
    %v44 = vrot.slane %v39, %v43
    %v46 = vmul.f32 %v38, %v44
    %v47 = vld [vmem:[%s2] sm:$0x1]
    %v49 = vlaneseq
    %v50 = vshrl.u32 %v49, 7
    %v51 = vsub.s32 0, %v50
    %v52 = vrot.slane %v47, %v51
    %v54 = vadd.f32 %v46, %v52
    %v55 = vpack.c.bf16 %v54, %v54
    %vm56 = vcmask 253952
    %57 = vst.msk [vmem:[#allocation2] sm:$0x1] %vm56, %v55
  $region21: #{vision_transformer_forward.25} parent=0 // pred_fallthru
    _
  %v58 = vld [vmem:[#allocation2] sm:$0x1]
  %v59 = vld [vmem:[%s3] sm:$0xf]
  %v60 = vld [vmem:[%s3 + $0x4] sm:$0xf]
  %v61 = vld [vmem:[%s3 + $0x8] sm:$0xf]
  %v62 = vld [vmem:[%s3 + $0xc] sm:$0xf]
  %v67 = vunpack.c.l.b16 %v59
  %v68 = vunpack.c.l.b16 %v60
  %v69 = vunpack.c.l.b16 %v61
  %v70 = vunpack.c.l.b16 %v62
  %v71 = vpack.c.b16 %v68, %v67
  %v72 = vpack.c.b16 %v70, %v69
  %vm75 = vcmask 261120
  %v77 = vsel %vm75, %v58, 0
  %79 = vmatprep.subr.bf16.mxu0 0
  %80 = vmatpush1.bf16.msra.mxu0 %v71
  %81 = vmatprep.subr.bf16.mxu0 0
  %82 = vmatpush1.bf16.msra.mxu0 %v72
  %83 = vmatprep.subr.bf16.mxu0 0
  %84 = vmatpush1.bf16.msra.mxu0 0
  %85 = vmatprep.subr.bf16.mxu0 0
  %86 = vmatpush1.bf16.msra.mxu0 0
  %87 = vmatprep.subr.bf16.mxu0 0
  %88 = vmatpush1.bf16.msra.mxu0 0
  %89 = vmatprep.subr.bf16.mxu0 0
  %90 = vmatpush1.bf16.msra.mxu0 0
  %91 = vmatprep.subr.bf16.mxu0 0
  %92 = vmatpush1.bf16.msra.mxu0 0
  %93 = vmatprep.subr.bf16.mxu0 0
  %94 = vmatpush1.bf16.msra.mxu0 0
  %95 = vmatprep.subr.bf16.mxu0 0
  %96 = vmatpush1.bf16.msra.mxu0 0
  %97 = vmatprep.subr.bf16.mxu0 0
  %98 = vmatpush1.bf16.msra.mxu0 0
  %99 = vmatprep.subr.bf16.mxu0 0
  %100 = vmatpush1.bf16.msra.mxu0 0
  %101 = vmatprep.subr.bf16.mxu0 0
  %102 = vmatpush1.bf16.msra.mxu0 0
  %103 = vmatprep.subr.bf16.mxu0 0
  %104 = vmatpush1.bf16.msra.mxu0 0
  %105 = vmatprep.subr.bf16.mxu0 0
  %106 = vmatpush1.bf16.msra.mxu0 0
  %107 = vmatprep.subr.bf16.mxu0 0
  %108 = vmatpush1.bf16.msra.mxu0 0
  %109 = vmatprep.subr.bf16.mxu0 0
  %110 = vmatpush1.bf16.msra.mxu0 0
  %111 = vmatprep.mubr.bf16.mxu0 0
  %112 = vmatmul.mubr.bf16.gmra.mrb[0].mxu0 %v77
  %v113 = vpop.f32.mrb[0].mxu0
  %v114 = vadd.f32 0.0, %v113
  %v115 = vpop.f32.mrb[0].mxu0
  %v116 = vpop.f32.mrb[0].mxu0
  %v117 = vpop.f32.mrb[0].mxu0
  %118 = vdwg.mxu0
  %v119 = vpack.c.bf16 %v114, %v114
  %vm120 = vcmask 122880
  %121 = vst.msk [vmem:[%s4] sm:$0x1] %vm120, %v119
  // Predicated region
  $region22: #{vision_transformer_forward.25} parent=0 // pred_check
    _
  $region23: #{vision_transformer_forward.25} parent=0 // pred_check_branch
    %123 = sbr.rel (0) target = $region25
  $region24: #{vision_transformer_forward.25} parent=0 // pred_region
    _
  $region25: #{vision_transformer_forward.25} parent=0 // pred_fallthru
    _
  // Predicated region
  $region26: #{vision_transformer_forward.25} parent=0 // pred_check
    _
  $region27: #{vision_transformer_forward.25} parent=0 // pred_check_branch
    %125 = sbr.rel (0) target = $region29
  $region28: #{vision_transformer_forward.25} parent=0 // pred_region
    _
  $region29: #{vision_transformer_forward.25} parent=0 // pred_fallthru
    _

</llo_original>
